<compile_context>
chip_gen: v7x
topology: tpu7x:2x2x1
jax: 0.10.0
libtpu: 0.0.40
codegen_flags: <defaults>
</compile_context>

<pallas_src>
import functools

import jax
import jax.numpy as jnp
from jax import lax
from jax.experimental import pallas as pl
from jax.experimental.pallas import tpu as pltpu

HIDDEN = 256
FC_MID = 128


def lstm_recurrence_kernel(x_ref, wih_ref, whh_ref, bias_ref, h_out_ref,
                           h_ref, c_ref, *, seq_len, chunk_len, unroll, mask_tail):
    """One (batch block, time chunk) grid step of the LSTM recurrence.

    x_ref    : (TT, BT, D)  bf16  -- input chunk (streamed)
    wih_ref  : (D, 4H)      bf16  -- W_ih^T (resident)
    whh_ref  : (H, 4H)      bf16  -- W_hh^T (resident)
    bias_ref : (1, 4H)      f32   -- b_ih + b_hh (resident)
    h_out_ref: (BT, H)      f32   -- last hidden state (written on the final time chunk)
    h_ref    : (BT, H)      bf16  VMEM scratch (hidden state, matmul-operand precision)
    c_ref    : (BT, H)      f32   VMEM scratch (cell state)
    """
    t_chunk = pl.program_id(1)

    @pl.when(t_chunk == 0)
    def _():
        h_ref[...] = jnp.zeros_like(h_ref)
        c_ref[...] = jnp.zeros_like(c_ref)

    wih = wih_ref[...]            # read resident weights once per chunk
    whh = whh_ref[...]
    bias = bias_ref[...]
    t_base = t_chunk * chunk_len
    H = HIDDEN

    def step(i, carry):
        h, c = carry
        # gates = x_t @ W_ih^T + h @ W_hh^T + b   (bf16 MXU operands, f32 accumulation)
        gates = (jnp.dot(x_ref[i], wih, preferred_element_type=jnp.float32)
                 + jnp.dot(h, whh, preferred_element_type=jnp.float32)
                 + bias)
        # Gate math kept in f32 (v5e has no bf16 VPU/EUP; also bounds drift over long T).
        # On v6e/v7x these 5 transcendentals could be computed in bf16 for ~2x EUP throughput.
        i_g = jax.nn.sigmoid(gates[:, 0 * H:1 * H])
        f_g = jax.nn.sigmoid(gates[:, 1 * H:2 * H])
        g_g = jnp.tanh(gates[:, 2 * H:3 * H])
        o_g = jax.nn.sigmoid(gates[:, 3 * H:4 * H])
        c_new = f_g * c + i_g * g_g
        h_new = (o_g * jnp.tanh(c_new)).astype(jnp.bfloat16)
        if mask_tail:
            # Padded trailing timesteps must not perturb the carried state.
            valid = (t_base + i) < seq_len
            h_new = jnp.where(valid, h_new, h)
            c_new = jnp.where(valid, c_new, c)
        return (h_new, c_new)

    h_fin, c_fin = lax.fori_loop(0, chunk_len, step, (h_ref[...], c_ref[...]),
                                 unroll=unroll)
    h_ref[...] = h_fin
    c_ref[...] = c_fin

    @pl.when(t_chunk == pl.num_programs(1) - 1)
    def _():
        h_out_ref[...] = h_fin.astype(h_out_ref.dtype)


@jax.jit
def lstm_bn1_forward(x_btd, params):
    """x_btd: (B, T, input_size) float32 (batch_first, like the PyTorch module)."""
    B, T, D = x_btd.shape
    H = HIDDEN

    # --- batch tiling: BT rows per block (multiple of 8 sublanes); batch axis is parallel ---
    BT_MAX = 128
    if B <= BT_MAX:
        B_pad = max(8, ((B + 7) // 8) * 8)
        BT = B_pad
    else:
        BT = BT_MAX
        B_pad = ((B + BT - 1) // BT) * BT

    # --- time chunking: balanced chunks (<= 32 steps) capped by a VMEM budget for the
    #     double-buffered x chunk; T is padded to nt*TT and the tail is masked in-kernel ---
    x_dbuf_budget = 8 * 1024 * 1024                 # bytes for the 2x-buffered x chunk
    lane_d = max(D, 128)                            # account for lane padding of minor dim
    tt_cap = max(1, x_dbuf_budget // (2 * BT * lane_d * 2))
    tt_max = max(1, min(32, tt_cap))
    nt = -(-T // tt_max)                            # number of time chunks
    TT = -(-T // nt)                                # balanced chunk length (<= tt_max)
    T_pad = TT * nt
    UNROLL = min(TT, 8)                             # partial unroll: overlap without spills

    # --- pad + lay out inputs: x as (T_pad, B_pad, D) bf16, weights pre-transposed bf16 ---
    if B_pad != B or T_pad != T:
        x_btd = jnp.pad(x_btd, ((0, B_pad - B), (0, T_pad - T), (0, 0)))
    x_tbd = jnp.transpose(x_btd, (1, 0, 2)).astype(jnp.bfloat16)   # (T_pad, B_pad, D)
    wih = params["w_ih"].T.astype(jnp.bfloat16)                    # (D, 4H)
    whh = params["w_hh"].T.astype(jnp.bfloat16)                    # (H, 4H)
    bias = (params["b_ih"] + params["b_hh"]).astype(jnp.float32).reshape(1, 4 * H)

    # --- explicit scoped-VMEM budget (don't rely on per-generation defaults) ---
    vmem_est = (
        2 * TT * BT * lane_d * 2                    # x double buffer (bf16)
        + (max(D, 8) + H) * 4 * H * 2               # resident W_ih^T + W_hh^T (bf16)
        + 8 * 4 * H * 4                             # bias (sublane-padded)
        + 2 * BT * H * 4                            # h_out double buffer
        + BT * H * 6                                # h (bf16) + c (f32) scratch
        + (UNROLL + 2) * BT * 4 * H * 4             # live gate intermediates headroom
    )
    vmem_limit = int(min(64 * 1024 * 1024, max(2 * vmem_est, 32 * 1024 * 1024)))

    kernel = functools.partial(
        lstm_recurrence_kernel,
        seq_len=T, chunk_len=TT, unroll=UNROLL, mask_tail=(T_pad != T))

    h_last = pl.pallas_call(
        kernel,
        out_shape=jax.ShapeDtypeStruct((B_pad, H), jnp.float32),
        grid_spec=pltpu.PrefetchScalarGridSpec(
            num_scalar_prefetch=0,
            grid=(B_pad // BT, T_pad // TT),
            in_specs=[
                pl.BlockSpec((TT, BT, D), lambda b, t: (t, b, 0)),     # x chunk (streams)
                pl.BlockSpec((D, 4 * H), lambda b, t: (0, 0)),         # W_ih^T (resident)
                pl.BlockSpec((H, 4 * H), lambda b, t: (0, 0)),         # W_hh^T (resident)
                pl.BlockSpec((1, 4 * H), lambda b, t: (0, 0)),         # bias   (resident)
            ],
            out_specs=pl.BlockSpec((BT, H), lambda b, t: (b, 0)),      # resident output
            scratch_shapes=[
                pltpu.VMEM((BT, H), jnp.bfloat16),   # h state (bf16 matmul operand)
                pltpu.VMEM((BT, H), jnp.float32),    # c state (f32)
            ],
        ),
        compiler_params=pltpu.CompilerParams(
            dimension_semantics=("parallel", "arbitrary"),   # batch parallel, time serial
            vmem_limit_bytes=vmem_limit),
    )(x_tbd, wih, whh, bias)

    h_last = h_last[:B]                                      # drop padded batch rows

    # --- epilogue in plain XLA: eval-mode BatchNorm + ReLU + Linear(256,128) + Linear(128,out)
    inv_std = lax.rsqrt(params["bn_var"] + 1e-5)
    z = (h_last - params["bn_mean"]) * inv_std * params["bn_gamma"] + params["bn_beta"]
    z = jnp.maximum(z, 0.0)
    z = z @ params["w1"].T + params["b1"]
    z = z @ params["w2"].T + params["b2"]
    return z


def init_params(key, input_size, output_size):
    """Deterministic init matching PyTorch parameter shapes (uniform +/- 1/sqrt(fan))."""
    ks = jax.random.split(key, 12)
    s_lstm = 1.0 / jnp.sqrt(HIDDEN)
    s_fc1 = 1.0 / jnp.sqrt(HIDDEN)
    s_fc2 = 1.0 / jnp.sqrt(FC_MID)
    u = lambda k, shape, s: jax.random.uniform(k, shape, jnp.float32, -s, s)
    return {
        "w_ih": u(ks[0], (4 * HIDDEN, input_size), s_lstm),
        "w_hh": u(ks[1], (4 * HIDDEN, HIDDEN), s_lstm),
        "b_ih": u(ks[2], (4 * HIDDEN,), s_lstm),
        "b_hh": u(ks[3], (4 * HIDDEN,), s_lstm),
        # BatchNorm (eval-mode running stats + affine); randomized so the path is exercised.
        "bn_gamma": 1.0 + 0.1 * jax.random.normal(ks[4], (HIDDEN,), jnp.float32),
        "bn_beta": 0.1 * jax.random.normal(ks[5], (HIDDEN,), jnp.float32),
        "bn_mean": 0.1 * jax.random.normal(ks[6], (HIDDEN,), jnp.float32),
        "bn_var": jax.random.uniform(ks[7], (HIDDEN,), jnp.float32, 0.5, 1.5),
        "w1":   u(ks[8], (FC_MID, HIDDEN), s_fc1),
        "b1":   u(ks[9], (FC_MID,), s_fc1),
        "w2":   u(ks[10], (output_size, FC_MID), s_fc2),
        "b2":   u(ks[11], (output_size,), s_fc2),
    }


def reference_forward(x_btd, params):
    """Pure-JAX f32 reference mirroring torch.nn.LSTM (gate order i,f,g,o) + BN + fc head."""
    B, T, D = x_btd.shape
    H = HIDDEN
    h = jnp.zeros((B, H), jnp.float32)
    c = jnp.zeros((B, H), jnp.float32)
    b = params["b_ih"] + params["b_hh"]
    for t in range(T):
        gates = x_btd[:, t, :] @ params["w_ih"].T + h @ params["w_hh"].T + b
        i_g = jax.nn.sigmoid(gates[:, 0 * H:1 * H])
        f_g = jax.nn.sigmoid(gates[:, 1 * H:2 * H])
        g_g = jnp.tanh(gates[:, 2 * H:3 * H])
        o_g = jax.nn.sigmoid(gates[:, 3 * H:4 * H])
        c = f_g * c + i_g * g_g
        h = o_g * jnp.tanh(c)
    z = (h - params["bn_mean"]) / jnp.sqrt(params["bn_var"] + 1e-5)
    z = z * params["bn_gamma"] + params["bn_beta"]
    z = jnp.maximum(z, 0.0)
    z = z @ params["w1"].T + params["b1"]
    z = z @ params["w2"].T + params["b2"]
    return z


if __name__ == "__main__":
    B, T, INPUT_SIZE, OUTPUT_SIZE = 2, 8, 16, 8

    key = jax.random.PRNGKey(0)
    k_x, k_p = jax.random.split(key)
    x = jax.random.normal(k_x, (B, T, INPUT_SIZE), jnp.float32)
    params = init_params(k_p, INPUT_SIZE, OUTPUT_SIZE)

    out = lstm_bn1_forward(x, params)
    out = jax.block_until_ready(out)

    ref = reference_forward(x, params)
    assert out.shape == (B, OUTPUT_SIZE)
    # relaxed tolerance: x / weights streamed in bf16 (f32 accumulation, f32 gates and c state)
    assert jnp.allclose(out, ref, atol=2e-2, rtol=2e-2), "mismatch vs reference"

    print("KERNEL_OK")
</pallas_src>

<mosaic_0001>
module attributes {stable_mosaic.version = 11 : i64} {
  func.func @lstm_recurrence_kernel(%arg0: i32, %arg1: i32, %arg2: memref<8x8x16xbf16, #tpu.memory_space<vmem>>, %arg3: memref<16x1024xbf16, #tpu.memory_space<vmem>>, %arg4: memref<256x1024xbf16, #tpu.memory_space<vmem>>, %arg5: memref<1x1024xf32, #tpu.memory_space<vmem>>, %arg6: memref<8x256xf32, #tpu.memory_space<vmem>>, %arg7: memref<8x256xbf16, #tpu.memory_space<vmem>>, %arg8: memref<8x256xf32, #tpu.memory_space<vmem>>) attributes {dimension_semantics = [#tpu.dimension_semantics<parallel>, #tpu.dimension_semantics<arbitrary>], iteration_bounds = array<i64: 1, 1>, scalar_prefetch = 0 : i64, scratch_operands = 2 : i64, tpu.core_type = #tpu.core_type<tc>, window_params = [{transform_indices = @transform_0, window_bounds = array<i64: 8, 8, 16>}, {pipeline_mode = #tpu.pipeline_mode<synchronous>, transform_indices = @transform_1, window_bounds = array<i64: 16, 1024>}, {pipeline_mode = #tpu.pipeline_mode<synchronous>, transform_indices = @transform_2, window_bounds = array<i64: 256, 1024>}, {pipeline_mode = #tpu.pipeline_mode<synchronous>, transform_indices = @transform_3, window_bounds = array<i64: 1, 1024>}, {transform_indices = @transform_4, window_bounds = array<i64: 8, 256>}]} {
    %c0_i32 = arith.constant 0 : i32
    %0 = arith.cmpi eq, %arg1, %c0_i32 : i32
    %1 = arith.extui %0 : i1 to i32
    %c0_i32_0 = arith.constant 0 : i32
    %2 = arith.cmpi ne, %1, %c0_i32_0 : i32
    scf.if %2 {
      %cst_72 = arith.constant 0.000000e+00 : bf16
      %285 = vector.broadcast %cst_72 : bf16 to vector<8x256xbf16>
      %c0_73 = arith.constant 0 : index
      %c0_74 = arith.constant 0 : index
      %286 = vector.load %arg7[%c0_73, %c0_74] : memref<8x256xbf16, #tpu.memory_space<vmem>>, vector<8x256xbf16>
      tpu.vector_store %arg7[%c0_73, %c0_74], %285 {strides = array<i32>} : memref<8x256xbf16, #tpu.memory_space<vmem>>, vector<8x256xbf16>,
      %cst_75 = arith.constant 0.000000e+00 : f32
      %287 = vector.broadcast %cst_75 : f32 to vector<8x256xf32>
      %c0_76 = arith.constant 0 : index
      %c0_77 = arith.constant 0 : index
      %288 = vector.load %arg8[%c0_76, %c0_77] : memref<8x256xf32, #tpu.memory_space<vmem>>, vector<8x256xf32>
      tpu.vector_store %arg8[%c0_76, %c0_77], %287 {strides = array<i32>} : memref<8x256xf32, #tpu.memory_space<vmem>>, vector<8x256xf32>,
    } else {
    }
    %c0 = arith.constant 0 : index
    %c0_1 = arith.constant 0 : index
    %3 = vector.load %arg3[%c0, %c0_1] : memref<16x1024xbf16, #tpu.memory_space<vmem>>, vector<16x1024xbf16>
    %c0_2 = arith.constant 0 : index
    %c0_3 = arith.constant 0 : index
    %4 = vector.load %arg4[%c0_2, %c0_3] : memref<256x1024xbf16, #tpu.memory_space<vmem>>, vector<256x1024xbf16>
    %c0_4 = arith.constant 0 : index
    %c0_5 = arith.constant 0 : index
    %5 = vector.load %arg5[%c0_4, %c0_5] : memref<1x1024xf32, #tpu.memory_space<vmem>>, vector<1x1024xf32>
    %c0_6 = arith.constant 0 : index
    %c0_7 = arith.constant 0 : index
    %6 = vector.load %arg7[%c0_6, %c0_7] : memref<8x256xbf16, #tpu.memory_space<vmem>>, vector<8x256xbf16>
    %c0_8 = arith.constant 0 : index
    %c0_9 = arith.constant 0 : index
    %7 = vector.load %arg8[%c0_8, %c0_9] : memref<8x256xf32, #tpu.memory_space<vmem>>, vector<8x256xf32>
    %c0_i32_10 = arith.constant 0 : i32
    %8 = arith.index_cast %c0_i32_10 : i32 to index
    %c0_11 = arith.constant 0 : index
    %c0_12 = arith.constant 0 : index
    %9 = vector.load %arg2[%8, %c0_11, %c0_12] : memref<8x8x16xbf16, #tpu.memory_space<vmem>>, vector<1x8x16xbf16>
    %10 = vector.shape_cast %9 : vector<1x8x16xbf16> to vector<8x16xbf16>
    %cst = arith.constant dense<0.000000e+00> : vector<8x1024xf32>
    %11 = tpu.matmul %10, %3, %cst {dimension_numbers = #tpu.dot_dimension_numbers<[1], [0], [0], [1], [0, 0, 1, 1], [], []>} : vector<8x16xbf16>, vector<16x1024xbf16>, vector<8x1024xf32> -> vector<8x1024xf32>
    %cst_13 = arith.constant dense<0.000000e+00> : vector<8x1024xf32>
    %12 = tpu.matmul %6, %4, %cst_13 {dimension_numbers = #tpu.dot_dimension_numbers<[1], [0], [0], [1], [0, 0, 1, 1], [], []>} : vector<8x256xbf16>, vector<256x1024xbf16>, vector<8x1024xf32> -> vector<8x1024xf32>
    %13 = arith.addf %11, %12 : vector<8x1024xf32>
    %14 = vector.broadcast %5 : vector<1x1024xf32> to vector<8x1024xf32>
    %15 = arith.addf %13, %14 : vector<8x1024xf32>
    %16 = vector.extract_strided_slice %15 {offsets = [0, 0], sizes = [8, 256], strides = [1, 1]} : vector<8x1024xf32> to vector<8x256xf32>
    %17 = arith.negf %16 : vector<8x256xf32>
    %18 = math.exp %17 : vector<8x256xf32>
    %cst_14 = arith.constant 1.000000e+00 : f32
    %19 = vector.broadcast %cst_14 : f32 to vector<8x256xf32>
    %20 = arith.addf %19, %18 : vector<8x256xf32>
    %21 = arith.divf %19, %20 : vector<8x256xf32>
    %22 = vector.extract_strided_slice %15 {offsets = [0, 256], sizes = [8, 256], strides = [1, 1]} : vector<8x1024xf32> to vector<8x256xf32>
    %23 = arith.negf %22 : vector<8x256xf32>
    %24 = math.exp %23 : vector<8x256xf32>
    %cst_15 = arith.constant 1.000000e+00 : f32
    %25 = vector.broadcast %cst_15 : f32 to vector<8x256xf32>
    %26 = arith.addf %25, %24 : vector<8x256xf32>
    %27 = arith.divf %25, %26 : vector<8x256xf32>
    %28 = vector.extract_strided_slice %15 {offsets = [0, 512], sizes = [8, 256], strides = [1, 1]} : vector<8x1024xf32> to vector<8x256xf32>
    %29 = math.tanh %28 : vector<8x256xf32>
    %30 = vector.extract_strided_slice %15 {offsets = [0, 768], sizes = [8, 256], strides = [1, 1]} : vector<8x1024xf32> to vector<8x256xf32>
    %31 = arith.negf %30 : vector<8x256xf32>
    %32 = math.exp %31 : vector<8x256xf32>
    %cst_16 = arith.constant 1.000000e+00 : f32
    %33 = vector.broadcast %cst_16 : f32 to vector<8x256xf32>
    %34 = arith.addf %33, %32 : vector<8x256xf32>
    %35 = arith.divf %33, %34 : vector<8x256xf32>
    %36 = arith.mulf %27, %7 : vector<8x256xf32>
    %37 = arith.mulf %21, %29 : vector<8x256xf32>
    %38 = arith.addf %36, %37 : vector<8x256xf32>
    %39 = math.tanh %38 : vector<8x256xf32>
    %40 = arith.mulf %35, %39 : vector<8x256xf32>
    %41 = arith.truncf %40 : vector<8x256xf32> to vector<8x256xbf16>
    %c1_i32 = arith.constant 1 : i32
    %42 = arith.index_cast %c1_i32 : i32 to index
    %c0_17 = arith.constant 0 : index
    %c0_18 = arith.constant 0 : index
    %43 = vector.load %arg2[%42, %c0_17, %c0_18] : memref<8x8x16xbf16, #tpu.memory_space<vmem>>, vector<1x8x16xbf16>
    %44 = vector.shape_cast %43 : vector<1x8x16xbf16> to vector<8x16xbf16>
    %cst_19 = arith.constant dense<0.000000e+00> : vector<8x1024xf32>
    %45 = tpu.matmul %44, %3, %cst_19 {dimension_numbers = #tpu.dot_dimension_numbers<[1], [0], [0], [1], [0, 0, 1, 1], [], []>} : vector<8x16xbf16>, vector<16x1024xbf16>, vector<8x1024xf32> -> vector<8x1024xf32>
    %cst_20 = arith.constant dense<0.000000e+00> : vector<8x1024xf32>
    %46 = tpu.matmul %41, %4, %cst_20 {dimension_numbers = #tpu.dot_dimension_numbers<[1], [0], [0], [1], [0, 0, 1, 1], [], []>} : vector<8x256xbf16>, vector<256x1024xbf16>, vector<8x1024xf32> -> vector<8x1024xf32>
    %47 = arith.addf %45, %46 : vector<8x1024xf32>
    %48 = vector.broadcast %5 : vector<1x1024xf32> to vector<8x1024xf32>
    %49 = arith.addf %47, %48 : vector<8x1024xf32>
    %50 = vector.extract_strided_slice %49 {offsets = [0, 0], sizes = [8, 256], strides = [1, 1]} : vector<8x1024xf32> to vector<8x256xf32>
    %51 = arith.negf %50 : vector<8x256xf32>
    %52 = math.exp %51 : vector<8x256xf32>
    %cst_21 = arith.constant 1.000000e+00 : f32
    %53 = vector.broadcast %cst_21 : f32 to vector<8x256xf32>
    %54 = arith.addf %53, %52 : vector<8x256xf32>
    %55 = arith.divf %53, %54 : vector<8x256xf32>
    %56 = vector.extract_strided_slice %49 {offsets = [0, 256], sizes = [8, 256], strides = [1, 1]} : vector<8x1024xf32> to vector<8x256xf32>
    %57 = arith.negf %56 : vector<8x256xf32>
    %58 = math.exp %57 : vector<8x256xf32>
    %cst_22 = arith.constant 1.000000e+00 : f32
    %59 = vector.broadcast %cst_22 : f32 to vector<8x256xf32>
    %60 = arith.addf %59, %58 : vector<8x256xf32>
    %61 = arith.divf %59, %60 : vector<8x256xf32>
    %62 = vector.extract_strided_slice %49 {offsets = [0, 512], sizes = [8, 256], strides = [1, 1]} : vector<8x1024xf32> to vector<8x256xf32>
    %63 = math.tanh %62 : vector<8x256xf32>
    %64 = vector.extract_strided_slice %49 {offsets = [0, 768], sizes = [8, 256], strides = [1, 1]} : vector<8x1024xf32> to vector<8x256xf32>
    %65 = arith.negf %64 : vector<8x256xf32>
    %66 = math.exp %65 : vector<8x256xf32>
    %cst_23 = arith.constant 1.000000e+00 : f32
    %67 = vector.broadcast %cst_23 : f32 to vector<8x256xf32>
    %68 = arith.addf %67, %66 : vector<8x256xf32>
    %69 = arith.divf %67, %68 : vector<8x256xf32>
    %70 = arith.mulf %61, %38 : vector<8x256xf32>
    %71 = arith.mulf %55, %63 : vector<8x256xf32>
    %72 = arith.addf %70, %71 : vector<8x256xf32>
    %73 = math.tanh %72 : vector<8x256xf32>
    %74 = arith.mulf %69, %73 : vector<8x256xf32>
    %75 = arith.truncf %74 : vector<8x256xf32> to vector<8x256xbf16>
    %c2_i32 = arith.constant 2 : i32
    %76 = arith.index_cast %c2_i32 : i32 to index
    %c0_24 = arith.constant 0 : index
    %c0_25 = arith.constant 0 : index
    %77 = vector.load %arg2[%76, %c0_24, %c0_25] : memref<8x8x16xbf16, #tpu.memory_space<vmem>>, vector<1x8x16xbf16>
    %78 = vector.shape_cast %77 : vector<1x8x16xbf16> to vector<8x16xbf16>
    %cst_26 = arith.constant dense<0.000000e+00> : vector<8x1024xf32>
    %79 = tpu.matmul %78, %3, %cst_26 {dimension_numbers = #tpu.dot_dimension_numbers<[1], [0], [0], [1], [0, 0, 1, 1], [], []>} : vector<8x16xbf16>, vector<16x1024xbf16>, vector<8x1024xf32> -> vector<8x1024xf32>
    %cst_27 = arith.constant dense<0.000000e+00> : vector<8x1024xf32>
    %80 = tpu.matmul %75, %4, %cst_27 {dimension_numbers = #tpu.dot_dimension_numbers<[1], [0], [0], [1], [0, 0, 1, 1], [], []>} : vector<8x256xbf16>, vector<256x1024xbf16>, vector<8x1024xf32> -> vector<8x1024xf32>
    %81 = arith.addf %79, %80 : vector<8x1024xf32>
    %82 = vector.broadcast %5 : vector<1x1024xf32> to vector<8x1024xf32>
    %83 = arith.addf %81, %82 : vector<8x1024xf32>
    %84 = vector.extract_strided_slice %83 {offsets = [0, 0], sizes = [8, 256], strides = [1, 1]} : vector<8x1024xf32> to vector<8x256xf32>
    %85 = arith.negf %84 : vector<8x256xf32>
    %86 = math.exp %85 : vector<8x256xf32>
    %cst_28 = arith.constant 1.000000e+00 : f32
    %87 = vector.broadcast %cst_28 : f32 to vector<8x256xf32>
    %88 = arith.addf %87, %86 : vector<8x256xf32>
    %89 = arith.divf %87, %88 : vector<8x256xf32>
    %90 = vector.extract_strided_slice %83 {offsets = [0, 256], sizes = [8, 256], strides = [1, 1]} : vector<8x1024xf32> to vector<8x256xf32>
    %91 = arith.negf %90 : vector<8x256xf32>
    %92 = math.exp %91 : vector<8x256xf32>
    %cst_29 = arith.constant 1.000000e+00 : f32
    %93 = vector.broadcast %cst_29 : f32 to vector<8x256xf32>
    %94 = arith.addf %93, %92 : vector<8x256xf32>
    %95 = arith.divf %93, %94 : vector<8x256xf32>
    %96 = vector.extract_strided_slice %83 {offsets = [0, 512], sizes = [8, 256], strides = [1, 1]} : vector<8x1024xf32> to vector<8x256xf32>
    %97 = math.tanh %96 : vector<8x256xf32>
    %98 = vector.extract_strided_slice %83 {offsets = [0, 768], sizes = [8, 256], strides = [1, 1]} : vector<8x1024xf32> to vector<8x256xf32>
    %99 = arith.negf %98 : vector<8x256xf32>
    %100 = math.exp %99 : vector<8x256xf32>
    %cst_30 = arith.constant 1.000000e+00 : f32
    %101 = vector.broadcast %cst_30 : f32 to vector<8x256xf32>
    %102 = arith.addf %101, %100 : vector<8x256xf32>
    %103 = arith.divf %101, %102 : vector<8x256xf32>
    %104 = arith.mulf %95, %72 : vector<8x256xf32>
    %105 = arith.mulf %89, %97 : vector<8x256xf32>
    %106 = arith.addf %104, %105 : vector<8x256xf32>
    %107 = math.tanh %106 : vector<8x256xf32>
    %108 = arith.mulf %103, %107 : vector<8x256xf32>
    %109 = arith.truncf %108 : vector<8x256xf32> to vector<8x256xbf16>
    %c3_i32 = arith.constant 3 : i32
    %110 = arith.index_cast %c3_i32 : i32 to index
    %c0_31 = arith.constant 0 : index
    %c0_32 = arith.constant 0 : index
    %111 = vector.load %arg2[%110, %c0_31, %c0_32] : memref<8x8x16xbf16, #tpu.memory_space<vmem>>, vector<1x8x16xbf16>
    %112 = vector.shape_cast %111 : vector<1x8x16xbf16> to vector<8x16xbf16>
    %cst_33 = arith.constant dense<0.000000e+00> : vector<8x1024xf32>
    %113 = tpu.matmul %112, %3, %cst_33 {dimension_numbers = #tpu.dot_dimension_numbers<[1], [0], [0], [1], [0, 0, 1, 1], [], []>} : vector<8x16xbf16>, vector<16x1024xbf16>, vector<8x1024xf32> -> vector<8x1024xf32>
    %cst_34 = arith.constant dense<0.000000e+00> : vector<8x1024xf32>
    %114 = tpu.matmul %109, %4, %cst_34 {dimension_numbers = #tpu.dot_dimension_numbers<[1], [0], [0], [1], [0, 0, 1, 1], [], []>} : vector<8x256xbf16>, vector<256x1024xbf16>, vector<8x1024xf32> -> vector<8x1024xf32>
    %115 = arith.addf %113, %114 : vector<8x1024xf32>
    %116 = vector.broadcast %5 : vector<1x1024xf32> to vector<8x1024xf32>
    %117 = arith.addf %115, %116 : vector<8x1024xf32>
    %118 = vector.extract_strided_slice %117 {offsets = [0, 0], sizes = [8, 256], strides = [1, 1]} : vector<8x1024xf32> to vector<8x256xf32>
    %119 = arith.negf %118 : vector<8x256xf32>
    %120 = math.exp %119 : vector<8x256xf32>
    %cst_35 = arith.constant 1.000000e+00 : f32
    %121 = vector.broadcast %cst_35 : f32 to vector<8x256xf32>
    %122 = arith.addf %121, %120 : vector<8x256xf32>
    %123 = arith.divf %121, %122 : vector<8x256xf32>
    %124 = vector.extract_strided_slice %117 {offsets = [0, 256], sizes = [8, 256], strides = [1, 1]} : vector<8x1024xf32> to vector<8x256xf32>
    %125 = arith.negf %124 : vector<8x256xf32>
    %126 = math.exp %125 : vector<8x256xf32>
    %cst_36 = arith.constant 1.000000e+00 : f32
    %127 = vector.broadcast %cst_36 : f32 to vector<8x256xf32>
    %128 = arith.addf %127, %126 : vector<8x256xf32>
    %129 = arith.divf %127, %128 : vector<8x256xf32>
    %130 = vector.extract_strided_slice %117 {offsets = [0, 512], sizes = [8, 256], strides = [1, 1]} : vector<8x1024xf32> to vector<8x256xf32>
    %131 = math.tanh %130 : vector<8x256xf32>
    %132 = vector.extract_strided_slice %117 {offsets = [0, 768], sizes = [8, 256], strides = [1, 1]} : vector<8x1024xf32> to vector<8x256xf32>
    %133 = arith.negf %132 : vector<8x256xf32>
    %134 = math.exp %133 : vector<8x256xf32>
    %cst_37 = arith.constant 1.000000e+00 : f32
    %135 = vector.broadcast %cst_37 : f32 to vector<8x256xf32>
    %136 = arith.addf %135, %134 : vector<8x256xf32>
    %137 = arith.divf %135, %136 : vector<8x256xf32>
    %138 = arith.mulf %129, %106 : vector<8x256xf32>
    %139 = arith.mulf %123, %131 : vector<8x256xf32>
    %140 = arith.addf %138, %139 : vector<8x256xf32>
    %141 = math.tanh %140 : vector<8x256xf32>
    %142 = arith.mulf %137, %141 : vector<8x256xf32>
    %143 = arith.truncf %142 : vector<8x256xf32> to vector<8x256xbf16>
    %c4_i32 = arith.constant 4 : i32
    %144 = arith.index_cast %c4_i32 : i32 to index
    %c0_38 = arith.constant 0 : index
    %c0_39 = arith.constant 0 : index
    %145 = vector.load %arg2[%144, %c0_38, %c0_39] : memref<8x8x16xbf16, #tpu.memory_space<vmem>>, vector<1x8x16xbf16>
    %146 = vector.shape_cast %145 : vector<1x8x16xbf16> to vector<8x16xbf16>
    %cst_40 = arith.constant dense<0.000000e+00> : vector<8x1024xf32>
    %147 = tpu.matmul %146, %3, %cst_40 {dimension_numbers = #tpu.dot_dimension_numbers<[1], [0], [0], [1], [0, 0, 1, 1], [], []>} : vector<8x16xbf16>, vector<16x1024xbf16>, vector<8x1024xf32> -> vector<8x1024xf32>
    %cst_41 = arith.constant dense<0.000000e+00> : vector<8x1024xf32>
    %148 = tpu.matmul %143, %4, %cst_41 {dimension_numbers = #tpu.dot_dimension_numbers<[1], [0], [0], [1], [0, 0, 1, 1], [], []>} : vector<8x256xbf16>, vector<256x1024xbf16>, vector<8x1024xf32> -> vector<8x1024xf32>
    %149 = arith.addf %147, %148 : vector<8x1024xf32>
    %150 = vector.broadcast %5 : vector<1x1024xf32> to vector<8x1024xf32>
    %151 = arith.addf %149, %150 : vector<8x1024xf32>
    %152 = vector.extract_strided_slice %151 {offsets = [0, 0], sizes = [8, 256], strides = [1, 1]} : vector<8x1024xf32> to vector<8x256xf32>
    %153 = arith.negf %152 : vector<8x256xf32>
    %154 = math.exp %153 : vector<8x256xf32>
    %cst_42 = arith.constant 1.000000e+00 : f32
    %155 = vector.broadcast %cst_42 : f32 to vector<8x256xf32>
    %156 = arith.addf %155, %154 : vector<8x256xf32>
    %157 = arith.divf %155, %156 : vector<8x256xf32>
    %158 = vector.extract_strided_slice %151 {offsets = [0, 256], sizes = [8, 256], strides = [1, 1]} : vector<8x1024xf32> to vector<8x256xf32>
    %159 = arith.negf %158 : vector<8x256xf32>
    %160 = math.exp %159 : vector<8x256xf32>
    %cst_43 = arith.constant 1.000000e+00 : f32
    %161 = vector.broadcast %cst_43 : f32 to vector<8x256xf32>
    %162 = arith.addf %161, %160 : vector<8x256xf32>
    %163 = arith.divf %161, %162 : vector<8x256xf32>
    %164 = vector.extract_strided_slice %151 {offsets = [0, 512], sizes = [8, 256], strides = [1, 1]} : vector<8x1024xf32> to vector<8x256xf32>
    %165 = math.tanh %164 : vector<8x256xf32>
    %166 = vector.extract_strided_slice %151 {offsets = [0, 768], sizes = [8, 256], strides = [1, 1]} : vector<8x1024xf32> to vector<8x256xf32>
    %167 = arith.negf %166 : vector<8x256xf32>
    %168 = math.exp %167 : vector<8x256xf32>
    %cst_44 = arith.constant 1.000000e+00 : f32
    %169 = vector.broadcast %cst_44 : f32 to vector<8x256xf32>
    %170 = arith.addf %169, %168 : vector<8x256xf32>
    %171 = arith.divf %169, %170 : vector<8x256xf32>
    %172 = arith.mulf %163, %140 : vector<8x256xf32>
    %173 = arith.mulf %157, %165 : vector<8x256xf32>
    %174 = arith.addf %172, %173 : vector<8x256xf32>
    %175 = math.tanh %174 : vector<8x256xf32>
    %176 = arith.mulf %171, %175 : vector<8x256xf32>
    %177 = arith.truncf %176 : vector<8x256xf32> to vector<8x256xbf16>
    %c5_i32 = arith.constant 5 : i32
    %178 = arith.index_cast %c5_i32 : i32 to index
    %c0_45 = arith.constant 0 : index
    %c0_46 = arith.constant 0 : index
    %179 = vector.load %arg2[%178, %c0_45, %c0_46] : memref<8x8x16xbf16, #tpu.memory_space<vmem>>, vector<1x8x16xbf16>
    %180 = vector.shape_cast %179 : vector<1x8x16xbf16> to vector<8x16xbf16>
    %cst_47 = arith.constant dense<0.000000e+00> : vector<8x1024xf32>
    %181 = tpu.matmul %180, %3, %cst_47 {dimension_numbers = #tpu.dot_dimension_numbers<[1], [0], [0], [1], [0, 0, 1, 1], [], []>} : vector<8x16xbf16>, vector<16x1024xbf16>, vector<8x1024xf32> -> vector<8x1024xf32>
    %cst_48 = arith.constant dense<0.000000e+00> : vector<8x1024xf32>
    %182 = tpu.matmul %177, %4, %cst_48 {dimension_numbers = #tpu.dot_dimension_numbers<[1], [0], [0], [1], [0, 0, 1, 1], [], []>} : vector<8x256xbf16>, vector<256x1024xbf16>, vector<8x1024xf32> -> vector<8x1024xf32>
    %183 = arith.addf %181, %182 : vector<8x1024xf32>
    %184 = vector.broadcast %5 : vector<1x1024xf32> to vector<8x1024xf32>
    %185 = arith.addf %183, %184 : vector<8x1024xf32>
    %186 = vector.extract_strided_slice %185 {offsets = [0, 0], sizes = [8, 256], strides = [1, 1]} : vector<8x1024xf32> to vector<8x256xf32>
    %187 = arith.negf %186 : vector<8x256xf32>
    %188 = math.exp %187 : vector<8x256xf32>
    %cst_49 = arith.constant 1.000000e+00 : f32
    %189 = vector.broadcast %cst_49 : f32 to vector<8x256xf32>
    %190 = arith.addf %189, %188 : vector<8x256xf32>
    %191 = arith.divf %189, %190 : vector<8x256xf32>
    %192 = vector.extract_strided_slice %185 {offsets = [0, 256], sizes = [8, 256], strides = [1, 1]} : vector<8x1024xf32> to vector<8x256xf32>
    %193 = arith.negf %192 : vector<8x256xf32>
    %194 = math.exp %193 : vector<8x256xf32>
    %cst_50 = arith.constant 1.000000e+00 : f32
    %195 = vector.broadcast %cst_50 : f32 to vector<8x256xf32>
    %196 = arith.addf %195, %194 : vector<8x256xf32>
    %197 = arith.divf %195, %196 : vector<8x256xf32>
    %198 = vector.extract_strided_slice %185 {offsets = [0, 512], sizes = [8, 256], strides = [1, 1]} : vector<8x1024xf32> to vector<8x256xf32>
    %199 = math.tanh %198 : vector<8x256xf32>
    %200 = vector.extract_strided_slice %185 {offsets = [0, 768], sizes = [8, 256], strides = [1, 1]} : vector<8x1024xf32> to vector<8x256xf32>
    %201 = arith.negf %200 : vector<8x256xf32>
    %202 = math.exp %201 : vector<8x256xf32>
    %cst_51 = arith.constant 1.000000e+00 : f32
    %203 = vector.broadcast %cst_51 : f32 to vector<8x256xf32>
    %204 = arith.addf %203, %202 : vector<8x256xf32>
    %205 = arith.divf %203, %204 : vector<8x256xf32>
    %206 = arith.mulf %197, %174 : vector<8x256xf32>
    %207 = arith.mulf %191, %199 : vector<8x256xf32>
    %208 = arith.addf %206, %207 : vector<8x256xf32>
    %209 = math.tanh %208 : vector<8x256xf32>
    %210 = arith.mulf %205, %209 : vector<8x256xf32>
    %211 = arith.truncf %210 : vector<8x256xf32> to vector<8x256xbf16>
    %c6_i32 = arith.constant 6 : i32
    %212 = arith.index_cast %c6_i32 : i32 to index
    %c0_52 = arith.constant 0 : index
    %c0_53 = arith.constant 0 : index
    %213 = vector.load %arg2[%212, %c0_52, %c0_53] : memref<8x8x16xbf16, #tpu.memory_space<vmem>>, vector<1x8x16xbf16>
    %214 = vector.shape_cast %213 : vector<1x8x16xbf16> to vector<8x16xbf16>
    %cst_54 = arith.constant dense<0.000000e+00> : vector<8x1024xf32>
    %215 = tpu.matmul %214, %3, %cst_54 {dimension_numbers = #tpu.dot_dimension_numbers<[1], [0], [0], [1], [0, 0, 1, 1], [], []>} : vector<8x16xbf16>, vector<16x1024xbf16>, vector<8x1024xf32> -> vector<8x1024xf32>
    %cst_55 = arith.constant dense<0.000000e+00> : vector<8x1024xf32>
    %216 = tpu.matmul %211, %4, %cst_55 {dimension_numbers = #tpu.dot_dimension_numbers<[1], [0], [0], [1], [0, 0, 1, 1], [], []>} : vector<8x256xbf16>, vector<256x1024xbf16>, vector<8x1024xf32> -> vector<8x1024xf32>
    %217 = arith.addf %215, %216 : vector<8x1024xf32>
    %218 = vector.broadcast %5 : vector<1x1024xf32> to vector<8x1024xf32>
    %219 = arith.addf %217, %218 : vector<8x1024xf32>
    %220 = vector.extract_strided_slice %219 {offsets = [0, 0], sizes = [8, 256], strides = [1, 1]} : vector<8x1024xf32> to vector<8x256xf32>
    %221 = arith.negf %220 : vector<8x256xf32>
    %222 = math.exp %221 : vector<8x256xf32>
    %cst_56 = arith.constant 1.000000e+00 : f32
    %223 = vector.broadcast %cst_56 : f32 to vector<8x256xf32>
    %224 = arith.addf %223, %222 : vector<8x256xf32>
    %225 = arith.divf %223, %224 : vector<8x256xf32>
    %226 = vector.extract_strided_slice %219 {offsets = [0, 256], sizes = [8, 256], strides = [1, 1]} : vector<8x1024xf32> to vector<8x256xf32>
    %227 = arith.negf %226 : vector<8x256xf32>
    %228 = math.exp %227 : vector<8x256xf32>
    %cst_57 = arith.constant 1.000000e+00 : f32
    %229 = vector.broadcast %cst_57 : f32 to vector<8x256xf32>
    %230 = arith.addf %229, %228 : vector<8x256xf32>
    %231 = arith.divf %229, %230 : vector<8x256xf32>
    %232 = vector.extract_strided_slice %219 {offsets = [0, 512], sizes = [8, 256], strides = [1, 1]} : vector<8x1024xf32> to vector<8x256xf32>
    %233 = math.tanh %232 : vector<8x256xf32>
    %234 = vector.extract_strided_slice %219 {offsets = [0, 768], sizes = [8, 256], strides = [1, 1]} : vector<8x1024xf32> to vector<8x256xf32>
    %235 = arith.negf %234 : vector<8x256xf32>
    %236 = math.exp %235 : vector<8x256xf32>
    %cst_58 = arith.constant 1.000000e+00 : f32
    %237 = vector.broadcast %cst_58 : f32 to vector<8x256xf32>
    %238 = arith.addf %237, %236 : vector<8x256xf32>
    %239 = arith.divf %237, %238 : vector<8x256xf32>
    %240 = arith.mulf %231, %208 : vector<8x256xf32>
    %241 = arith.mulf %225, %233 : vector<8x256xf32>
    %242 = arith.addf %240, %241 : vector<8x256xf32>
    %243 = math.tanh %242 : vector<8x256xf32>
    %244 = arith.mulf %239, %243 : vector<8x256xf32>
    %245 = arith.truncf %244 : vector<8x256xf32> to vector<8x256xbf16>
    %c7_i32 = arith.constant 7 : i32
    %246 = arith.index_cast %c7_i32 : i32 to index
    %c0_59 = arith.constant 0 : index
    %c0_60 = arith.constant 0 : index
    %247 = vector.load %arg2[%246, %c0_59, %c0_60] : memref<8x8x16xbf16, #tpu.memory_space<vmem>>, vector<1x8x16xbf16>
    %248 = vector.shape_cast %247 : vector<1x8x16xbf16> to vector<8x16xbf16>
    %cst_61 = arith.constant dense<0.000000e+00> : vector<8x1024xf32>
    %249 = tpu.matmul %248, %3, %cst_61 {dimension_numbers = #tpu.dot_dimension_numbers<[1], [0], [0], [1], [0, 0, 1, 1], [], []>} : vector<8x16xbf16>, vector<16x1024xbf16>, vector<8x1024xf32> -> vector<8x1024xf32>
    %cst_62 = arith.constant dense<0.000000e+00> : vector<8x1024xf32>
    %250 = tpu.matmul %245, %4, %cst_62 {dimension_numbers = #tpu.dot_dimension_numbers<[1], [0], [0], [1], [0, 0, 1, 1], [], []>} : vector<8x256xbf16>, vector<256x1024xbf16>, vector<8x1024xf32> -> vector<8x1024xf32>
    %251 = arith.addf %249, %250 : vector<8x1024xf32>
    %252 = vector.broadcast %5 : vector<1x1024xf32> to vector<8x1024xf32>
    %253 = arith.addf %251, %252 : vector<8x1024xf32>
    %254 = vector.extract_strided_slice %253 {offsets = [0, 0], sizes = [8, 256], strides = [1, 1]} : vector<8x1024xf32> to vector<8x256xf32>
    %255 = arith.negf %254 : vector<8x256xf32>
    %256 = math.exp %255 : vector<8x256xf32>
    %cst_63 = arith.constant 1.000000e+00 : f32
    %257 = vector.broadcast %cst_63 : f32 to vector<8x256xf32>
    %258 = arith.addf %257, %256 : vector<8x256xf32>
    %259 = arith.divf %257, %258 : vector<8x256xf32>
    %260 = vector.extract_strided_slice %253 {offsets = [0, 256], sizes = [8, 256], strides = [1, 1]} : vector<8x1024xf32> to vector<8x256xf32>
    %261 = arith.negf %260 : vector<8x256xf32>
    %262 = math.exp %261 : vector<8x256xf32>
    %cst_64 = arith.constant 1.000000e+00 : f32
    %263 = vector.broadcast %cst_64 : f32 to vector<8x256xf32>
    %264 = arith.addf %263, %262 : vector<8x256xf32>
    %265 = arith.divf %263, %264 : vector<8x256xf32>
    %266 = vector.extract_strided_slice %253 {offsets = [0, 512], sizes = [8, 256], strides = [1, 1]} : vector<8x1024xf32> to vector<8x256xf32>
    %267 = math.tanh %266 : vector<8x256xf32>
    %268 = vector.extract_strided_slice %253 {offsets = [0, 768], sizes = [8, 256], strides = [1, 1]} : vector<8x1024xf32> to vector<8x256xf32>
    %269 = arith.negf %268 : vector<8x256xf32>
    %270 = math.exp %269 : vector<8x256xf32>
    %cst_65 = arith.constant 1.000000e+00 : f32
    %271 = vector.broadcast %cst_65 : f32 to vector<8x256xf32>
    %272 = arith.addf %271, %270 : vector<8x256xf32>
    %273 = arith.divf %271, %272 : vector<8x256xf32>
    %274 = arith.mulf %265, %242 : vector<8x256xf32>
    %275 = arith.mulf %259, %267 : vector<8x256xf32>
    %276 = arith.addf %274, %275 : vector<8x256xf32>
    %277 = math.tanh %276 : vector<8x256xf32>
    %278 = arith.mulf %273, %277 : vector<8x256xf32>
    %279 = arith.truncf %278 : vector<8x256xf32> to vector<8x256xbf16>
    %c8_i32 = arith.constant 8 : i32
    %c0_66 = arith.constant 0 : index
    %c0_67 = arith.constant 0 : index
    %280 = vector.load %arg7[%c0_66, %c0_67] : memref<8x256xbf16, #tpu.memory_space<vmem>>, vector<8x256xbf16>
    tpu.vector_store %arg7[%c0_66, %c0_67], %279 {strides = array<i32>} : memref<8x256xbf16, #tpu.memory_space<vmem>>, vector<8x256xbf16>,
    %c0_68 = arith.constant 0 : index
    %c0_69 = arith.constant 0 : index
    %281 = vector.load %arg8[%c0_68, %c0_69] : memref<8x256xf32, #tpu.memory_space<vmem>>, vector<8x256xf32>
    tpu.vector_store %arg8[%c0_68, %c0_69], %276 {strides = array<i32>} : memref<8x256xf32, #tpu.memory_space<vmem>>, vector<8x256xf32>,
    %c0_i32_70 = arith.constant 0 : i32
    %282 = arith.cmpi eq, %arg1, %c0_i32_70 : i32
    %283 = arith.extui %282 : i1 to i32
    %c0_i32_71 = arith.constant 0 : i32
    %284 = arith.cmpi ne, %283, %c0_i32_71 : i32
    scf.if %284 {
      %285 = arith.extf %279 : vector<8x256xbf16> to vector<8x256xf32>
      %c0_72 = arith.constant 0 : index
      %c0_73 = arith.constant 0 : index
      %286 = vector.load %arg6[%c0_72, %c0_73] : memref<8x256xf32, #tpu.memory_space<vmem>>, vector<8x256xf32>
      tpu.vector_store %arg6[%c0_72, %c0_73], %285 {strides = array<i32>} : memref<8x256xf32, #tpu.memory_space<vmem>>, vector<8x256xf32>,
    } else {
    }
    return
  }
  func.func @transform_0(%arg0: i32, %arg1: i32) -> (i32, i32, i32) {
    %c0_i32 = arith.constant 0 : i32
    %c0_i32_0 = arith.constant 0 : i32
    return %arg1, %arg0, %c0_i32 : i32, i32, i32
  }
  func.func @transform_1(%arg0: i32, %arg1: i32) -> (i32, i32) {
    %c0_i32 = arith.constant 0 : i32
    %c0_i32_0 = arith.constant 0 : i32
    %c0_i32_1 = arith.constant 0 : i32
    return %c0_i32, %c0_i32_0 : i32, i32
  }
  func.func @transform_2(%arg0: i32, %arg1: i32) -> (i32, i32) {
    %c0_i32 = arith.constant 0 : i32
    %c0_i32_0 = arith.constant 0 : i32
    %c0_i32_1 = arith.constant 0 : i32
    return %c0_i32, %c0_i32_0 : i32, i32
  }
  func.func @transform_3(%arg0: i32, %arg1: i32) -> (i32, i32) {
    %c0_i32 = arith.constant 0 : i32
    %c0_i32_0 = arith.constant 0 : i32
    %c0_i32_1 = arith.constant 0 : i32
    return %c0_i32, %c0_i32_0 : i32, i32
  }
  func.func @transform_4(%arg0: i32, %arg1: i32) -> (i32, i32) {
    %c0_i32 = arith.constant 0 : i32
    %c0_i32_0 = arith.constant 0 : i32
    return %arg0, %c0_i32 : i32, i32
  }
}

</mosaic_0001>

<llo_original>
// kernel: lstm_bn1_forward.1
$region0: #{lstm_bn1_forward.1}
  #allocation0 [shape = 'u32[]', space=smem, size = 0x4, offset = 0x4, fixed_abs, tag = 'smem constant byte address 0x4 - core index']
  #allocation1 [shape = 'u32[144,128]{1,0:T(1,128)}', space=vmem, size = 0x12000, scoped, tag = 'internal scratch']
  #allocation2 [shape = 'bf16[8,256]{1,0:T(8,128)(2,1)}', space=vmem, size = 0x1000, scoped, tag = 'scratch operand']
  #allocation3 [shape = 'f32[8,256]{1,0:T(8,128)}', space=vmem, size = 0x2000, scoped, tag = 'scratch operand']
  %s0 = inlined_call_operand.vmem [shape: bf16[8,8,16], index: 0, kind: input, shape index: {}]
  %s1 = inlined_call_operand.vmem [shape: bf16[16,1024], index: 1, kind: input, shape index: {}]
  %s2 = inlined_call_operand.vmem [shape: bf16[256,1024], index: 2, kind: input, shape index: {}]
  %s3 = inlined_call_operand.vmem [shape: f32[1,1024], index: 3, kind: input, shape index: {}]
  %s4 = inlined_call_operand.vmem [shape: f32[8,256], index: 4, kind: output, shape index: {}]
  %s5 = sld [smem:[#allocation0]]
  $region34: #{lstm_bn1_forward.1} parent=0
    _
  %s7 = ssub.s32 1, %s5
  %s8 = scalar_select 0, %s7, %s5
  // Predicated region
  $region2: #{lstm_bn1_forward.1} parent=0 // pred_check
    _
  $region3: #{lstm_bn1_forward.1} parent=0 // pred_check_branch
    %10 = sbr.rel (0) target = $region5
  $region4: #{lstm_bn1_forward.1} parent=0 // pred_region
    _
  $region5: #{lstm_bn1_forward.1} parent=0 // pred_fallthru
    _
  // Predicated region
  $region6: #{lstm_bn1_forward.1} parent=0 // pred_check
    _
  $region7: #{lstm_bn1_forward.1} parent=0 // pred_check_branch
    %12 = sbr.rel (0) target = $region9
  $region8: #{lstm_bn1_forward.1} parent=0 // pred_region
    _
  $region9: #{lstm_bn1_forward.1} parent=0 // pred_fallthru
    _
  // Predicated region
  $region10: #{lstm_bn1_forward.1} parent=0 // pred_check
    _
  $region11: #{lstm_bn1_forward.1} parent=0 // pred_check_branch
    %14 = sbr.rel (0) target = $region13
  $region12: #{lstm_bn1_forward.1} parent=0 // pred_region
    _
  $region13: #{lstm_bn1_forward.1} parent=0 // pred_fallthru
    _
  // Predicated region
  $region14: #{lstm_bn1_forward.1} parent=0 // pred_check
    _
  $region15: #{lstm_bn1_forward.1} parent=0 // pred_check_branch
    %16 = sbr.rel (0) target = $region17
  $region16: #{lstm_bn1_forward.1} parent=0 // pred_region
    _
  $region17: #{lstm_bn1_forward.1} parent=0 // pred_fallthru
    _
  %p18 = scmp.eq.s32.totalorder 0, 0
  // Predicated region
  $region18: #{lstm_bn1_forward.1} parent=0 // pred_check
    %p19 = pneg %p18
  $region19: #{lstm_bn1_forward.1} parent=0 // pred_check_branch
    %21 = sbr.rel (%p19) target = $region21
  $region20: #{lstm_bn1_forward.1} parent=0 // pred_region
    %22 = vst [vmem:[#allocation2] sm:$0xff] 0
    %23 = vst [vmem:[#allocation3] sm:$0xff] 0.0
    %24 = vst [vmem:[#allocation3 + $0x8] sm:$0xff] 0.0
  $region21: #{lstm_bn1_forward.1} parent=0 // pred_fallthru
    _
  %v25 = vld [vmem:[%s1] sm:$0xff]
  %v26 = vld [vmem:[%s1 + $0x8] sm:$0xff]
  %v27 = vld [vmem:[%s1 + $0x10] sm:$0xff]
  %v28 = vld [vmem:[%s1 + $0x18] sm:$0xff]
  %v29 = vld [vmem:[%s1 + $0x20] sm:$0xff]
  %v30 = vld [vmem:[%s1 + $0x28] sm:$0xff]
  %v31 = vld [vmem:[%s1 + $0x30] sm:$0xff]
  %v32 = vld [vmem:[%s1 + $0x38] sm:$0xff]
  %v33 = vld [vmem:[%s2] sm:$0xff]
  %v34 = vld [vmem:[%s2 + $0x8] sm:$0xff]
  %v35 = vld [vmem:[%s2 + $0x10] sm:$0xff]
  %v36 = vld [vmem:[%s2 + $0x18] sm:$0xff]
  %v37 = vld [vmem:[%s2 + $0x20] sm:$0xff]
  %v38 = vld [vmem:[%s2 + $0x28] sm:$0xff]
  %v39 = vld [vmem:[%s2 + $0x30] sm:$0xff]
  %v40 = vld [vmem:[%s2 + $0x38] sm:$0xff]
  %v41 = vld [vmem:[%s2 + $0x40] sm:$0xff]
  %v42 = vld [vmem:[%s2 + $0x48] sm:$0xff]
  %v43 = vld [vmem:[%s2 + $0x50] sm:$0xff]
  %v44 = vld [vmem:[%s2 + $0x58] sm:$0xff]
  %v45 = vld [vmem:[%s2 + $0x60] sm:$0xff]
  %v46 = vld [vmem:[%s2 + $0x68] sm:$0xff]
  %v47 = vld [vmem:[%s2 + $0x70] sm:$0xff]
  %v48 = vld [vmem:[%s2 + $0x78] sm:$0xff]
  %v49 = vld [vmem:[%s2 + $0x80] sm:$0xff]
  %v50 = vld [vmem:[%s2 + $0x88] sm:$0xff]
  %v51 = vld [vmem:[%s2 + $0x90] sm:$0xff]
  %v52 = vld [vmem:[%s2 + $0x98] sm:$0xff]
  %v53 = vld [vmem:[%s2 + $0xa0] sm:$0xff]
  %v54 = vld [vmem:[%s2 + $0xa8] sm:$0xff]
  %v55 = vld [vmem:[%s2 + $0xb0] sm:$0xff]
  %v56 = vld [vmem:[%s2 + $0xb8] sm:$0xff]
  %v57 = vld [vmem:[%s2 + $0xc0] sm:$0xff]
  %v58 = vld [vmem:[%s2 + $0xc8] sm:$0xff]
  %v59 = vld [vmem:[%s2 + $0xd0] sm:$0xff]
  %v60 = vld [vmem:[%s2 + $0xd8] sm:$0xff]
  %v61 = vld [vmem:[%s2 + $0xe0] sm:$0xff]
  %v62 = vld [vmem:[%s2 + $0xe8] sm:$0xff]
  %v63 = vld [vmem:[%s2 + $0xf0] sm:$0xff]
  %v64 = vld [vmem:[%s2 + $0xf8] sm:$0xff]
  %v65 = vld [vmem:[%s2 + $0x100] sm:$0xff]
  %v66 = vld [vmem:[%s2 + $0x108] sm:$0xff]
  %v67 = vld [vmem:[%s2 + $0x110] sm:$0xff]
  %v68 = vld [vmem:[%s2 + $0x118] sm:$0xff]
  %v69 = vld [vmem:[%s2 + $0x120] sm:$0xff]
  %v70 = vld [vmem:[%s2 + $0x128] sm:$0xff]
  %v71 = vld [vmem:[%s2 + $0x130] sm:$0xff]
  %v72 = vld [vmem:[%s2 + $0x138] sm:$0xff]
  %v73 = vld [vmem:[%s2 + $0x140] sm:$0xff]
  %v74 = vld [vmem:[%s2 + $0x148] sm:$0xff]
  %v75 = vld [vmem:[%s2 + $0x150] sm:$0xff]
  %v76 = vld [vmem:[%s2 + $0x158] sm:$0xff]
  %v77 = vld [vmem:[%s2 + $0x160] sm:$0xff]
  %v78 = vld [vmem:[%s2 + $0x168] sm:$0xff]
  %v79 = vld [vmem:[%s2 + $0x170] sm:$0xff]
  %v80 = vld [vmem:[%s2 + $0x178] sm:$0xff]
  %v81 = vld [vmem:[%s2 + $0x180] sm:$0xff]
  %v82 = vld [vmem:[%s2 + $0x188] sm:$0xff]
  %v83 = vld [vmem:[%s2 + $0x190] sm:$0xff]
  %v84 = vld [vmem:[%s2 + $0x198] sm:$0xff]
  %v85 = vld [vmem:[%s2 + $0x1a0] sm:$0xff]
  %v86 = vld [vmem:[%s2 + $0x1a8] sm:$0xff]
  %v87 = vld [vmem:[%s2 + $0x1b0] sm:$0xff]
  %v88 = vld [vmem:[%s2 + $0x1b8] sm:$0xff]
  %v89 = vld [vmem:[%s2 + $0x1c0] sm:$0xff]
  %v90 = vld [vmem:[%s2 + $0x1c8] sm:$0xff]
  %v91 = vld [vmem:[%s2 + $0x1d0] sm:$0xff]
  %v92 = vld [vmem:[%s2 + $0x1d8] sm:$0xff]
  %v93 = vld [vmem:[%s2 + $0x1e0] sm:$0xff]
  %v94 = vld [vmem:[%s2 + $0x1e8] sm:$0xff]
  %v95 = vld [vmem:[%s2 + $0x1f0] sm:$0xff]
  %v96 = vld [vmem:[%s2 + $0x1f8] sm:$0xff]
  %v97 = vld [vmem:[%s2 + $0x200] sm:$0xff]
  %v98 = vld [vmem:[%s2 + $0x208] sm:$0xff]
  %v99 = vld [vmem:[%s2 + $0x210] sm:$0xff]
  %v100 = vld [vmem:[%s2 + $0x218] sm:$0xff]
  %v101 = vld [vmem:[%s2 + $0x220] sm:$0xff]
  %v102 = vld [vmem:[%s2 + $0x228] sm:$0xff]
  %v103 = vld [vmem:[%s2 + $0x230] sm:$0xff]
  %v104 = vld [vmem:[%s2 + $0x238] sm:$0xff]
  %v105 = vld [vmem:[%s2 + $0x240] sm:$0xff]
  %v106 = vld [vmem:[%s2 + $0x248] sm:$0xff]
  %v107 = vld [vmem:[%s2 + $0x250] sm:$0xff]
  %v108 = vld [vmem:[%s2 + $0x258] sm:$0xff]
  %v109 = vld [vmem:[%s2 + $0x260] sm:$0xff]
  %v110 = vld [vmem:[%s2 + $0x268] sm:$0xff]
  %v111 = vld [vmem:[%s2 + $0x270] sm:$0xff]
  %v112 = vld [vmem:[%s2 + $0x278] sm:$0xff]
  %v113 = vld [vmem:[%s2 + $0x280] sm:$0xff]
  %v114 = vld [vmem:[%s2 + $0x288] sm:$0xff]
  %v115 = vld [vmem:[%s2 + $0x290] sm:$0xff]
  %v116 = vld [vmem:[%s2 + $0x298] sm:$0xff]
  %v117 = vld [vmem:[%s2 + $0x2a0] sm:$0xff]
  %v118 = vld [vmem:[%s2 + $0x2a8] sm:$0xff]
  %v119 = vld [vmem:[%s2 + $0x2b0] sm:$0xff]
  %v120 = vld [vmem:[%s2 + $0x2b8] sm:$0xff]
  %v121 = vld [vmem:[%s2 + $0x2c0] sm:$0xff]
  %v122 = vld [vmem:[%s2 + $0x2c8] sm:$0xff]
  %v123 = vld [vmem:[%s2 + $0x2d0] sm:$0xff]
  %v124 = vld [vmem:[%s2 + $0x2d8] sm:$0xff]
  %v125 = vld [vmem:[%s2 + $0x2e0] sm:$0xff]
  %v126 = vld [vmem:[%s2 + $0x2e8] sm:$0xff]
  %v127 = vld [vmem:[%s2 + $0x2f0] sm:$0xff]
  %v128 = vld [vmem:[%s2 + $0x2f8] sm:$0xff]
  %v129 = vld [vmem:[%s2 + $0x300] sm:$0xff]
  %v130 = vld [vmem:[%s2 + $0x308] sm:$0xff]
  %v131 = vld [vmem:[%s2 + $0x310] sm:$0xff]
  %v132 = vld [vmem:[%s2 + $0x318] sm:$0xff]
  %v133 = vld [vmem:[%s2 + $0x320] sm:$0xff]
  %v134 = vld [vmem:[%s2 + $0x328] sm:$0xff]
  %v135 = vld [vmem:[%s2 + $0x330] sm:$0xff]
  %v136 = vld [vmem:[%s2 + $0x338] sm:$0xff]
  %v137 = vld [vmem:[%s2 + $0x340] sm:$0xff]
  %v138 = vld [vmem:[%s2 + $0x348] sm:$0xff]
  %v139 = vld [vmem:[%s2 + $0x350] sm:$0xff]
  %v140 = vld [vmem:[%s2 + $0x358] sm:$0xff]
  %v141 = vld [vmem:[%s2 + $0x360] sm:$0xff]
  %v142 = vld [vmem:[%s2 + $0x368] sm:$0xff]
  %v143 = vld [vmem:[%s2 + $0x370] sm:$0xff]
  %v144 = vld [vmem:[%s2 + $0x378] sm:$0xff]
  %v145 = vld [vmem:[%s2 + $0x380] sm:$0xff]
  %v146 = vld [vmem:[%s2 + $0x388] sm:$0xff]
  %v147 = vld [vmem:[%s2 + $0x390] sm:$0xff]
  %v148 = vld [vmem:[%s2 + $0x398] sm:$0xff]
  %v149 = vld [vmem:[%s2 + $0x3a0] sm:$0xff]
  %v150 = vld [vmem:[%s2 + $0x3a8] sm:$0xff]
  %v151 = vld [vmem:[%s2 + $0x3b0] sm:$0xff]
  %v152 = vld [vmem:[%s2 + $0x3b8] sm:$0xff]
  %v153 = vld [vmem:[%s2 + $0x3c0] sm:$0xff]
  %v154 = vld [vmem:[%s2 + $0x3c8] sm:$0xff]
  %v155 = vld [vmem:[%s2 + $0x3d0] sm:$0xff]
  %v156 = vld [vmem:[%s2 + $0x3d8] sm:$0xff]
  %v157 = vld [vmem:[%s2 + $0x3e0] sm:$0xff]
  %v158 = vld [vmem:[%s2 + $0x3e8] sm:$0xff]
  %v159 = vld [vmem:[%s2 + $0x3f0] sm:$0xff]
  %v160 = vld [vmem:[%s2 + $0x3f8] sm:$0xff]
  %v161 = vld [vmem:[%s3] sm:$0xff]
  %v162 = vld [vmem:[#allocation2] sm:$0xff]
  %v163 = vld [vmem:[#allocation3] sm:$0xff]
  %v164 = vld [vmem:[#allocation3 + $0x8] sm:$0xff]
  %v165 = vld [vmem:[%s0] sm:$0xf]
  %v167 = vunpack.c.l.b16 %v162
  %v168 = vunpack.c.h.b16 %v162
  %v169 = vpack.c.b16 %v167, %v167
  %v170 = vpack.c.b16 %v168, %v168
  %v301 = vunpack.c.l.b16 %v33
  %v302 = vunpack.c.h.b16 %v33
  %v303 = vunpack.c.l.b16 %v34
  %v304 = vunpack.c.h.b16 %v34
  %v305 = vunpack.c.l.b16 %v35
  %v306 = vunpack.c.h.b16 %v35
  %v307 = vunpack.c.l.b16 %v36
  %v308 = vunpack.c.h.b16 %v36
  %v309 = vunpack.c.l.b16 %v37
  %v310 = vunpack.c.h.b16 %v37
  %v311 = vunpack.c.l.b16 %v38
  %v312 = vunpack.c.h.b16 %v38
  %v313 = vunpack.c.l.b16 %v39
  %v314 = vunpack.c.h.b16 %v39
  %v315 = vunpack.c.l.b16 %v40
  %v316 = vunpack.c.h.b16 %v40
  %v317 = vunpack.c.l.b16 %v41
  %v318 = vunpack.c.h.b16 %v41
  %v319 = vunpack.c.l.b16 %v42
  %v320 = vunpack.c.h.b16 %v42
  %v321 = vunpack.c.l.b16 %v43
  %v322 = vunpack.c.h.b16 %v43
  %v323 = vunpack.c.l.b16 %v44
  %v324 = vunpack.c.h.b16 %v44
  %v325 = vunpack.c.l.b16 %v45
  %v326 = vunpack.c.h.b16 %v45
  %v327 = vunpack.c.l.b16 %v46
  %v328 = vunpack.c.h.b16 %v46
  %v329 = vunpack.c.l.b16 %v47
  %v330 = vunpack.c.h.b16 %v47
  %v331 = vunpack.c.l.b16 %v48
  %v332 = vunpack.c.h.b16 %v48
  %v333 = vunpack.c.l.b16 %v49
  %v334 = vunpack.c.h.b16 %v49
  %v335 = vunpack.c.l.b16 %v50
  %v336 = vunpack.c.h.b16 %v50
  %v337 = vunpack.c.l.b16 %v51
  %v338 = vunpack.c.h.b16 %v51
  %v339 = vunpack.c.l.b16 %v52
  %v340 = vunpack.c.h.b16 %v52
  %v341 = vunpack.c.l.b16 %v53
  %v342 = vunpack.c.h.b16 %v53
  %v343 = vunpack.c.l.b16 %v54
  %v344 = vunpack.c.h.b16 %v54
  %v345 = vunpack.c.l.b16 %v55
  %v346 = vunpack.c.h.b16 %v55
  %v347 = vunpack.c.l.b16 %v56
  %v348 = vunpack.c.h.b16 %v56
  %v349 = vunpack.c.l.b16 %v57
  %v350 = vunpack.c.h.b16 %v57
  %v351 = vunpack.c.l.b16 %v58
  %v352 = vunpack.c.h.b16 %v58
  %v353 = vunpack.c.l.b16 %v59
  %v354 = vunpack.c.h.b16 %v59
  %v355 = vunpack.c.l.b16 %v60
  %v356 = vunpack.c.h.b16 %v60
  %v357 = vunpack.c.l.b16 %v61
  %v358 = vunpack.c.h.b16 %v61
  %v359 = vunpack.c.l.b16 %v62
  %v360 = vunpack.c.h.b16 %v62
  %v361 = vunpack.c.l.b16 %v63
  %v362 = vunpack.c.h.b16 %v63
  %v363 = vunpack.c.l.b16 %v64
  %v364 = vunpack.c.h.b16 %v64
  %v365 = vunpack.c.l.b16 %v65
  %v366 = vunpack.c.h.b16 %v65
  %v367 = vunpack.c.l.b16 %v66
  %v368 = vunpack.c.h.b16 %v66
  %v369 = vunpack.c.l.b16 %v67
  %v370 = vunpack.c.h.b16 %v67
  %v371 = vunpack.c.l.b16 %v68
  %v372 = vunpack.c.h.b16 %v68
  %v373 = vunpack.c.l.b16 %v69
  %v374 = vunpack.c.h.b16 %v69
  %v375 = vunpack.c.l.b16 %v70
  %v376 = vunpack.c.h.b16 %v70
  %v377 = vunpack.c.l.b16 %v71
  %v378 = vunpack.c.h.b16 %v71
  %v379 = vunpack.c.l.b16 %v72
  %v380 = vunpack.c.h.b16 %v72
  %v381 = vunpack.c.l.b16 %v73
  %v382 = vunpack.c.h.b16 %v73
  %v383 = vunpack.c.l.b16 %v74
  %v384 = vunpack.c.h.b16 %v74
  %v385 = vunpack.c.l.b16 %v75
  %v386 = vunpack.c.h.b16 %v75
  %v387 = vunpack.c.l.b16 %v76
  %v388 = vunpack.c.h.b16 %v76
  %v389 = vunpack.c.l.b16 %v77
  %v390 = vunpack.c.h.b16 %v77
  %v391 = vunpack.c.l.b16 %v78
  %v392 = vunpack.c.h.b16 %v78
  %v393 = vunpack.c.l.b16 %v79
  %v394 = vunpack.c.h.b16 %v79
  %v395 = vunpack.c.l.b16 %v80
  %v396 = vunpack.c.h.b16 %v80
  %v397 = vunpack.c.l.b16 %v81
  %v398 = vunpack.c.h.b16 %v81
  %v399 = vunpack.c.l.b16 %v82
  %v400 = vunpack.c.h.b16 %v82
  %v401 = vunpack.c.l.b16 %v83
  %v402 = vunpack.c.h.b16 %v83
  %v403 = vunpack.c.l.b16 %v84
  %v404 = vunpack.c.h.b16 %v84
  %v405 = vunpack.c.l.b16 %v85
  %v406 = vunpack.c.h.b16 %v85
  %v407 = vunpack.c.l.b16 %v86
  %v408 = vunpack.c.h.b16 %v86
  %v409 = vunpack.c.l.b16 %v87
  %v410 = vunpack.c.h.b16 %v87
  %v411 = vunpack.c.l.b16 %v88
  %v412 = vunpack.c.h.b16 %v88
  %v413 = vunpack.c.l.b16 %v89
  %v414 = vunpack.c.h.b16 %v89
  %v415 = vunpack.c.l.b16 %v90
  %v416 = vunpack.c.h.b16 %v90
  %v417 = vunpack.c.l.b16 %v91
  %v418 = vunpack.c.h.b16 %v91
  %v419 = vunpack.c.l.b16 %v92
  %v420 = vunpack.c.h.b16 %v92
  %v421 = vunpack.c.l.b16 %v93
  %v422 = vunpack.c.h.b16 %v93
  %v423 = vunpack.c.l.b16 %v94
  %v424 = vunpack.c.h.b16 %v94
  %v425 = vunpack.c.l.b16 %v95
  %v426 = vunpack.c.h.b16 %v95
  %v427 = vunpack.c.l.b16 %v96
  %v428 = vunpack.c.h.b16 %v96
  %v429 = vunpack.c.l.b16 %v97
  %v430 = vunpack.c.h.b16 %v97
  %v431 = vunpack.c.l.b16 %v98
  %v432 = vunpack.c.h.b16 %v98
  %v433 = vunpack.c.l.b16 %v99
  %v434 = vunpack.c.h.b16 %v99
  %v435 = vunpack.c.l.b16 %v100
  %v436 = vunpack.c.h.b16 %v100
  %v437 = vunpack.c.l.b16 %v101
  %v438 = vunpack.c.h.b16 %v101
  %v439 = vunpack.c.l.b16 %v102
  %v440 = vunpack.c.h.b16 %v102
  %v441 = vunpack.c.l.b16 %v103
  %v442 = vunpack.c.h.b16 %v103
  %v443 = vunpack.c.l.b16 %v104
  %v444 = vunpack.c.h.b16 %v104
  %v445 = vunpack.c.l.b16 %v105
  %v446 = vunpack.c.h.b16 %v105
  %v447 = vunpack.c.l.b16 %v106
  %v448 = vunpack.c.h.b16 %v106
  %v449 = vunpack.c.l.b16 %v107
  %v450 = vunpack.c.h.b16 %v107
  %v451 = vunpack.c.l.b16 %v108
  %v452 = vunpack.c.h.b16 %v108
  %v453 = vunpack.c.l.b16 %v109
  %v454 = vunpack.c.h.b16 %v109
  %v455 = vunpack.c.l.b16 %v110
  %v456 = vunpack.c.h.b16 %v110
  %v457 = vunpack.c.l.b16 %v111
  %v458 = vunpack.c.h.b16 %v111
  %v459 = vunpack.c.l.b16 %v112
  %v460 = vunpack.c.h.b16 %v112
  %v461 = vunpack.c.l.b16 %v113
  %v462 = vunpack.c.h.b16 %v113
  %v463 = vunpack.c.l.b16 %v114
  %v464 = vunpack.c.h.b16 %v114
  %v465 = vunpack.c.l.b16 %v115
  %v466 = vunpack.c.h.b16 %v115
  %v467 = vunpack.c.l.b16 %v116
  %v468 = vunpack.c.h.b16 %v116
  %v469 = vunpack.c.l.b16 %v117
  %v470 = vunpack.c.h.b16 %v117
  %v471 = vunpack.c.l.b16 %v118
  %v472 = vunpack.c.h.b16 %v118
  %v473 = vunpack.c.l.b16 %v119
  %v474 = vunpack.c.h.b16 %v119
  %v475 = vunpack.c.l.b16 %v120
  %v476 = vunpack.c.h.b16 %v120
  %v477 = vunpack.c.l.b16 %v121
  %v478 = vunpack.c.h.b16 %v121
  %v479 = vunpack.c.l.b16 %v122
  %v480 = vunpack.c.h.b16 %v122
  %v481 = vunpack.c.l.b16 %v123
  %v482 = vunpack.c.h.b16 %v123
  %v483 = vunpack.c.l.b16 %v124
  %v484 = vunpack.c.h.b16 %v124
  %v485 = vunpack.c.l.b16 %v125
  %v486 = vunpack.c.h.b16 %v125
  %v487 = vunpack.c.l.b16 %v126
  %v488 = vunpack.c.h.b16 %v126
  %v489 = vunpack.c.l.b16 %v127
  %v490 = vunpack.c.h.b16 %v127
  %v491 = vunpack.c.l.b16 %v128
  %v492 = vunpack.c.h.b16 %v128
  %v493 = vunpack.c.l.b16 %v129
  %v494 = vunpack.c.h.b16 %v129
  %v495 = vunpack.c.l.b16 %v130
  %v496 = vunpack.c.h.b16 %v130
  %v497 = vunpack.c.l.b16 %v131
  %v498 = vunpack.c.h.b16 %v131
  %v499 = vunpack.c.l.b16 %v132
  %v500 = vunpack.c.h.b16 %v132
  %v501 = vunpack.c.l.b16 %v133
  %v502 = vunpack.c.h.b16 %v133
  %v503 = vunpack.c.l.b16 %v134
  %v504 = vunpack.c.h.b16 %v134
  %v505 = vunpack.c.l.b16 %v135
  %v506 = vunpack.c.h.b16 %v135
  %v507 = vunpack.c.l.b16 %v136
  %v508 = vunpack.c.h.b16 %v136
  %v509 = vunpack.c.l.b16 %v137
  %v510 = vunpack.c.h.b16 %v137
  %v511 = vunpack.c.l.b16 %v138
  %v512 = vunpack.c.h.b16 %v138
  %v513 = vunpack.c.l.b16 %v139
  %v514 = vunpack.c.h.b16 %v139
  %v515 = vunpack.c.l.b16 %v140
  %v516 = vunpack.c.h.b16 %v140
  %v517 = vunpack.c.l.b16 %v141
  %v518 = vunpack.c.h.b16 %v141
  %v519 = vunpack.c.l.b16 %v142
  %v520 = vunpack.c.h.b16 %v142
  %v521 = vunpack.c.l.b16 %v143
  %v522 = vunpack.c.h.b16 %v143
  %v523 = vunpack.c.l.b16 %v144
  %v524 = vunpack.c.h.b16 %v144
  %v525 = vunpack.c.l.b16 %v145
  %v526 = vunpack.c.h.b16 %v145
  %v527 = vunpack.c.l.b16 %v146
  %v528 = vunpack.c.h.b16 %v146
  %v529 = vunpack.c.l.b16 %v147
  %v530 = vunpack.c.h.b16 %v147
  %v531 = vunpack.c.l.b16 %v148
  %v532 = vunpack.c.h.b16 %v148
  %v533 = vunpack.c.l.b16 %v149
  %v534 = vunpack.c.h.b16 %v149
  %v535 = vunpack.c.l.b16 %v150
  %v536 = vunpack.c.h.b16 %v150
  %v537 = vunpack.c.l.b16 %v151
  %v538 = vunpack.c.h.b16 %v151
  %v539 = vunpack.c.l.b16 %v152
  %v540 = vunpack.c.h.b16 %v152
  %v541 = vunpack.c.l.b16 %v153
  %v542 = vunpack.c.h.b16 %v153
  %v543 = vunpack.c.l.b16 %v154
  %v544 = vunpack.c.h.b16 %v154
  %v545 = vunpack.c.l.b16 %v155
  %v546 = vunpack.c.h.b16 %v155
  %v547 = vunpack.c.l.b16 %v156
  %v548 = vunpack.c.h.b16 %v156
  %v549 = vunpack.c.l.b16 %v157
  %v550 = vunpack.c.h.b16 %v157
  %v551 = vunpack.c.l.b16 %v158
  %v552 = vunpack.c.h.b16 %v158
  %v553 = vunpack.c.l.b16 %v159
  %v554 = vunpack.c.h.b16 %v159
  %v555 = vunpack.c.l.b16 %v160
  %v556 = vunpack.c.h.b16 %v160
  %v557 = vpack.c.b16 %v309, %v301
  %v558 = vpack.c.b16 %v310, %v302
  %v559 = vpack.c.b16 %v311, %v303
  %v560 = vpack.c.b16 %v312, %v304
  %v561 = vpack.c.b16 %v313, %v305
  %v562 = vpack.c.b16 %v314, %v306
  %v563 = vpack.c.b16 %v315, %v307
  %v564 = vpack.c.b16 %v316, %v308
  %v565 = vpack.c.b16 %v325, %v317
  %v566 = vpack.c.b16 %v326, %v318
  %v567 = vpack.c.b16 %v327, %v319
  %v568 = vpack.c.b16 %v328, %v320
  %v569 = vpack.c.b16 %v329, %v321
  %v570 = vpack.c.b16 %v330, %v322
  %v571 = vpack.c.b16 %v331, %v323
  %v572 = vpack.c.b16 %v332, %v324
  %v573 = vpack.c.b16 %v341, %v333
  %v574 = vpack.c.b16 %v342, %v334
  %v575 = vpack.c.b16 %v343, %v335
  %v576 = vpack.c.b16 %v344, %v336
  %v577 = vpack.c.b16 %v345, %v337
  %v578 = vpack.c.b16 %v346, %v338
  %v579 = vpack.c.b16 %v347, %v339
  %v580 = vpack.c.b16 %v348, %v340
  %v581 = vpack.c.b16 %v357, %v349
  %v582 = vpack.c.b16 %v358, %v350
  %v583 = vpack.c.b16 %v359, %v351
  %v584 = vpack.c.b16 %v360, %v352
  %v585 = vpack.c.b16 %v361, %v353
  %v586 = vpack.c.b16 %v362, %v354
  %v587 = vpack.c.b16 %v363, %v355
  %v588 = vpack.c.b16 %v364, %v356
  %v589 = vpack.c.b16 %v373, %v365
  %v590 = vpack.c.b16 %v374, %v366
  %v591 = vpack.c.b16 %v375, %v367
  %v592 = vpack.c.b16 %v376, %v368
  %v593 = vpack.c.b16 %v377, %v369
  %v594 = vpack.c.b16 %v378, %v370
  %v595 = vpack.c.b16 %v379, %v371
  %v596 = vpack.c.b16 %v380, %v372
  %v597 = vpack.c.b16 %v389, %v381
  %v598 = vpack.c.b16 %v390, %v382
  %v599 = vpack.c.b16 %v391, %v383
  %v600 = vpack.c.b16 %v392, %v384
  %v601 = vpack.c.b16 %v393, %v385
  %v602 = vpack.c.b16 %v394, %v386
  %v603 = vpack.c.b16 %v395, %v387
  %v604 = vpack.c.b16 %v396, %v388
  %v605 = vpack.c.b16 %v405, %v397
  %v606 = vpack.c.b16 %v406, %v398
  %v607 = vpack.c.b16 %v407, %v399
  %v608 = vpack.c.b16 %v408, %v400
  %v609 = vpack.c.b16 %v409, %v401
  %v610 = vpack.c.b16 %v410, %v402
  %v611 = vpack.c.b16 %v411, %v403
  %v612 = vpack.c.b16 %v412, %v404
  %v613 = vpack.c.b16 %v421, %v413
  %v614 = vpack.c.b16 %v422, %v414
  %v615 = vpack.c.b16 %v423, %v415
  %v616 = vpack.c.b16 %v424, %v416
  %v617 = vpack.c.b16 %v425, %v417
  %v618 = vpack.c.b16 %v426, %v418
  %v619 = vpack.c.b16 %v427, %v419
  %v620 = vpack.c.b16 %v428, %v420
  %v621 = vpack.c.b16 %v437, %v429
  %v622 = vpack.c.b16 %v438, %v430
  %v623 = vpack.c.b16 %v439, %v431
  %v624 = vpack.c.b16 %v440, %v432
  %v625 = vpack.c.b16 %v441, %v433
  %v626 = vpack.c.b16 %v442, %v434
  %v627 = vpack.c.b16 %v443, %v435
  %v628 = vpack.c.b16 %v444, %v436
  %v629 = vpack.c.b16 %v453, %v445
  %v630 = vpack.c.b16 %v454, %v446
  %v631 = vpack.c.b16 %v455, %v447
  %v632 = vpack.c.b16 %v456, %v448
  %v633 = vpack.c.b16 %v457, %v449
  %v634 = vpack.c.b16 %v458, %v450
  %v635 = vpack.c.b16 %v459, %v451
  %v636 = vpack.c.b16 %v460, %v452
  %v637 = vpack.c.b16 %v469, %v461
  %v638 = vpack.c.b16 %v470, %v462
  %v639 = vpack.c.b16 %v471, %v463
  %v640 = vpack.c.b16 %v472, %v464
  %v641 = vpack.c.b16 %v473, %v465
  %v642 = vpack.c.b16 %v474, %v466
  %v643 = vpack.c.b16 %v475, %v467
  %v644 = vpack.c.b16 %v476, %v468
  %v645 = vpack.c.b16 %v485, %v477
  %v646 = vpack.c.b16 %v486, %v478
  %v647 = vpack.c.b16 %v487, %v479
  %v648 = vpack.c.b16 %v488, %v480
  %v649 = vpack.c.b16 %v489, %v481
  %v650 = vpack.c.b16 %v490, %v482
  %v651 = vpack.c.b16 %v491, %v483
  %v652 = vpack.c.b16 %v492, %v484
  %v653 = vpack.c.b16 %v501, %v493
  %v654 = vpack.c.b16 %v502, %v494
  %v655 = vpack.c.b16 %v503, %v495
  %v656 = vpack.c.b16 %v504, %v496
  %v657 = vpack.c.b16 %v505, %v497
  %v658 = vpack.c.b16 %v506, %v498
  %v659 = vpack.c.b16 %v507, %v499
  %v660 = vpack.c.b16 %v508, %v500
  %v661 = vpack.c.b16 %v517, %v509
  %v662 = vpack.c.b16 %v518, %v510
  %v663 = vpack.c.b16 %v519, %v511
  %v664 = vpack.c.b16 %v520, %v512
  %v665 = vpack.c.b16 %v521, %v513
  %v666 = vpack.c.b16 %v522, %v514
  %v667 = vpack.c.b16 %v523, %v515
  %v668 = vpack.c.b16 %v524, %v516
  %v669 = vpack.c.b16 %v533, %v525
  %v670 = vpack.c.b16 %v534, %v526
  %v671 = vpack.c.b16 %v535, %v527
  %v672 = vpack.c.b16 %v536, %v528
  %v673 = vpack.c.b16 %v537, %v529
  %v674 = vpack.c.b16 %v538, %v530
  %v675 = vpack.c.b16 %v539, %v531
  %v676 = vpack.c.b16 %v540, %v532
  %v677 = vpack.c.b16 %v549, %v541
  %v678 = vpack.c.b16 %v550, %v542
  %v679 = vpack.c.b16 %v551, %v543
  %v680 = vpack.c.b16 %v552, %v544
  %v681 = vpack.c.b16 %v553, %v545
  %v682 = vpack.c.b16 %v554, %v546
  %v683 = vpack.c.b16 %v555, %v547
  %v684 = vpack.c.b16 %v556, %v548
  %813 = vmatprep.subr.bf16.mxu0 %v558
  %814 = vmatpush1.bf16.msra.mxu0 %v557
  %815 = vmatprep.subr.bf16.mxu0 %v566
  %816 = vmatpush1.bf16.msra.mxu0 %v565
  %817 = vmatprep.subr.bf16.mxu0 %v574
  %818 = vmatpush1.bf16.msra.mxu0 %v573
  %819 = vmatprep.subr.bf16.mxu0 %v582
  %820 = vmatpush1.bf16.msra.mxu0 %v581
  %821 = vmatprep.subr.bf16.mxu0 %v590
  %822 = vmatpush1.bf16.msra.mxu0 %v589
  %823 = vmatprep.subr.bf16.mxu0 %v598
  %824 = vmatpush1.bf16.msra.mxu0 %v597
  %825 = vmatprep.subr.bf16.mxu0 %v606
  %826 = vmatpush1.bf16.msra.mxu0 %v605
  %827 = vmatprep.subr.bf16.mxu0 %v614
  %828 = vmatpush1.bf16.msra.mxu0 %v613
  %829 = vmatprep.subr.bf16.mxu0 %v622
  %830 = vmatpush1.bf16.msra.mxu0 %v621
  %831 = vmatprep.subr.bf16.mxu0 %v630
  %832 = vmatpush1.bf16.msra.mxu0 %v629
  %833 = vmatprep.subr.bf16.mxu0 %v638
  %834 = vmatpush1.bf16.msra.mxu0 %v637
  %835 = vmatprep.subr.bf16.mxu0 %v646
  %836 = vmatpush1.bf16.msra.mxu0 %v645
  %837 = vmatprep.subr.bf16.mxu0 %v654
  %838 = vmatpush1.bf16.msra.mxu0 %v653
  %839 = vmatprep.subr.bf16.mxu0 %v662
  %840 = vmatpush1.bf16.msra.mxu0 %v661
  %841 = vmatprep.subr.bf16.mxu0 %v670
  %842 = vmatpush1.bf16.msra.mxu0 %v669
  %843 = vmatprep.subr.bf16.mxu0 %v678
  %844 = vmatpush1.bf16.msra.mxu0 %v677
  %845 = vmatprep.mubr.bf16.mxu0 %v170
  %846 = vmatmul.mubr.bf16.gmra.mrb[0].mxu0 %v169
  %v847 = vpop.f32.mrb[0].mxu0
  %v848 = vadd.f32 0.0, %v847
  %v849 = vpop.f32.mrb[0].mxu0
  %v850 = vadd.f32 0.0, %v849
  %v851 = vpop.f32.mrb[0].mxu0
  %v852 = vpop.f32.mrb[0].mxu0
  %853 = vdwg.mxu0
  %854 = vmatprep.subr.bf16.mxu0 %v560
  %855 = vmatpush1.bf16.msra.mxu0 %v559
  %856 = vmatprep.subr.bf16.mxu0 %v568
  %857 = vmatpush1.bf16.msra.mxu0 %v567
  %858 = vmatprep.subr.bf16.mxu0 %v576
  %859 = vmatpush1.bf16.msra.mxu0 %v575
  %860 = vmatprep.subr.bf16.mxu0 %v584
  %861 = vmatpush1.bf16.msra.mxu0 %v583
  %862 = vmatprep.subr.bf16.mxu0 %v592
  %863 = vmatpush1.bf16.msra.mxu0 %v591
  %864 = vmatprep.subr.bf16.mxu0 %v600
  %865 = vmatpush1.bf16.msra.mxu0 %v599
  %866 = vmatprep.subr.bf16.mxu0 %v608
  %867 = vmatpush1.bf16.msra.mxu0 %v607
  %868 = vmatprep.subr.bf16.mxu0 %v616
  %869 = vmatpush1.bf16.msra.mxu0 %v615
  %870 = vmatprep.subr.bf16.mxu0 %v624
  %871 = vmatpush1.bf16.msra.mxu0 %v623
  %872 = vmatprep.subr.bf16.mxu0 %v632
  %873 = vmatpush1.bf16.msra.mxu0 %v631
  %874 = vmatprep.subr.bf16.mxu0 %v640
  %875 = vmatpush1.bf16.msra.mxu0 %v639
  %876 = vmatprep.subr.bf16.mxu0 %v648
  %877 = vmatpush1.bf16.msra.mxu0 %v647
  %878 = vmatprep.subr.bf16.mxu0 %v656
  %879 = vmatpush1.bf16.msra.mxu0 %v655
  %880 = vmatprep.subr.bf16.mxu0 %v664
  %881 = vmatpush1.bf16.msra.mxu0 %v663
  %882 = vmatprep.subr.bf16.mxu0 %v672
  %883 = vmatpush1.bf16.msra.mxu0 %v671
  %884 = vmatprep.subr.bf16.mxu0 %v680
  %885 = vmatpush1.bf16.msra.mxu0 %v679
  %886 = vmatprep.mubr.bf16.mxu0 %v170
  %887 = vmatmul.mubr.bf16.gmra.mrb[0].mxu0 %v169
  %v888 = vpop.f32.mrb[0].mxu0
  %v889 = vadd.f32 0.0, %v888
  %v890 = vpop.f32.mrb[0].mxu0
  %v891 = vadd.f32 0.0, %v890
  %v892 = vpop.f32.mrb[0].mxu0
  %v893 = vpop.f32.mrb[0].mxu0
  %894 = vdwg.mxu0
  %895 = vmatprep.subr.bf16.mxu0 %v562
  %896 = vmatpush1.bf16.msra.mxu0 %v561
  %897 = vmatprep.subr.bf16.mxu0 %v570
  %898 = vmatpush1.bf16.msra.mxu0 %v569
  %899 = vmatprep.subr.bf16.mxu0 %v578
  %900 = vmatpush1.bf16.msra.mxu0 %v577
  %901 = vmatprep.subr.bf16.mxu0 %v586
  %902 = vmatpush1.bf16.msra.mxu0 %v585
  %903 = vmatprep.subr.bf16.mxu0 %v594
  %904 = vmatpush1.bf16.msra.mxu0 %v593
  %905 = vmatprep.subr.bf16.mxu0 %v602
  %906 = vmatpush1.bf16.msra.mxu0 %v601
  %907 = vmatprep.subr.bf16.mxu0 %v610
  %908 = vmatpush1.bf16.msra.mxu0 %v609
  %909 = vmatprep.subr.bf16.mxu0 %v618
  %910 = vmatpush1.bf16.msra.mxu0 %v617
  %911 = vmatprep.subr.bf16.mxu0 %v626
  %912 = vmatpush1.bf16.msra.mxu0 %v625
  %913 = vmatprep.subr.bf16.mxu0 %v634
  %914 = vmatpush1.bf16.msra.mxu0 %v633
  %915 = vmatprep.subr.bf16.mxu0 %v642
  %916 = vmatpush1.bf16.msra.mxu0 %v641
  %917 = vmatprep.subr.bf16.mxu0 %v650
  %918 = vmatpush1.bf16.msra.mxu0 %v649
  %919 = vmatprep.subr.bf16.mxu0 %v658
  %920 = vmatpush1.bf16.msra.mxu0 %v657
  %921 = vmatprep.subr.bf16.mxu0 %v666
  %922 = vmatpush1.bf16.msra.mxu0 %v665
  %923 = vmatprep.subr.bf16.mxu0 %v674
  %924 = vmatpush1.bf16.msra.mxu0 %v673
  %925 = vmatprep.subr.bf16.mxu0 %v682
  %926 = vmatpush1.bf16.msra.mxu0 %v681
  %927 = vmatprep.mubr.bf16.mxu0 %v170
  %928 = vmatmul.mubr.bf16.gmra.mrb[0].mxu0 %v169
  %v929 = vpop.f32.mrb[0].mxu0
  %v930 = vadd.f32 0.0, %v929
  %v931 = vpop.f32.mrb[0].mxu0
  %v932 = vadd.f32 0.0, %v931
  %v933 = vpop.f32.mrb[0].mxu0
  %v934 = vpop.f32.mrb[0].mxu0
  %935 = vdwg.mxu0
  %936 = vmatprep.subr.bf16.mxu0 %v564
  %937 = vmatpush1.bf16.msra.mxu0 %v563
  %938 = vmatprep.subr.bf16.mxu0 %v572
  %939 = vmatpush1.bf16.msra.mxu0 %v571
  %940 = vmatprep.subr.bf16.mxu0 %v580
  %941 = vmatpush1.bf16.msra.mxu0 %v579
  %942 = vmatprep.subr.bf16.mxu0 %v588
  %943 = vmatpush1.bf16.msra.mxu0 %v587
  %944 = vmatprep.subr.bf16.mxu0 %v596
  %945 = vmatpush1.bf16.msra.mxu0 %v595
  %946 = vmatprep.subr.bf16.mxu0 %v604
  %947 = vmatpush1.bf16.msra.mxu0 %v603
  %948 = vmatprep.subr.bf16.mxu0 %v612
  %949 = vmatpush1.bf16.msra.mxu0 %v611
  %950 = vmatprep.subr.bf16.mxu0 %v620
  %951 = vmatpush1.bf16.msra.mxu0 %v619
  %952 = vmatprep.subr.bf16.mxu0 %v628
  %953 = vmatpush1.bf16.msra.mxu0 %v627
  %954 = vmatprep.subr.bf16.mxu0 %v636
  %955 = vmatpush1.bf16.msra.mxu0 %v635
  %956 = vmatprep.subr.bf16.mxu0 %v644
  %957 = vmatpush1.bf16.msra.mxu0 %v643
  %958 = vmatprep.subr.bf16.mxu0 %v652
  %959 = vmatpush1.bf16.msra.mxu0 %v651
  %960 = vmatprep.subr.bf16.mxu0 %v660
  %961 = vmatpush1.bf16.msra.mxu0 %v659
  %962 = vmatprep.subr.bf16.mxu0 %v668
  %963 = vmatpush1.bf16.msra.mxu0 %v667
  %964 = vmatprep.subr.bf16.mxu0 %v676
  %965 = vmatpush1.bf16.msra.mxu0 %v675
  %966 = vmatprep.subr.bf16.mxu0 %v684
  %967 = vmatpush1.bf16.msra.mxu0 %v683
  %968 = vmatprep.mubr.bf16.mxu0 %v170
  %969 = vmatmul.mubr.bf16.gmra.mrb[0].mxu0 %v169
  %v970 = vpop.f32.mrb[0].mxu0
  %v971 = vadd.f32 0.0, %v970
  %v972 = vpop.f32.mrb[0].mxu0
  %v973 = vadd.f32 0.0, %v972
  %v974 = vpop.f32.mrb[0].mxu0
  %v975 = vpop.f32.mrb[0].mxu0
  %976 = vdwg.mxu0
  %v985 = vunpack.c.l.b16 %v25
  %v986 = vunpack.c.h.b16 %v25
  %v987 = vunpack.c.l.b16 %v26
  %v988 = vunpack.c.h.b16 %v26
  %v989 = vunpack.c.l.b16 %v27
  %v990 = vunpack.c.h.b16 %v27
  %v991 = vunpack.c.l.b16 %v28
  %v992 = vunpack.c.h.b16 %v28
  %v993 = vunpack.c.l.b16 %v29
  %v994 = vunpack.c.h.b16 %v29
  %v995 = vunpack.c.l.b16 %v30
  %v996 = vunpack.c.h.b16 %v30
  %v997 = vunpack.c.l.b16 %v31
  %v998 = vunpack.c.h.b16 %v31
  %v999 = vunpack.c.l.b16 %v32
  %v1000 = vunpack.c.h.b16 %v32
  %v1001 = vpack.c.b16 %v993, %v985
  %v1002 = vpack.c.b16 %v994, %v986
  %v1003 = vpack.c.b16 %v995, %v987
  %v1004 = vpack.c.b16 %v996, %v988
  %v1005 = vpack.c.b16 %v997, %v989
  %v1006 = vpack.c.b16 %v998, %v990
  %v1007 = vpack.c.b16 %v999, %v991
  %v1008 = vpack.c.b16 %v1000, %v992
  %vm1017 = vcmask 130048
  %v1019 = vsel %vm1017, %v165, 0
  %1021 = vmatprep.subr.bf16.mxu0 %v1002
  %1022 = vmatpush1.bf16.msra.mxu0 %v1001
  %1023 = vmatprep.subr.bf16.mxu0 0
  %1024 = vmatpush1.bf16.msra.mxu0 0
  %1025 = vmatprep.subr.bf16.mxu0 0
  %1026 = vmatpush1.bf16.msra.mxu0 0
  %1027 = vmatprep.subr.bf16.mxu0 0
  %1028 = vmatpush1.bf16.msra.mxu0 0
  %1029 = vmatprep.subr.bf16.mxu0 0
  %1030 = vmatpush1.bf16.msra.mxu0 0
  %1031 = vmatprep.subr.bf16.mxu0 0
  %1032 = vmatpush1.bf16.msra.mxu0 0
  %1033 = vmatprep.subr.bf16.mxu0 0
  %1034 = vmatpush1.bf16.msra.mxu0 0
  %1035 = vmatprep.subr.bf16.mxu0 0
  %1036 = vmatpush1.bf16.msra.mxu0 0
  %1037 = vmatprep.subr.bf16.mxu0 0
  %1038 = vmatpush1.bf16.msra.mxu0 0
  %1039 = vmatprep.subr.bf16.mxu0 0
  %1040 = vmatpush1.bf16.msra.mxu0 0
  %1041 = vmatprep.subr.bf16.mxu0 0
  %1042 = vmatpush1.bf16.msra.mxu0 0
  %1043 = vmatprep.subr.bf16.mxu0 0
  %1044 = vmatpush1.bf16.msra.mxu0 0
  %1045 = vmatprep.subr.bf16.mxu0 0
  %1046 = vmatpush1.bf16.msra.mxu0 0
  %1047 = vmatprep.subr.bf16.mxu0 0
  %1048 = vmatpush1.bf16.msra.mxu0 0
  %1049 = vmatprep.subr.bf16.mxu0 0
  %1050 = vmatpush1.bf16.msra.mxu0 0
  %1051 = vmatprep.subr.bf16.mxu0 0
  %1052 = vmatpush1.bf16.msra.mxu0 0
  %1053 = vmatprep.mubr.bf16.mxu0 0
  %1054 = vmatmul.mubr.bf16.gmra.mrb[0].mxu0 %v1019
  %v1055 = vpop.f32.mrb[0].mxu0
  %v1056 = vadd.f32 %v848, %v1055
  %v1057 = vpop.f32.mrb[0].mxu0
  %v1058 = vadd.f32 %v850, %v1057
  %v1059 = vpop.f32.mrb[0].mxu0
  %v1060 = vpop.f32.mrb[0].mxu0
  %1061 = vdwg.mxu0
  %1062 = vmatprep.subr.bf16.mxu0 %v1004
  %1063 = vmatpush1.bf16.msra.mxu0 %v1003
  %1064 = vmatprep.subr.bf16.mxu0 0
  %1065 = vmatpush1.bf16.msra.mxu0 0
  %1066 = vmatprep.subr.bf16.mxu0 0
  %1067 = vmatpush1.bf16.msra.mxu0 0
  %1068 = vmatprep.subr.bf16.mxu0 0
  %1069 = vmatpush1.bf16.msra.mxu0 0
  %1070 = vmatprep.subr.bf16.mxu0 0
  %1071 = vmatpush1.bf16.msra.mxu0 0
  %1072 = vmatprep.subr.bf16.mxu0 0
  %1073 = vmatpush1.bf16.msra.mxu0 0
  %1074 = vmatprep.subr.bf16.mxu0 0
  %1075 = vmatpush1.bf16.msra.mxu0 0
  %1076 = vmatprep.subr.bf16.mxu0 0
  %1077 = vmatpush1.bf16.msra.mxu0 0
  %1078 = vmatprep.subr.bf16.mxu0 0
  %1079 = vmatpush1.bf16.msra.mxu0 0
  %1080 = vmatprep.subr.bf16.mxu0 0
  %1081 = vmatpush1.bf16.msra.mxu0 0
  %1082 = vmatprep.subr.bf16.mxu0 0
  %1083 = vmatpush1.bf16.msra.mxu0 0
  %1084 = vmatprep.subr.bf16.mxu0 0
  %1085 = vmatpush1.bf16.msra.mxu0 0
  %1086 = vmatprep.subr.bf16.mxu0 0
  %1087 = vmatpush1.bf16.msra.mxu0 0
  %1088 = vmatprep.subr.bf16.mxu0 0
  %1089 = vmatpush1.bf16.msra.mxu0 0
  %1090 = vmatprep.subr.bf16.mxu0 0
  %1091 = vmatpush1.bf16.msra.mxu0 0
  %1092 = vmatprep.subr.bf16.mxu0 0
  %1093 = vmatpush1.bf16.msra.mxu0 0
  %1094 = vmatprep.mubr.bf16.mxu0 0
  %1095 = vmatmul.mubr.bf16.gmra.mrb[0].mxu0 %v1019
  %v1096 = vpop.f32.mrb[0].mxu0
  %v1097 = vadd.f32 %v889, %v1096
  %v1098 = vpop.f32.mrb[0].mxu0
  %v1099 = vadd.f32 %v891, %v1098
  %v1100 = vpop.f32.mrb[0].mxu0
  %v1101 = vpop.f32.mrb[0].mxu0
  %1102 = vdwg.mxu0
  %1103 = vmatprep.subr.bf16.mxu0 %v1006
  %1104 = vmatpush1.bf16.msra.mxu0 %v1005
  %1105 = vmatprep.subr.bf16.mxu0 0
  %1106 = vmatpush1.bf16.msra.mxu0 0
  %1107 = vmatprep.subr.bf16.mxu0 0
  %1108 = vmatpush1.bf16.msra.mxu0 0
  %1109 = vmatprep.subr.bf16.mxu0 0
  %1110 = vmatpush1.bf16.msra.mxu0 0
  %1111 = vmatprep.subr.bf16.mxu0 0
  %1112 = vmatpush1.bf16.msra.mxu0 0
  %1113 = vmatprep.subr.bf16.mxu0 0
  %1114 = vmatpush1.bf16.msra.mxu0 0
  %1115 = vmatprep.subr.bf16.mxu0 0
  %1116 = vmatpush1.bf16.msra.mxu0 0
  %1117 = vmatprep.subr.bf16.mxu0 0
  %1118 = vmatpush1.bf16.msra.mxu0 0
  %1119 = vmatprep.subr.bf16.mxu0 0
  %1120 = vmatpush1.bf16.msra.mxu0 0
  %1121 = vmatprep.subr.bf16.mxu0 0
  %1122 = vmatpush1.bf16.msra.mxu0 0
  %1123 = vmatprep.subr.bf16.mxu0 0
  %1124 = vmatpush1.bf16.msra.mxu0 0
  %1125 = vmatprep.subr.bf16.mxu0 0
  %1126 = vmatpush1.bf16.msra.mxu0 0
  %1127 = vmatprep.subr.bf16.mxu0 0
  %1128 = vmatpush1.bf16.msra.mxu0 0
  %1129 = vmatprep.subr.bf16.mxu0 0
  %1130 = vmatpush1.bf16.msra.mxu0 0
  %1131 = vmatprep.subr.bf16.mxu0 0
  %1132 = vmatpush1.bf16.msra.mxu0 0
  %1133 = vmatprep.subr.bf16.mxu0 0
  %1134 = vmatpush1.bf16.msra.mxu0 0
  %1135 = vmatprep.mubr.bf16.mxu0 0
  %1136 = vmatmul.mubr.bf16.gmra.mrb[0].mxu0 %v1019
  %v1137 = vpop.f32.mrb[0].mxu0
  %v1138 = vadd.f32 %v930, %v1137
  %v1139 = vpop.f32.mrb[0].mxu0
  %v1140 = vadd.f32 %v932, %v1139
  %v1141 = vpop.f32.mrb[0].mxu0
  %v1142 = vpop.f32.mrb[0].mxu0
  %1143 = vdwg.mxu0
  %1144 = vmatprep.subr.bf16.mxu0 %v1008
  %1145 = vmatpush1.bf16.msra.mxu0 %v1007
  %1146 = vmatprep.subr.bf16.mxu0 0
  %1147 = vmatpush1.bf16.msra.mxu0 0
  %1148 = vmatprep.subr.bf16.mxu0 0
  %1149 = vmatpush1.bf16.msra.mxu0 0
  %1150 = vmatprep.subr.bf16.mxu0 0
  %1151 = vmatpush1.bf16.msra.mxu0 0
  %1152 = vmatprep.subr.bf16.mxu0 0
  %1153 = vmatpush1.bf16.msra.mxu0 0
  %1154 = vmatprep.subr.bf16.mxu0 0
  %1155 = vmatpush1.bf16.msra.mxu0 0
  %1156 = vmatprep.subr.bf16.mxu0 0
  %1157 = vmatpush1.bf16.msra.mxu0 0
  %1158 = vmatprep.subr.bf16.mxu0 0
  %1159 = vmatpush1.bf16.msra.mxu0 0
  %1160 = vmatprep.subr.bf16.mxu0 0
  %1161 = vmatpush1.bf16.msra.mxu0 0
  %1162 = vmatprep.subr.bf16.mxu0 0
  %1163 = vmatpush1.bf16.msra.mxu0 0
  %1164 = vmatprep.subr.bf16.mxu0 0
  %1165 = vmatpush1.bf16.msra.mxu0 0
  %1166 = vmatprep.subr.bf16.mxu0 0
  %1167 = vmatpush1.bf16.msra.mxu0 0
  %1168 = vmatprep.subr.bf16.mxu0 0
  %1169 = vmatpush1.bf16.msra.mxu0 0
  %1170 = vmatprep.subr.bf16.mxu0 0
  %1171 = vmatpush1.bf16.msra.mxu0 0
  %1172 = vmatprep.subr.bf16.mxu0 0
  %1173 = vmatpush1.bf16.msra.mxu0 0
  %1174 = vmatprep.subr.bf16.mxu0 0
  %1175 = vmatpush1.bf16.msra.mxu0 0
  %1176 = vmatprep.mubr.bf16.mxu0 0
  %1177 = vmatmul.mubr.bf16.gmra.mrb[0].mxu0 %v1019
  %v1178 = vpop.f32.mrb[0].mxu0
  %v1179 = vadd.f32 %v971, %v1178
  %v1180 = vpop.f32.mrb[0].mxu0
  %v1181 = vadd.f32 %v973, %v1180
  %v1182 = vpop.f32.mrb[0].mxu0
  %v1183 = vpop.f32.mrb[0].mxu0
  %1184 = vdwg.mxu0
  %v1186 = vlaneseq
  %v1187 = vshrl.u32 %v1186, 7
  %v1188 = vsub.s32 0, %v1187
  %v1189 = vrot.slane %v161, %v1188
  %v1190 = vlaneseq
  %v1191 = vshrl.u32 %v1190, 7
  %v1192 = vsub.s32 1, %v1191
  %v1193 = vrot.slane %v161, %v1192
  %v1194 = vlaneseq
  %v1195 = vshrl.u32 %v1194, 7
  %v1196 = vsub.s32 2, %v1195
  %v1197 = vrot.slane %v161, %v1196
  %v1198 = vlaneseq
  %v1199 = vshrl.u32 %v1198, 7
  %v1200 = vsub.s32 3, %v1199
  %v1201 = vrot.slane %v161, %v1200
  %v1202 = vlaneseq
  %v1203 = vshrl.u32 %v1202, 7
  %v1204 = vsub.s32 4, %v1203
  %v1205 = vrot.slane %v161, %v1204
  %v1206 = vlaneseq
  %v1207 = vshrl.u32 %v1206, 7
  %v1208 = vsub.s32 5, %v1207
  %v1209 = vrot.slane %v161, %v1208
  %v1210 = vlaneseq
  %v1211 = vshrl.u32 %v1210, 7
  %v1212 = vsub.s32 6, %v1211
  %v1213 = vrot.slane %v161, %v1212
  %v1214 = vlaneseq
  %v1215 = vshrl.u32 %v1214, 7
  %v1216 = vsub.s32 7, %v1215
  %v1217 = vrot.slane %v161, %v1216
  %v1226 = vadd.f32 %v1056, %v1189
  %v1227 = vadd.f32 %v1058, %v1193
  %v1228 = vadd.f32 %v1097, %v1197
  %v1229 = vadd.f32 %v1099, %v1201
  %v1230 = vadd.f32 %v1138, %v1205
  %v1231 = vadd.f32 %v1140, %v1209
  %v1232 = vadd.f32 %v1179, %v1213
  %v1233 = vadd.f32 %v1181, %v1217
  %v1234 = vxor.u32 %v1226, 2147483648
  %v1235 = vxor.u32 %v1227, 2147483648
  %v1236 = vmul.f32 %v1234, 1.442695
  %v1237 = vpow.pop %v1236
  %v1238 = vmul.f32 %v1235, 1.442695
  %v1239 = vpow.pop %v1238
  %v1240 = vadd.f32 %v1237, 1.0
  %v1241 = vadd.f32 %v1239, 1.0
  %v1242 = vrcp.pop %v1240
  %v1243 = vmul.f32 1.0, %v1242
  %v1244 = vrcp.pop %v1241
  %v1245 = vmul.f32 1.0, %v1244
  %v1246 = vxor.u32 %v1228, 2147483648
  %v1247 = vxor.u32 %v1229, 2147483648
  %v1248 = vmul.f32 %v1246, 1.442695
  %v1249 = vpow.pop %v1248
  %v1250 = vmul.f32 %v1247, 1.442695
  %v1251 = vpow.pop %v1250
  %v1252 = vadd.f32 %v1249, 1.0
  %v1253 = vadd.f32 %v1251, 1.0
  %v1254 = vrcp.pop %v1252
  %v1255 = vmul.f32 1.0, %v1254
  %v1256 = vrcp.pop %v1253
  %v1257 = vmul.f32 1.0, %v1256
  %v1258 = vtanh.pop %v1230
  %v1259 = vtanh.pop %v1231
  %v1260 = vxor.u32 %v1232, 2147483648
  %v1261 = vxor.u32 %v1233, 2147483648
  %v1262 = vmul.f32 %v1260, 1.442695
  %v1263 = vpow.pop %v1262
  %v1264 = vmul.f32 %v1261, 1.442695
  %v1265 = vpow.pop %v1264
  %v1266 = vadd.f32 %v1263, 1.0
  %v1267 = vadd.f32 %v1265, 1.0
  %v1268 = vrcp.pop %v1266
  %v1269 = vmul.f32 1.0, %v1268
  %v1270 = vrcp.pop %v1267
  %v1271 = vmul.f32 1.0, %v1270
  %v1272 = vmul.f32 %v1255, %v163
  %v1273 = vmul.f32 %v1257, %v164
  %v1274 = vmul.f32 %v1243, %v1258
  %v1275 = vmul.f32 %v1245, %v1259
  %v1276 = vadd.f32 %v1272, %v1274
  %v1277 = vadd.f32 %v1273, %v1275
  %v1278 = vtanh.pop %v1276
  %v1279 = vtanh.pop %v1277
  %v1280 = vmul.f32 %v1269, %v1278
  %v1281 = vmul.f32 %v1271, %v1279
  %v1282 = vpack.c.bf16 %v1280, %v1280
  %v1283 = vpack.c.bf16 %v1281, %v1281
  %s1284 = scalar_lea.vmem %s0, 4
  %v1285 = vld [vmem:[%s1284] sm:$0xf]
  %1286 = vmatprep.subr.bf16.mxu0 %v558
  %1287 = vmatpush1.bf16.msra.mxu0 %v557
  %1288 = vmatprep.subr.bf16.mxu0 %v566
  %1289 = vmatpush1.bf16.msra.mxu0 %v565
  %1290 = vmatprep.subr.bf16.mxu0 %v574
  %1291 = vmatpush1.bf16.msra.mxu0 %v573
  %1292 = vmatprep.subr.bf16.mxu0 %v582
  %1293 = vmatpush1.bf16.msra.mxu0 %v581
  %1294 = vmatprep.subr.bf16.mxu0 %v590
  %1295 = vmatpush1.bf16.msra.mxu0 %v589
  %1296 = vmatprep.subr.bf16.mxu0 %v598
  %1297 = vmatpush1.bf16.msra.mxu0 %v597
  %1298 = vmatprep.subr.bf16.mxu0 %v606
  %1299 = vmatpush1.bf16.msra.mxu0 %v605
  %1300 = vmatprep.subr.bf16.mxu0 %v614
  %1301 = vmatpush1.bf16.msra.mxu0 %v613
  %1302 = vmatprep.subr.bf16.mxu0 %v622
  %1303 = vmatpush1.bf16.msra.mxu0 %v621
  %1304 = vmatprep.subr.bf16.mxu0 %v630
  %1305 = vmatpush1.bf16.msra.mxu0 %v629
  %1306 = vmatprep.subr.bf16.mxu0 %v638
  %1307 = vmatpush1.bf16.msra.mxu0 %v637
  %1308 = vmatprep.subr.bf16.mxu0 %v646
  %1309 = vmatpush1.bf16.msra.mxu0 %v645
  %1310 = vmatprep.subr.bf16.mxu0 %v654
  %1311 = vmatpush1.bf16.msra.mxu0 %v653
  %1312 = vmatprep.subr.bf16.mxu0 %v662
  %1313 = vmatpush1.bf16.msra.mxu0 %v661
  %1314 = vmatprep.subr.bf16.mxu0 %v670
  %1315 = vmatpush1.bf16.msra.mxu0 %v669
  %1316 = vmatprep.subr.bf16.mxu0 %v678
  %1317 = vmatpush1.bf16.msra.mxu0 %v677
  %1318 = vmatprep.mubr.bf16.mxu0 %v1283
  %1319 = vmatmul.mubr.bf16.gmra.mrb[0].mxu0 %v1282
  %v1320 = vpop.f32.mrb[0].mxu0
  %v1321 = vadd.f32 0.0, %v1320
  %v1322 = vpop.f32.mrb[0].mxu0
  %v1323 = vadd.f32 0.0, %v1322
  %v1324 = vpop.f32.mrb[0].mxu0
  %v1325 = vpop.f32.mrb[0].mxu0
  %1326 = vdwg.mxu0
  %1327 = vmatprep.subr.bf16.mxu0 %v560
  %1328 = vmatpush1.bf16.msra.mxu0 %v559
  %1329 = vmatprep.subr.bf16.mxu0 %v568
  %1330 = vmatpush1.bf16.msra.mxu0 %v567
  %1331 = vmatprep.subr.bf16.mxu0 %v576
  %1332 = vmatpush1.bf16.msra.mxu0 %v575
  %1333 = vmatprep.subr.bf16.mxu0 %v584
  %1334 = vmatpush1.bf16.msra.mxu0 %v583
  %1335 = vmatprep.subr.bf16.mxu0 %v592
  %1336 = vmatpush1.bf16.msra.mxu0 %v591
  %1337 = vmatprep.subr.bf16.mxu0 %v600
  %1338 = vmatpush1.bf16.msra.mxu0 %v599
  %1339 = vmatprep.subr.bf16.mxu0 %v608
  %1340 = vmatpush1.bf16.msra.mxu0 %v607
  %1341 = vmatprep.subr.bf16.mxu0 %v616
  %1342 = vmatpush1.bf16.msra.mxu0 %v615
  %1343 = vmatprep.subr.bf16.mxu0 %v624
  %1344 = vmatpush1.bf16.msra.mxu0 %v623
  %1345 = vmatprep.subr.bf16.mxu0 %v632
  %1346 = vmatpush1.bf16.msra.mxu0 %v631
  %1347 = vmatprep.subr.bf16.mxu0 %v640
  %1348 = vmatpush1.bf16.msra.mxu0 %v639
  %1349 = vmatprep.subr.bf16.mxu0 %v648
  %1350 = vmatpush1.bf16.msra.mxu0 %v647
  %1351 = vmatprep.subr.bf16.mxu0 %v656
  %1352 = vmatpush1.bf16.msra.mxu0 %v655
  %1353 = vmatprep.subr.bf16.mxu0 %v664
  %1354 = vmatpush1.bf16.msra.mxu0 %v663
  %1355 = vmatprep.subr.bf16.mxu0 %v672
  %1356 = vmatpush1.bf16.msra.mxu0 %v671
  %1357 = vmatprep.subr.bf16.mxu0 %v680
  %1358 = vmatpush1.bf16.msra.mxu0 %v679
  %1359 = vmatprep.mubr.bf16.mxu0 %v1283
  %1360 = vmatmul.mubr.bf16.gmra.mrb[0].mxu0 %v1282
  %v1361 = vpop.f32.mrb[0].mxu0
  %v1362 = vadd.f32 0.0, %v1361
  %v1363 = vpop.f32.mrb[0].mxu0
  %v1364 = vadd.f32 0.0, %v1363
  %v1365 = vpop.f32.mrb[0].mxu0
  %v1366 = vpop.f32.mrb[0].mxu0
  %1367 = vdwg.mxu0
  %1368 = vmatprep.subr.bf16.mxu0 %v562
  %1369 = vmatpush1.bf16.msra.mxu0 %v561
  %1370 = vmatprep.subr.bf16.mxu0 %v570
  %1371 = vmatpush1.bf16.msra.mxu0 %v569
  %1372 = vmatprep.subr.bf16.mxu0 %v578
  %1373 = vmatpush1.bf16.msra.mxu0 %v577
  %1374 = vmatprep.subr.bf16.mxu0 %v586
  %1375 = vmatpush1.bf16.msra.mxu0 %v585
  %1376 = vmatprep.subr.bf16.mxu0 %v594
  %1377 = vmatpush1.bf16.msra.mxu0 %v593
  %1378 = vmatprep.subr.bf16.mxu0 %v602
  %1379 = vmatpush1.bf16.msra.mxu0 %v601
  %1380 = vmatprep.subr.bf16.mxu0 %v610
  %1381 = vmatpush1.bf16.msra.mxu0 %v609
  %1382 = vmatprep.subr.bf16.mxu0 %v618
  %1383 = vmatpush1.bf16.msra.mxu0 %v617
  %1384 = vmatprep.subr.bf16.mxu0 %v626
  %1385 = vmatpush1.bf16.msra.mxu0 %v625
  %1386 = vmatprep.subr.bf16.mxu0 %v634
  %1387 = vmatpush1.bf16.msra.mxu0 %v633
  %1388 = vmatprep.subr.bf16.mxu0 %v642
  %1389 = vmatpush1.bf16.msra.mxu0 %v641
  %1390 = vmatprep.subr.bf16.mxu0 %v650
  %1391 = vmatpush1.bf16.msra.mxu0 %v649
  %1392 = vmatprep.subr.bf16.mxu0 %v658
  %1393 = vmatpush1.bf16.msra.mxu0 %v657
  %1394 = vmatprep.subr.bf16.mxu0 %v666
  %1395 = vmatpush1.bf16.msra.mxu0 %v665
  %1396 = vmatprep.subr.bf16.mxu0 %v674
  %1397 = vmatpush1.bf16.msra.mxu0 %v673
  %1398 = vmatprep.subr.bf16.mxu0 %v682
  %1399 = vmatpush1.bf16.msra.mxu0 %v681
  %1400 = vmatprep.mubr.bf16.mxu0 %v1283
  %1401 = vmatmul.mubr.bf16.gmra.mrb[0].mxu0 %v1282
  %v1402 = vpop.f32.mrb[0].mxu0
  %v1403 = vadd.f32 0.0, %v1402
  %v1404 = vpop.f32.mrb[0].mxu0
  %v1405 = vadd.f32 0.0, %v1404
  %v1406 = vpop.f32.mrb[0].mxu0
  %v1407 = vpop.f32.mrb[0].mxu0
  %1408 = vdwg.mxu0
  %1409 = vmatprep.subr.bf16.mxu0 %v564
  %1410 = vmatpush1.bf16.msra.mxu0 %v563
  %1411 = vmatprep.subr.bf16.mxu0 %v572
  %1412 = vmatpush1.bf16.msra.mxu0 %v571
  %1413 = vmatprep.subr.bf16.mxu0 %v580
  %1414 = vmatpush1.bf16.msra.mxu0 %v579
  %1415 = vmatprep.subr.bf16.mxu0 %v588
  %1416 = vmatpush1.bf16.msra.mxu0 %v587
  %1417 = vmatprep.subr.bf16.mxu0 %v596
  %1418 = vmatpush1.bf16.msra.mxu0 %v595
  %1419 = vmatprep.subr.bf16.mxu0 %v604
  %1420 = vmatpush1.bf16.msra.mxu0 %v603
  %1421 = vmatprep.subr.bf16.mxu0 %v612
  %1422 = vmatpush1.bf16.msra.mxu0 %v611
  %1423 = vmatprep.subr.bf16.mxu0 %v620
  %1424 = vmatpush1.bf16.msra.mxu0 %v619
  %1425 = vmatprep.subr.bf16.mxu0 %v628
  %1426 = vmatpush1.bf16.msra.mxu0 %v627
  %1427 = vmatprep.subr.bf16.mxu0 %v636
  %1428 = vmatpush1.bf16.msra.mxu0 %v635
  %1429 = vmatprep.subr.bf16.mxu0 %v644
  %1430 = vmatpush1.bf16.msra.mxu0 %v643
  %1431 = vmatprep.subr.bf16.mxu0 %v652
  %1432 = vmatpush1.bf16.msra.mxu0 %v651
  %1433 = vmatprep.subr.bf16.mxu0 %v660
  %1434 = vmatpush1.bf16.msra.mxu0 %v659
  %1435 = vmatprep.subr.bf16.mxu0 %v668
  %1436 = vmatpush1.bf16.msra.mxu0 %v667
  %1437 = vmatprep.subr.bf16.mxu0 %v676
  %1438 = vmatpush1.bf16.msra.mxu0 %v675
  %1439 = vmatprep.subr.bf16.mxu0 %v684
  %1440 = vmatpush1.bf16.msra.mxu0 %v683
  %1441 = vmatprep.mubr.bf16.mxu0 %v1283
  %1442 = vmatmul.mubr.bf16.gmra.mrb[0].mxu0 %v1282
  %v1443 = vpop.f32.mrb[0].mxu0
  %v1444 = vadd.f32 0.0, %v1443
  %v1445 = vpop.f32.mrb[0].mxu0
  %v1446 = vadd.f32 0.0, %v1445
  %v1447 = vpop.f32.mrb[0].mxu0
  %v1448 = vpop.f32.mrb[0].mxu0
  %1449 = vdwg.mxu0
  %v1451 = vsel %vm1017, %v1285, 0
  %1453 = vmatprep.subr.bf16.mxu0 %v1002
  %1454 = vmatpush1.bf16.msra.mxu0 %v1001
  %1455 = vmatprep.subr.bf16.mxu0 0
  %1456 = vmatpush1.bf16.msra.mxu0 0
  %1457 = vmatprep.subr.bf16.mxu0 0
  %1458 = vmatpush1.bf16.msra.mxu0 0
  %1459 = vmatprep.subr.bf16.mxu0 0
  %1460 = vmatpush1.bf16.msra.mxu0 0
  %1461 = vmatprep.subr.bf16.mxu0 0
  %1462 = vmatpush1.bf16.msra.mxu0 0
  %1463 = vmatprep.subr.bf16.mxu0 0
  %1464 = vmatpush1.bf16.msra.mxu0 0
  %1465 = vmatprep.subr.bf16.mxu0 0
  %1466 = vmatpush1.bf16.msra.mxu0 0
  %1467 = vmatprep.subr.bf16.mxu0 0
  %1468 = vmatpush1.bf16.msra.mxu0 0
  %1469 = vmatprep.subr.bf16.mxu0 0
  %1470 = vmatpush1.bf16.msra.mxu0 0
  %1471 = vmatprep.subr.bf16.mxu0 0
  %1472 = vmatpush1.bf16.msra.mxu0 0
  %1473 = vmatprep.subr.bf16.mxu0 0
  %1474 = vmatpush1.bf16.msra.mxu0 0
  %1475 = vmatprep.subr.bf16.mxu0 0
  %1476 = vmatpush1.bf16.msra.mxu0 0
  %1477 = vmatprep.subr.bf16.mxu0 0
  %1478 = vmatpush1.bf16.msra.mxu0 0
  %1479 = vmatprep.subr.bf16.mxu0 0
  %1480 = vmatpush1.bf16.msra.mxu0 0
  %1481 = vmatprep.subr.bf16.mxu0 0
  %1482 = vmatpush1.bf16.msra.mxu0 0
  %1483 = vmatprep.subr.bf16.mxu0 0
  %1484 = vmatpush1.bf16.msra.mxu0 0
  %1485 = vmatprep.mubr.bf16.mxu0 0
  %1486 = vmatmul.mubr.bf16.gmra.mrb[0].mxu0 %v1451
  %v1487 = vpop.f32.mrb[0].mxu0
  %v1488 = vadd.f32 %v1321, %v1487
  %v1489 = vpop.f32.mrb[0].mxu0
  %v1490 = vadd.f32 %v1323, %v1489
  %v1491 = vpop.f32.mrb[0].mxu0
  %v1492 = vpop.f32.mrb[0].mxu0
  %1493 = vdwg.mxu0
  %1494 = vmatprep.subr.bf16.mxu0 %v1004
  %1495 = vmatpush1.bf16.msra.mxu0 %v1003
  %1496 = vmatprep.subr.bf16.mxu0 0
  %1497 = vmatpush1.bf16.msra.mxu0 0
  %1498 = vmatprep.subr.bf16.mxu0 0
  %1499 = vmatpush1.bf16.msra.mxu0 0
  %1500 = vmatprep.subr.bf16.mxu0 0
  %1501 = vmatpush1.bf16.msra.mxu0 0
  %1502 = vmatprep.subr.bf16.mxu0 0
  %1503 = vmatpush1.bf16.msra.mxu0 0
  %1504 = vmatprep.subr.bf16.mxu0 0
  %1505 = vmatpush1.bf16.msra.mxu0 0
  %1506 = vmatprep.subr.bf16.mxu0 0
  %1507 = vmatpush1.bf16.msra.mxu0 0
  %1508 = vmatprep.subr.bf16.mxu0 0
  %1509 = vmatpush1.bf16.msra.mxu0 0
  %1510 = vmatprep.subr.bf16.mxu0 0
  %1511 = vmatpush1.bf16.msra.mxu0 0
  %1512 = vmatprep.subr.bf16.mxu0 0
  %1513 = vmatpush1.bf16.msra.mxu0 0
  %1514 = vmatprep.subr.bf16.mxu0 0
  %1515 = vmatpush1.bf16.msra.mxu0 0
  %1516 = vmatprep.subr.bf16.mxu0 0
  %1517 = vmatpush1.bf16.msra.mxu0 0
  %1518 = vmatprep.subr.bf16.mxu0 0
  %1519 = vmatpush1.bf16.msra.mxu0 0
  %1520 = vmatprep.subr.bf16.mxu0 0
  %1521 = vmatpush1.bf16.msra.mxu0 0
  %1522 = vmatprep.subr.bf16.mxu0 0
  %1523 = vmatpush1.bf16.msra.mxu0 0
  %1524 = vmatprep.subr.bf16.mxu0 0
  %1525 = vmatpush1.bf16.msra.mxu0 0
  %1526 = vmatprep.mubr.bf16.mxu0 0
  %1527 = vmatmul.mubr.bf16.gmra.mrb[0].mxu0 %v1451
  %v1528 = vpop.f32.mrb[0].mxu0
  %v1529 = vadd.f32 %v1362, %v1528
  %v1530 = vpop.f32.mrb[0].mxu0
  %v1531 = vadd.f32 %v1364, %v1530
  %v1532 = vpop.f32.mrb[0].mxu0
  %v1533 = vpop.f32.mrb[0].mxu0
  %1534 = vdwg.mxu0
  %1535 = vmatprep.subr.bf16.mxu0 %v1006
  %1536 = vmatpush1.bf16.msra.mxu0 %v1005
  %1537 = vmatprep.subr.bf16.mxu0 0
  %1538 = vmatpush1.bf16.msra.mxu0 0
  %1539 = vmatprep.subr.bf16.mxu0 0
  %1540 = vmatpush1.bf16.msra.mxu0 0
  %1541 = vmatprep.subr.bf16.mxu0 0
  %1542 = vmatpush1.bf16.msra.mxu0 0
  %1543 = vmatprep.subr.bf16.mxu0 0
  %1544 = vmatpush1.bf16.msra.mxu0 0
  %1545 = vmatprep.subr.bf16.mxu0 0
  %1546 = vmatpush1.bf16.msra.mxu0 0
  %1547 = vmatprep.subr.bf16.mxu0 0
  %1548 = vmatpush1.bf16.msra.mxu0 0
  %1549 = vmatprep.subr.bf16.mxu0 0
  %1550 = vmatpush1.bf16.msra.mxu0 0
  %1551 = vmatprep.subr.bf16.mxu0 0
  %1552 = vmatpush1.bf16.msra.mxu0 0
  %1553 = vmatprep.subr.bf16.mxu0 0
  %1554 = vmatpush1.bf16.msra.mxu0 0
  %1555 = vmatprep.subr.bf16.mxu0 0
  %1556 = vmatpush1.bf16.msra.mxu0 0
  %1557 = vmatprep.subr.bf16.mxu0 0
  %1558 = vmatpush1.bf16.msra.mxu0 0
  %1559 = vmatprep.subr.bf16.mxu0 0
  %1560 = vmatpush1.bf16.msra.mxu0 0
  %1561 = vmatprep.subr.bf16.mxu0 0
  %1562 = vmatpush1.bf16.msra.mxu0 0
  %1563 = vmatprep.subr.bf16.mxu0 0
  %1564 = vmatpush1.bf16.msra.mxu0 0
  %1565 = vmatprep.subr.bf16.mxu0 0
  %1566 = vmatpush1.bf16.msra.mxu0 0
  %1567 = vmatprep.mubr.bf16.mxu0 0
  %1568 = vmatmul.mubr.bf16.gmra.mrb[0].mxu0 %v1451
  %v1569 = vpop.f32.mrb[0].mxu0
  %v1570 = vadd.f32 %v1403, %v1569
  %v1571 = vpop.f32.mrb[0].mxu0
  %v1572 = vadd.f32 %v1405, %v1571
  %v1573 = vpop.f32.mrb[0].mxu0
  %v1574 = vpop.f32.mrb[0].mxu0
  %1575 = vdwg.mxu0
  %1576 = vmatprep.subr.bf16.mxu0 %v1008
  %1577 = vmatpush1.bf16.msra.mxu0 %v1007
  %1578 = vmatprep.subr.bf16.mxu0 0
  %1579 = vmatpush1.bf16.msra.mxu0 0
  %1580 = vmatprep.subr.bf16.mxu0 0
  %1581 = vmatpush1.bf16.msra.mxu0 0
  %1582 = vmatprep.subr.bf16.mxu0 0
  %1583 = vmatpush1.bf16.msra.mxu0 0
  %1584 = vmatprep.subr.bf16.mxu0 0
  %1585 = vmatpush1.bf16.msra.mxu0 0
  %1586 = vmatprep.subr.bf16.mxu0 0
  %1587 = vmatpush1.bf16.msra.mxu0 0
  %1588 = vmatprep.subr.bf16.mxu0 0
  %1589 = vmatpush1.bf16.msra.mxu0 0
  %1590 = vmatprep.subr.bf16.mxu0 0
  %1591 = vmatpush1.bf16.msra.mxu0 0
  %1592 = vmatprep.subr.bf16.mxu0 0
  %1593 = vmatpush1.bf16.msra.mxu0 0
  %1594 = vmatprep.subr.bf16.mxu0 0
  %1595 = vmatpush1.bf16.msra.mxu0 0
  %1596 = vmatprep.subr.bf16.mxu0 0
  %1597 = vmatpush1.bf16.msra.mxu0 0
  %1598 = vmatprep.subr.bf16.mxu0 0
  %1599 = vmatpush1.bf16.msra.mxu0 0
  %1600 = vmatprep.subr.bf16.mxu0 0
  %1601 = vmatpush1.bf16.msra.mxu0 0
  %1602 = vmatprep.subr.bf16.mxu0 0
  %1603 = vmatpush1.bf16.msra.mxu0 0
  %1604 = vmatprep.subr.bf16.mxu0 0
  %1605 = vmatpush1.bf16.msra.mxu0 0
  %1606 = vmatprep.subr.bf16.mxu0 0
  %1607 = vmatpush1.bf16.msra.mxu0 0
  %1608 = vmatprep.mubr.bf16.mxu0 0
  %1609 = vmatmul.mubr.bf16.gmra.mrb[0].mxu0 %v1451
  %v1610 = vpop.f32.mrb[0].mxu0
  %v1611 = vadd.f32 %v1444, %v1610
  %v1612 = vpop.f32.mrb[0].mxu0
  %v1613 = vadd.f32 %v1446, %v1612
  %v1614 = vpop.f32.mrb[0].mxu0
  %v1615 = vpop.f32.mrb[0].mxu0
  %1616 = vdwg.mxu0
  %v1617 = vadd.f32 %v1488, %v1189
  %v1618 = vadd.f32 %v1490, %v1193
  %v1619 = vadd.f32 %v1529, %v1197
  %v1620 = vadd.f32 %v1531, %v1201
  %v1621 = vadd.f32 %v1570, %v1205
  %v1622 = vadd.f32 %v1572, %v1209
  %v1623 = vadd.f32 %v1611, %v1213
  %v1624 = vadd.f32 %v1613, %v1217
  %v1625 = vxor.u32 %v1617, 2147483648
  %v1626 = vxor.u32 %v1618, 2147483648
  %v1627 = vmul.f32 %v1625, 1.442695
  %v1628 = vpow.pop %v1627
  %v1629 = vmul.f32 %v1626, 1.442695
  %v1630 = vpow.pop %v1629
  %v1631 = vadd.f32 %v1628, 1.0
  %v1632 = vadd.f32 %v1630, 1.0
  %v1633 = vrcp.pop %v1631
  %v1634 = vmul.f32 1.0, %v1633
  %v1635 = vrcp.pop %v1632
  %v1636 = vmul.f32 1.0, %v1635
  %v1637 = vxor.u32 %v1619, 2147483648
  %v1638 = vxor.u32 %v1620, 2147483648
  %v1639 = vmul.f32 %v1637, 1.442695
  %v1640 = vpow.pop %v1639
  %v1641 = vmul.f32 %v1638, 1.442695
  %v1642 = vpow.pop %v1641
  %v1643 = vadd.f32 %v1640, 1.0
  %v1644 = vadd.f32 %v1642, 1.0
  %v1645 = vrcp.pop %v1643
  %v1646 = vmul.f32 1.0, %v1645
  %v1647 = vrcp.pop %v1644
  %v1648 = vmul.f32 1.0, %v1647
  %v1649 = vtanh.pop %v1621
  %v1650 = vtanh.pop %v1622
  %v1651 = vxor.u32 %v1623, 2147483648
  %v1652 = vxor.u32 %v1624, 2147483648
  %v1653 = vmul.f32 %v1651, 1.442695
  %v1654 = vpow.pop %v1653
  %v1655 = vmul.f32 %v1652, 1.442695
  %v1656 = vpow.pop %v1655
  %v1657 = vadd.f32 %v1654, 1.0
  %v1658 = vadd.f32 %v1656, 1.0
  %v1659 = vrcp.pop %v1657
  %v1660 = vmul.f32 1.0, %v1659
  %v1661 = vrcp.pop %v1658
  %v1662 = vmul.f32 1.0, %v1661
  %v1663 = vmul.f32 %v1646, %v1276
  %v1664 = vmul.f32 %v1648, %v1277
  %v1665 = vmul.f32 %v1634, %v1649
  %v1666 = vmul.f32 %v1636, %v1650
  %v1667 = vadd.f32 %v1663, %v1665
  %v1668 = vadd.f32 %v1664, %v1666
  %v1669 = vtanh.pop %v1667
  %v1670 = vtanh.pop %v1668
  %v1671 = vmul.f32 %v1660, %v1669
  %v1672 = vmul.f32 %v1662, %v1670
  %v1673 = vpack.c.bf16 %v1671, %v1671
  %v1674 = vpack.c.bf16 %v1672, %v1672
  %s1675 = scalar_lea.vmem %s0, 8
  %v1676 = vld [vmem:[%s1675] sm:$0xf]
  %1677 = vmatprep.subr.bf16.mxu0 %v558
  %1678 = vmatpush1.bf16.msra.mxu0 %v557
  %1679 = vmatprep.subr.bf16.mxu0 %v566
  %1680 = vmatpush1.bf16.msra.mxu0 %v565
  %1681 = vmatprep.subr.bf16.mxu0 %v574
  %1682 = vmatpush1.bf16.msra.mxu0 %v573
  %1683 = vmatprep.subr.bf16.mxu0 %v582
  %1684 = vmatpush1.bf16.msra.mxu0 %v581
  %1685 = vmatprep.subr.bf16.mxu0 %v590
  %1686 = vmatpush1.bf16.msra.mxu0 %v589
  %1687 = vmatprep.subr.bf16.mxu0 %v598
  %1688 = vmatpush1.bf16.msra.mxu0 %v597
  %1689 = vmatprep.subr.bf16.mxu0 %v606
  %1690 = vmatpush1.bf16.msra.mxu0 %v605
  %1691 = vmatprep.subr.bf16.mxu0 %v614
  %1692 = vmatpush1.bf16.msra.mxu0 %v613
  %1693 = vmatprep.subr.bf16.mxu0 %v622
  %1694 = vmatpush1.bf16.msra.mxu0 %v621
  %1695 = vmatprep.subr.bf16.mxu0 %v630
  %1696 = vmatpush1.bf16.msra.mxu0 %v629
  %1697 = vmatprep.subr.bf16.mxu0 %v638
  %1698 = vmatpush1.bf16.msra.mxu0 %v637
  %1699 = vmatprep.subr.bf16.mxu0 %v646
  %1700 = vmatpush1.bf16.msra.mxu0 %v645
  %1701 = vmatprep.subr.bf16.mxu0 %v654
  %1702 = vmatpush1.bf16.msra.mxu0 %v653
  %1703 = vmatprep.subr.bf16.mxu0 %v662
  %1704 = vmatpush1.bf16.msra.mxu0 %v661
  %1705 = vmatprep.subr.bf16.mxu0 %v670
  %1706 = vmatpush1.bf16.msra.mxu0 %v669
  %1707 = vmatprep.subr.bf16.mxu0 %v678
  %1708 = vmatpush1.bf16.msra.mxu0 %v677
  %1709 = vmatprep.mubr.bf16.mxu0 %v1674
  %1710 = vmatmul.mubr.bf16.gmra.mrb[0].mxu0 %v1673
  %v1711 = vpop.f32.mrb[0].mxu0
  %v1712 = vadd.f32 0.0, %v1711
  %v1713 = vpop.f32.mrb[0].mxu0
  %v1714 = vadd.f32 0.0, %v1713
  %v1715 = vpop.f32.mrb[0].mxu0
  %v1716 = vpop.f32.mrb[0].mxu0
  %1717 = vdwg.mxu0
  %1718 = vmatprep.subr.bf16.mxu0 %v560
  %1719 = vmatpush1.bf16.msra.mxu0 %v559
  %1720 = vmatprep.subr.bf16.mxu0 %v568
  %1721 = vmatpush1.bf16.msra.mxu0 %v567
  %1722 = vmatprep.subr.bf16.mxu0 %v576
  %1723 = vmatpush1.bf16.msra.mxu0 %v575
  %1724 = vmatprep.subr.bf16.mxu0 %v584
  %1725 = vmatpush1.bf16.msra.mxu0 %v583
  %1726 = vmatprep.subr.bf16.mxu0 %v592
  %1727 = vmatpush1.bf16.msra.mxu0 %v591
  %1728 = vmatprep.subr.bf16.mxu0 %v600
  %1729 = vmatpush1.bf16.msra.mxu0 %v599
  %1730 = vmatprep.subr.bf16.mxu0 %v608
  %1731 = vmatpush1.bf16.msra.mxu0 %v607
  %1732 = vmatprep.subr.bf16.mxu0 %v616
  %1733 = vmatpush1.bf16.msra.mxu0 %v615
  %1734 = vmatprep.subr.bf16.mxu0 %v624
  %1735 = vmatpush1.bf16.msra.mxu0 %v623
  %1736 = vmatprep.subr.bf16.mxu0 %v632
  %1737 = vmatpush1.bf16.msra.mxu0 %v631
  %1738 = vmatprep.subr.bf16.mxu0 %v640
  %1739 = vmatpush1.bf16.msra.mxu0 %v639
  %1740 = vmatprep.subr.bf16.mxu0 %v648
  %1741 = vmatpush1.bf16.msra.mxu0 %v647
  %1742 = vmatprep.subr.bf16.mxu0 %v656
  %1743 = vmatpush1.bf16.msra.mxu0 %v655
  %1744 = vmatprep.subr.bf16.mxu0 %v664
  %1745 = vmatpush1.bf16.msra.mxu0 %v663
  %1746 = vmatprep.subr.bf16.mxu0 %v672
  %1747 = vmatpush1.bf16.msra.mxu0 %v671
  %1748 = vmatprep.subr.bf16.mxu0 %v680
  %1749 = vmatpush1.bf16.msra.mxu0 %v679
  %1750 = vmatprep.mubr.bf16.mxu0 %v1674
  %1751 = vmatmul.mubr.bf16.gmra.mrb[0].mxu0 %v1673
  %v1752 = vpop.f32.mrb[0].mxu0
  %v1753 = vadd.f32 0.0, %v1752
  %v1754 = vpop.f32.mrb[0].mxu0
  %v1755 = vadd.f32 0.0, %v1754
  %v1756 = vpop.f32.mrb[0].mxu0
  %v1757 = vpop.f32.mrb[0].mxu0
  %1758 = vdwg.mxu0
  %1759 = vmatprep.subr.bf16.mxu0 %v562
  %1760 = vmatpush1.bf16.msra.mxu0 %v561
  %1761 = vmatprep.subr.bf16.mxu0 %v570
  %1762 = vmatpush1.bf16.msra.mxu0 %v569
  %1763 = vmatprep.subr.bf16.mxu0 %v578
  %1764 = vmatpush1.bf16.msra.mxu0 %v577
  %1765 = vmatprep.subr.bf16.mxu0 %v586
  %1766 = vmatpush1.bf16.msra.mxu0 %v585
  %1767 = vmatprep.subr.bf16.mxu0 %v594
  %1768 = vmatpush1.bf16.msra.mxu0 %v593
  %1769 = vmatprep.subr.bf16.mxu0 %v602
  %1770 = vmatpush1.bf16.msra.mxu0 %v601
  %1771 = vmatprep.subr.bf16.mxu0 %v610
  %1772 = vmatpush1.bf16.msra.mxu0 %v609
  %1773 = vmatprep.subr.bf16.mxu0 %v618
  %1774 = vmatpush1.bf16.msra.mxu0 %v617
  %1775 = vmatprep.subr.bf16.mxu0 %v626
  %1776 = vmatpush1.bf16.msra.mxu0 %v625
  %1777 = vmatprep.subr.bf16.mxu0 %v634
  %1778 = vmatpush1.bf16.msra.mxu0 %v633
  %1779 = vmatprep.subr.bf16.mxu0 %v642
  %1780 = vmatpush1.bf16.msra.mxu0 %v641
  %1781 = vmatprep.subr.bf16.mxu0 %v650
  %1782 = vmatpush1.bf16.msra.mxu0 %v649
  %1783 = vmatprep.subr.bf16.mxu0 %v658
  %1784 = vmatpush1.bf16.msra.mxu0 %v657
  %1785 = vmatprep.subr.bf16.mxu0 %v666
  %1786 = vmatpush1.bf16.msra.mxu0 %v665
  %1787 = vmatprep.subr.bf16.mxu0 %v674
  %1788 = vmatpush1.bf16.msra.mxu0 %v673
  %1789 = vmatprep.subr.bf16.mxu0 %v682
  %1790 = vmatpush1.bf16.msra.mxu0 %v681
  %1791 = vmatprep.mubr.bf16.mxu0 %v1674
  %1792 = vmatmul.mubr.bf16.gmra.mrb[0].mxu0 %v1673
  %v1793 = vpop.f32.mrb[0].mxu0
  %v1794 = vadd.f32 0.0, %v1793
  %v1795 = vpop.f32.mrb[0].mxu0
  %v1796 = vadd.f32 0.0, %v1795
  %v1797 = vpop.f32.mrb[0].mxu0
  %v1798 = vpop.f32.mrb[0].mxu0
  %1799 = vdwg.mxu0
  %1800 = vmatprep.subr.bf16.mxu0 %v564
  %1801 = vmatpush1.bf16.msra.mxu0 %v563
  %1802 = vmatprep.subr.bf16.mxu0 %v572
  %1803 = vmatpush1.bf16.msra.mxu0 %v571
  %1804 = vmatprep.subr.bf16.mxu0 %v580
  %1805 = vmatpush1.bf16.msra.mxu0 %v579
  %1806 = vmatprep.subr.bf16.mxu0 %v588
  %1807 = vmatpush1.bf16.msra.mxu0 %v587
  %1808 = vmatprep.subr.bf16.mxu0 %v596
  %1809 = vmatpush1.bf16.msra.mxu0 %v595
  %1810 = vmatprep.subr.bf16.mxu0 %v604
  %1811 = vmatpush1.bf16.msra.mxu0 %v603
  %1812 = vmatprep.subr.bf16.mxu0 %v612
  %1813 = vmatpush1.bf16.msra.mxu0 %v611
  %1814 = vmatprep.subr.bf16.mxu0 %v620
  %1815 = vmatpush1.bf16.msra.mxu0 %v619
  %1816 = vmatprep.subr.bf16.mxu0 %v628
  %1817 = vmatpush1.bf16.msra.mxu0 %v627
  %1818 = vmatprep.subr.bf16.mxu0 %v636
  %1819 = vmatpush1.bf16.msra.mxu0 %v635
  %1820 = vmatprep.subr.bf16.mxu0 %v644
  %1821 = vmatpush1.bf16.msra.mxu0 %v643
  %1822 = vmatprep.subr.bf16.mxu0 %v652
  %1823 = vmatpush1.bf16.msra.mxu0 %v651
  %1824 = vmatprep.subr.bf16.mxu0 %v660
  %1825 = vmatpush1.bf16.msra.mxu0 %v659
  %1826 = vmatprep.subr.bf16.mxu0 %v668
  %1827 = vmatpush1.bf16.msra.mxu0 %v667
  %1828 = vmatprep.subr.bf16.mxu0 %v676
  %1829 = vmatpush1.bf16.msra.mxu0 %v675
  %1830 = vmatprep.subr.bf16.mxu0 %v684
  %1831 = vmatpush1.bf16.msra.mxu0 %v683
  %1832 = vmatprep.mubr.bf16.mxu0 %v1674
  %1833 = vmatmul.mubr.bf16.gmra.mrb[0].mxu0 %v1673
  %v1834 = vpop.f32.mrb[0].mxu0
  %v1835 = vadd.f32 0.0, %v1834
  %v1836 = vpop.f32.mrb[0].mxu0
  %v1837 = vadd.f32 0.0, %v1836
  %v1838 = vpop.f32.mrb[0].mxu0
  %v1839 = vpop.f32.mrb[0].mxu0
  %1840 = vdwg.mxu0
  %v1842 = vsel %vm1017, %v1676, 0
  %1844 = vmatprep.subr.bf16.mxu0 %v1002
  %1845 = vmatpush1.bf16.msra.mxu0 %v1001
  %1846 = vmatprep.subr.bf16.mxu0 0
  %1847 = vmatpush1.bf16.msra.mxu0 0
  %1848 = vmatprep.subr.bf16.mxu0 0
  %1849 = vmatpush1.bf16.msra.mxu0 0
  %1850 = vmatprep.subr.bf16.mxu0 0
  %1851 = vmatpush1.bf16.msra.mxu0 0
  %1852 = vmatprep.subr.bf16.mxu0 0
  %1853 = vmatpush1.bf16.msra.mxu0 0
  %1854 = vmatprep.subr.bf16.mxu0 0
  %1855 = vmatpush1.bf16.msra.mxu0 0
  %1856 = vmatprep.subr.bf16.mxu0 0
  %1857 = vmatpush1.bf16.msra.mxu0 0
  %1858 = vmatprep.subr.bf16.mxu0 0
  %1859 = vmatpush1.bf16.msra.mxu0 0
  %1860 = vmatprep.subr.bf16.mxu0 0
  %1861 = vmatpush1.bf16.msra.mxu0 0
  %1862 = vmatprep.subr.bf16.mxu0 0
  %1863 = vmatpush1.bf16.msra.mxu0 0
  %1864 = vmatprep.subr.bf16.mxu0 0
  %1865 = vmatpush1.bf16.msra.mxu0 0
  %1866 = vmatprep.subr.bf16.mxu0 0
  %1867 = vmatpush1.bf16.msra.mxu0 0
  %1868 = vmatprep.subr.bf16.mxu0 0
  %1869 = vmatpush1.bf16.msra.mxu0 0
  %1870 = vmatprep.subr.bf16.mxu0 0
  %1871 = vmatpush1.bf16.msra.mxu0 0
  %1872 = vmatprep.subr.bf16.mxu0 0
  %1873 = vmatpush1.bf16.msra.mxu0 0
  %1874 = vmatprep.subr.bf16.mxu0 0
  %1875 = vmatpush1.bf16.msra.mxu0 0
  %1876 = vmatprep.mubr.bf16.mxu0 0
  %1877 = vmatmul.mubr.bf16.gmra.mrb[0].mxu0 %v1842
  %v1878 = vpop.f32.mrb[0].mxu0
  %v1879 = vadd.f32 %v1712, %v1878
  %v1880 = vpop.f32.mrb[0].mxu0
  %v1881 = vadd.f32 %v1714, %v1880
  %v1882 = vpop.f32.mrb[0].mxu0
  %v1883 = vpop.f32.mrb[0].mxu0
  %1884 = vdwg.mxu0
  %1885 = vmatprep.subr.bf16.mxu0 %v1004
  %1886 = vmatpush1.bf16.msra.mxu0 %v1003
  %1887 = vmatprep.subr.bf16.mxu0 0
  %1888 = vmatpush1.bf16.msra.mxu0 0
  %1889 = vmatprep.subr.bf16.mxu0 0
  %1890 = vmatpush1.bf16.msra.mxu0 0
  %1891 = vmatprep.subr.bf16.mxu0 0
  %1892 = vmatpush1.bf16.msra.mxu0 0
  %1893 = vmatprep.subr.bf16.mxu0 0
  %1894 = vmatpush1.bf16.msra.mxu0 0
  %1895 = vmatprep.subr.bf16.mxu0 0
  %1896 = vmatpush1.bf16.msra.mxu0 0
  %1897 = vmatprep.subr.bf16.mxu0 0
  %1898 = vmatpush1.bf16.msra.mxu0 0
  %1899 = vmatprep.subr.bf16.mxu0 0
  %1900 = vmatpush1.bf16.msra.mxu0 0
  %1901 = vmatprep.subr.bf16.mxu0 0
  %1902 = vmatpush1.bf16.msra.mxu0 0
  %1903 = vmatprep.subr.bf16.mxu0 0
  %1904 = vmatpush1.bf16.msra.mxu0 0
  %1905 = vmatprep.subr.bf16.mxu0 0
  %1906 = vmatpush1.bf16.msra.mxu0 0
  %1907 = vmatprep.subr.bf16.mxu0 0
  %1908 = vmatpush1.bf16.msra.mxu0 0
  %1909 = vmatprep.subr.bf16.mxu0 0
  %1910 = vmatpush1.bf16.msra.mxu0 0
  %1911 = vmatprep.subr.bf16.mxu0 0
  %1912 = vmatpush1.bf16.msra.mxu0 0
  %1913 = vmatprep.subr.bf16.mxu0 0
  %1914 = vmatpush1.bf16.msra.mxu0 0
  %1915 = vmatprep.subr.bf16.mxu0 0
  %1916 = vmatpush1.bf16.msra.mxu0 0
  %1917 = vmatprep.mubr.bf16.mxu0 0
  %1918 = vmatmul.mubr.bf16.gmra.mrb[0].mxu0 %v1842
  %v1919 = vpop.f32.mrb[0].mxu0
  %v1920 = vadd.f32 %v1753, %v1919
  %v1921 = vpop.f32.mrb[0].mxu0
  %v1922 = vadd.f32 %v1755, %v1921
  %v1923 = vpop.f32.mrb[0].mxu0
  %v1924 = vpop.f32.mrb[0].mxu0
  %1925 = vdwg.mxu0
  %1926 = vmatprep.subr.bf16.mxu0 %v1006
  %1927 = vmatpush1.bf16.msra.mxu0 %v1005
  %1928 = vmatprep.subr.bf16.mxu0 0
  %1929 = vmatpush1.bf16.msra.mxu0 0
  %1930 = vmatprep.subr.bf16.mxu0 0
  %1931 = vmatpush1.bf16.msra.mxu0 0
  %1932 = vmatprep.subr.bf16.mxu0 0
  %1933 = vmatpush1.bf16.msra.mxu0 0
  %1934 = vmatprep.subr.bf16.mxu0 0
  %1935 = vmatpush1.bf16.msra.mxu0 0
  %1936 = vmatprep.subr.bf16.mxu0 0
  %1937 = vmatpush1.bf16.msra.mxu0 0
  %1938 = vmatprep.subr.bf16.mxu0 0
  %1939 = vmatpush1.bf16.msra.mxu0 0
  %1940 = vmatprep.subr.bf16.mxu0 0
  %1941 = vmatpush1.bf16.msra.mxu0 0
  %1942 = vmatprep.subr.bf16.mxu0 0
  %1943 = vmatpush1.bf16.msra.mxu0 0
  %1944 = vmatprep.subr.bf16.mxu0 0
  %1945 = vmatpush1.bf16.msra.mxu0 0
  %1946 = vmatprep.subr.bf16.mxu0 0
  %1947 = vmatpush1.bf16.msra.mxu0 0
  %1948 = vmatprep.subr.bf16.mxu0 0
  %1949 = vmatpush1.bf16.msra.mxu0 0
  %1950 = vmatprep.subr.bf16.mxu0 0
  %1951 = vmatpush1.bf16.msra.mxu0 0
  %1952 = vmatprep.subr.bf16.mxu0 0
  %1953 = vmatpush1.bf16.msra.mxu0 0
  %1954 = vmatprep.subr.bf16.mxu0 0
  %1955 = vmatpush1.bf16.msra.mxu0 0
  %1956 = vmatprep.subr.bf16.mxu0 0
  %1957 = vmatpush1.bf16.msra.mxu0 0
  %1958 = vmatprep.mubr.bf16.mxu0 0
  %1959 = vmatmul.mubr.bf16.gmra.mrb[0].mxu0 %v1842
  %v1960 = vpop.f32.mrb[0].mxu0
  %v1961 = vadd.f32 %v1794, %v1960
  %v1962 = vpop.f32.mrb[0].mxu0
  %v1963 = vadd.f32 %v1796, %v1962
  %v1964 = vpop.f32.mrb[0].mxu0
  %v1965 = vpop.f32.mrb[0].mxu0
  %1966 = vdwg.mxu0
  %1967 = vmatprep.subr.bf16.mxu0 %v1008
  %1968 = vmatpush1.bf16.msra.mxu0 %v1007
  %1969 = vmatprep.subr.bf16.mxu0 0
  %1970 = vmatpush1.bf16.msra.mxu0 0
  %1971 = vmatprep.subr.bf16.mxu0 0
  %1972 = vmatpush1.bf16.msra.mxu0 0
  %1973 = vmatprep.subr.bf16.mxu0 0
  %1974 = vmatpush1.bf16.msra.mxu0 0
  %1975 = vmatprep.subr.bf16.mxu0 0
  %1976 = vmatpush1.bf16.msra.mxu0 0
  %1977 = vmatprep.subr.bf16.mxu0 0
  %1978 = vmatpush1.bf16.msra.mxu0 0
  %1979 = vmatprep.subr.bf16.mxu0 0
  %1980 = vmatpush1.bf16.msra.mxu0 0
  %1981 = vmatprep.subr.bf16.mxu0 0
  %1982 = vmatpush1.bf16.msra.mxu0 0
  %1983 = vmatprep.subr.bf16.mxu0 0
  %1984 = vmatpush1.bf16.msra.mxu0 0
  %1985 = vmatprep.subr.bf16.mxu0 0
  %1986 = vmatpush1.bf16.msra.mxu0 0
  %1987 = vmatprep.subr.bf16.mxu0 0
  %1988 = vmatpush1.bf16.msra.mxu0 0
  %1989 = vmatprep.subr.bf16.mxu0 0
  %1990 = vmatpush1.bf16.msra.mxu0 0
  %1991 = vmatprep.subr.bf16.mxu0 0
  %1992 = vmatpush1.bf16.msra.mxu0 0
  %1993 = vmatprep.subr.bf16.mxu0 0
  %1994 = vmatpush1.bf16.msra.mxu0 0
  %1995 = vmatprep.subr.bf16.mxu0 0
  %1996 = vmatpush1.bf16.msra.mxu0 0
  %1997 = vmatprep.subr.bf16.mxu0 0
  %1998 = vmatpush1.bf16.msra.mxu0 0
  %1999 = vmatprep.mubr.bf16.mxu0 0
  %2000 = vmatmul.mubr.bf16.gmra.mrb[0].mxu0 %v1842
  %v2001 = vpop.f32.mrb[0].mxu0
  %v2002 = vadd.f32 %v1835, %v2001
  %v2003 = vpop.f32.mrb[0].mxu0
  %v2004 = vadd.f32 %v1837, %v2003
  %v2005 = vpop.f32.mrb[0].mxu0
  %v2006 = vpop.f32.mrb[0].mxu0
  %2007 = vdwg.mxu0
  %v2008 = vadd.f32 %v1879, %v1189
  %v2009 = vadd.f32 %v1881, %v1193
  %v2010 = vadd.f32 %v1920, %v1197
  %v2011 = vadd.f32 %v1922, %v1201
  %v2012 = vadd.f32 %v1961, %v1205
  %v2013 = vadd.f32 %v1963, %v1209
  %v2014 = vadd.f32 %v2002, %v1213
  %v2015 = vadd.f32 %v2004, %v1217
  %v2016 = vxor.u32 %v2008, 2147483648
  %v2017 = vxor.u32 %v2009, 2147483648
  %v2018 = vmul.f32 %v2016, 1.442695
  %v2019 = vpow.pop %v2018
  %v2020 = vmul.f32 %v2017, 1.442695
  %v2021 = vpow.pop %v2020
  %v2022 = vadd.f32 %v2019, 1.0
  %v2023 = vadd.f32 %v2021, 1.0
  %v2024 = vrcp.pop %v2022
  %v2025 = vmul.f32 1.0, %v2024
  %v2026 = vrcp.pop %v2023
  %v2027 = vmul.f32 1.0, %v2026
  %v2028 = vxor.u32 %v2010, 2147483648
  %v2029 = vxor.u32 %v2011, 2147483648
  %v2030 = vmul.f32 %v2028, 1.442695
  %v2031 = vpow.pop %v2030
  %v2032 = vmul.f32 %v2029, 1.442695
  %v2033 = vpow.pop %v2032
  %v2034 = vadd.f32 %v2031, 1.0
  %v2035 = vadd.f32 %v2033, 1.0
  %v2036 = vrcp.pop %v2034
  %v2037 = vmul.f32 1.0, %v2036
  %v2038 = vrcp.pop %v2035
  %v2039 = vmul.f32 1.0, %v2038
  %v2040 = vtanh.pop %v2012
  %v2041 = vtanh.pop %v2013
  %v2042 = vxor.u32 %v2014, 2147483648
  %v2043 = vxor.u32 %v2015, 2147483648
  %v2044 = vmul.f32 %v2042, 1.442695
  %v2045 = vpow.pop %v2044
  %v2046 = vmul.f32 %v2043, 1.442695
  %v2047 = vpow.pop %v2046
  %v2048 = vadd.f32 %v2045, 1.0
  %v2049 = vadd.f32 %v2047, 1.0
  %v2050 = vrcp.pop %v2048
  %v2051 = vmul.f32 1.0, %v2050
  %v2052 = vrcp.pop %v2049
  %v2053 = vmul.f32 1.0, %v2052
  %v2054 = vmul.f32 %v2037, %v1667
  %v2055 = vmul.f32 %v2039, %v1668
  %v2056 = vmul.f32 %v2025, %v2040
  %v2057 = vmul.f32 %v2027, %v2041
  %v2058 = vadd.f32 %v2054, %v2056
  %v2059 = vadd.f32 %v2055, %v2057
  %v2060 = vtanh.pop %v2058
  %v2061 = vtanh.pop %v2059
  %v2062 = vmul.f32 %v2051, %v2060
  %v2063 = vmul.f32 %v2053, %v2061
  %v2064 = vpack.c.bf16 %v2062, %v2062
  %v2065 = vpack.c.bf16 %v2063, %v2063
  %s2066 = scalar_lea.vmem %s0, 12
  %v2067 = vld [vmem:[%s2066] sm:$0xf]
  %2068 = vmatprep.subr.bf16.mxu0 %v558
  %2069 = vmatpush1.bf16.msra.mxu0 %v557
  %2070 = vmatprep.subr.bf16.mxu0 %v566
  %2071 = vmatpush1.bf16.msra.mxu0 %v565
  %2072 = vmatprep.subr.bf16.mxu0 %v574
  %2073 = vmatpush1.bf16.msra.mxu0 %v573
  %2074 = vmatprep.subr.bf16.mxu0 %v582
  %2075 = vmatpush1.bf16.msra.mxu0 %v581
  %2076 = vmatprep.subr.bf16.mxu0 %v590
  %2077 = vmatpush1.bf16.msra.mxu0 %v589
  %2078 = vmatprep.subr.bf16.mxu0 %v598
  %2079 = vmatpush1.bf16.msra.mxu0 %v597
  %2080 = vmatprep.subr.bf16.mxu0 %v606
  %2081 = vmatpush1.bf16.msra.mxu0 %v605
  %2082 = vmatprep.subr.bf16.mxu0 %v614
  %2083 = vmatpush1.bf16.msra.mxu0 %v613
  %2084 = vmatprep.subr.bf16.mxu0 %v622
  %2085 = vmatpush1.bf16.msra.mxu0 %v621
  %2086 = vmatprep.subr.bf16.mxu0 %v630
  %2087 = vmatpush1.bf16.msra.mxu0 %v629
  %2088 = vmatprep.subr.bf16.mxu0 %v638
  %2089 = vmatpush1.bf16.msra.mxu0 %v637
  %2090 = vmatprep.subr.bf16.mxu0 %v646
  %2091 = vmatpush1.bf16.msra.mxu0 %v645
  %2092 = vmatprep.subr.bf16.mxu0 %v654
  %2093 = vmatpush1.bf16.msra.mxu0 %v653
  %2094 = vmatprep.subr.bf16.mxu0 %v662
  %2095 = vmatpush1.bf16.msra.mxu0 %v661
  %2096 = vmatprep.subr.bf16.mxu0 %v670
  %2097 = vmatpush1.bf16.msra.mxu0 %v669
  %2098 = vmatprep.subr.bf16.mxu0 %v678
  %2099 = vmatpush1.bf16.msra.mxu0 %v677
  %2100 = vmatprep.mubr.bf16.mxu0 %v2065
  %2101 = vmatmul.mubr.bf16.gmra.mrb[0].mxu0 %v2064
  %v2102 = vpop.f32.mrb[0].mxu0
  %v2103 = vadd.f32 0.0, %v2102
  %v2104 = vpop.f32.mrb[0].mxu0
  %v2105 = vadd.f32 0.0, %v2104
  %v2106 = vpop.f32.mrb[0].mxu0
  %v2107 = vpop.f32.mrb[0].mxu0
  %2108 = vdwg.mxu0
  %2109 = vmatprep.subr.bf16.mxu0 %v560
  %2110 = vmatpush1.bf16.msra.mxu0 %v559
  %2111 = vmatprep.subr.bf16.mxu0 %v568
  %2112 = vmatpush1.bf16.msra.mxu0 %v567
  %2113 = vmatprep.subr.bf16.mxu0 %v576
  %2114 = vmatpush1.bf16.msra.mxu0 %v575
  %2115 = vmatprep.subr.bf16.mxu0 %v584
  %2116 = vmatpush1.bf16.msra.mxu0 %v583
  %2117 = vmatprep.subr.bf16.mxu0 %v592
  %2118 = vmatpush1.bf16.msra.mxu0 %v591
  %2119 = vmatprep.subr.bf16.mxu0 %v600
  %2120 = vmatpush1.bf16.msra.mxu0 %v599
  %2121 = vmatprep.subr.bf16.mxu0 %v608
  %2122 = vmatpush1.bf16.msra.mxu0 %v607
  %2123 = vmatprep.subr.bf16.mxu0 %v616
  %2124 = vmatpush1.bf16.msra.mxu0 %v615
  %2125 = vmatprep.subr.bf16.mxu0 %v624
  %2126 = vmatpush1.bf16.msra.mxu0 %v623
  %2127 = vmatprep.subr.bf16.mxu0 %v632
  %2128 = vmatpush1.bf16.msra.mxu0 %v631
  %2129 = vmatprep.subr.bf16.mxu0 %v640
  %2130 = vmatpush1.bf16.msra.mxu0 %v639
  %2131 = vmatprep.subr.bf16.mxu0 %v648
  %2132 = vmatpush1.bf16.msra.mxu0 %v647
  %2133 = vmatprep.subr.bf16.mxu0 %v656
  %2134 = vmatpush1.bf16.msra.mxu0 %v655
  %2135 = vmatprep.subr.bf16.mxu0 %v664
  %2136 = vmatpush1.bf16.msra.mxu0 %v663
  %2137 = vmatprep.subr.bf16.mxu0 %v672
  %2138 = vmatpush1.bf16.msra.mxu0 %v671
  %2139 = vmatprep.subr.bf16.mxu0 %v680
  %2140 = vmatpush1.bf16.msra.mxu0 %v679
  %2141 = vmatprep.mubr.bf16.mxu0 %v2065
  %2142 = vmatmul.mubr.bf16.gmra.mrb[0].mxu0 %v2064
  %v2143 = vpop.f32.mrb[0].mxu0
  %v2144 = vadd.f32 0.0, %v2143
  %v2145 = vpop.f32.mrb[0].mxu0
  %v2146 = vadd.f32 0.0, %v2145
  %v2147 = vpop.f32.mrb[0].mxu0
  %v2148 = vpop.f32.mrb[0].mxu0
  %2149 = vdwg.mxu0
  %2150 = vmatprep.subr.bf16.mxu0 %v562
  %2151 = vmatpush1.bf16.msra.mxu0 %v561
  %2152 = vmatprep.subr.bf16.mxu0 %v570
  %2153 = vmatpush1.bf16.msra.mxu0 %v569
  %2154 = vmatprep.subr.bf16.mxu0 %v578
  %2155 = vmatpush1.bf16.msra.mxu0 %v577
  %2156 = vmatprep.subr.bf16.mxu0 %v586
  %2157 = vmatpush1.bf16.msra.mxu0 %v585
  %2158 = vmatprep.subr.bf16.mxu0 %v594
  %2159 = vmatpush1.bf16.msra.mxu0 %v593
  %2160 = vmatprep.subr.bf16.mxu0 %v602
  %2161 = vmatpush1.bf16.msra.mxu0 %v601
  %2162 = vmatprep.subr.bf16.mxu0 %v610
  %2163 = vmatpush1.bf16.msra.mxu0 %v609
  %2164 = vmatprep.subr.bf16.mxu0 %v618
  %2165 = vmatpush1.bf16.msra.mxu0 %v617
  %2166 = vmatprep.subr.bf16.mxu0 %v626
  %2167 = vmatpush1.bf16.msra.mxu0 %v625
  %2168 = vmatprep.subr.bf16.mxu0 %v634
  %2169 = vmatpush1.bf16.msra.mxu0 %v633
  %2170 = vmatprep.subr.bf16.mxu0 %v642
  %2171 = vmatpush1.bf16.msra.mxu0 %v641
  %2172 = vmatprep.subr.bf16.mxu0 %v650
  %2173 = vmatpush1.bf16.msra.mxu0 %v649
  %2174 = vmatprep.subr.bf16.mxu0 %v658
  %2175 = vmatpush1.bf16.msra.mxu0 %v657
  %2176 = vmatprep.subr.bf16.mxu0 %v666
  %2177 = vmatpush1.bf16.msra.mxu0 %v665
  %2178 = vmatprep.subr.bf16.mxu0 %v674
  %2179 = vmatpush1.bf16.msra.mxu0 %v673
  %2180 = vmatprep.subr.bf16.mxu0 %v682
  %2181 = vmatpush1.bf16.msra.mxu0 %v681
  %2182 = vmatprep.mubr.bf16.mxu0 %v2065
  %2183 = vmatmul.mubr.bf16.gmra.mrb[0].mxu0 %v2064
  %v2184 = vpop.f32.mrb[0].mxu0
  %v2185 = vadd.f32 0.0, %v2184
  %v2186 = vpop.f32.mrb[0].mxu0
  %v2187 = vadd.f32 0.0, %v2186
  %v2188 = vpop.f32.mrb[0].mxu0
  %v2189 = vpop.f32.mrb[0].mxu0
  %2190 = vdwg.mxu0
  %2191 = vmatprep.subr.bf16.mxu0 %v564
  %2192 = vmatpush1.bf16.msra.mxu0 %v563
  %2193 = vmatprep.subr.bf16.mxu0 %v572
  %2194 = vmatpush1.bf16.msra.mxu0 %v571
  %2195 = vmatprep.subr.bf16.mxu0 %v580
  %2196 = vmatpush1.bf16.msra.mxu0 %v579
  %2197 = vmatprep.subr.bf16.mxu0 %v588
  %2198 = vmatpush1.bf16.msra.mxu0 %v587
  %2199 = vmatprep.subr.bf16.mxu0 %v596
  %2200 = vmatpush1.bf16.msra.mxu0 %v595
  %2201 = vmatprep.subr.bf16.mxu0 %v604
  %2202 = vmatpush1.bf16.msra.mxu0 %v603
  %2203 = vmatprep.subr.bf16.mxu0 %v612
  %2204 = vmatpush1.bf16.msra.mxu0 %v611
  %2205 = vmatprep.subr.bf16.mxu0 %v620
  %2206 = vmatpush1.bf16.msra.mxu0 %v619
  %2207 = vmatprep.subr.bf16.mxu0 %v628
  %2208 = vmatpush1.bf16.msra.mxu0 %v627
  %2209 = vmatprep.subr.bf16.mxu0 %v636
  %2210 = vmatpush1.bf16.msra.mxu0 %v635
  %2211 = vmatprep.subr.bf16.mxu0 %v644
  %2212 = vmatpush1.bf16.msra.mxu0 %v643
  %2213 = vmatprep.subr.bf16.mxu0 %v652
  %2214 = vmatpush1.bf16.msra.mxu0 %v651
  %2215 = vmatprep.subr.bf16.mxu0 %v660
  %2216 = vmatpush1.bf16.msra.mxu0 %v659
  %2217 = vmatprep.subr.bf16.mxu0 %v668
  %2218 = vmatpush1.bf16.msra.mxu0 %v667
  %2219 = vmatprep.subr.bf16.mxu0 %v676
  %2220 = vmatpush1.bf16.msra.mxu0 %v675
  %2221 = vmatprep.subr.bf16.mxu0 %v684
  %2222 = vmatpush1.bf16.msra.mxu0 %v683
  %2223 = vmatprep.mubr.bf16.mxu0 %v2065
  %2224 = vmatmul.mubr.bf16.gmra.mrb[0].mxu0 %v2064
  %v2225 = vpop.f32.mrb[0].mxu0
  %v2226 = vadd.f32 0.0, %v2225
  %v2227 = vpop.f32.mrb[0].mxu0
  %v2228 = vadd.f32 0.0, %v2227
  %v2229 = vpop.f32.mrb[0].mxu0
  %v2230 = vpop.f32.mrb[0].mxu0
  %2231 = vdwg.mxu0
  %v2233 = vsel %vm1017, %v2067, 0
  %2235 = vmatprep.subr.bf16.mxu0 %v1002
  %2236 = vmatpush1.bf16.msra.mxu0 %v1001
  %2237 = vmatprep.subr.bf16.mxu0 0
  %2238 = vmatpush1.bf16.msra.mxu0 0
  %2239 = vmatprep.subr.bf16.mxu0 0
  %2240 = vmatpush1.bf16.msra.mxu0 0
  %2241 = vmatprep.subr.bf16.mxu0 0
  %2242 = vmatpush1.bf16.msra.mxu0 0
  %2243 = vmatprep.subr.bf16.mxu0 0
  %2244 = vmatpush1.bf16.msra.mxu0 0
  %2245 = vmatprep.subr.bf16.mxu0 0
  %2246 = vmatpush1.bf16.msra.mxu0 0
  %2247 = vmatprep.subr.bf16.mxu0 0
  %2248 = vmatpush1.bf16.msra.mxu0 0
  %2249 = vmatprep.subr.bf16.mxu0 0
  %2250 = vmatpush1.bf16.msra.mxu0 0
  %2251 = vmatprep.subr.bf16.mxu0 0
  %2252 = vmatpush1.bf16.msra.mxu0 0
  %2253 = vmatprep.subr.bf16.mxu0 0
  %2254 = vmatpush1.bf16.msra.mxu0 0
  %2255 = vmatprep.subr.bf16.mxu0 0
  %2256 = vmatpush1.bf16.msra.mxu0 0
  %2257 = vmatprep.subr.bf16.mxu0 0
  %2258 = vmatpush1.bf16.msra.mxu0 0
  %2259 = vmatprep.subr.bf16.mxu0 0
  %2260 = vmatpush1.bf16.msra.mxu0 0
  %2261 = vmatprep.subr.bf16.mxu0 0
  %2262 = vmatpush1.bf16.msra.mxu0 0
  %2263 = vmatprep.subr.bf16.mxu0 0
  %2264 = vmatpush1.bf16.msra.mxu0 0
  %2265 = vmatprep.subr.bf16.mxu0 0
  %2266 = vmatpush1.bf16.msra.mxu0 0
  %2267 = vmatprep.mubr.bf16.mxu0 0
  %2268 = vmatmul.mubr.bf16.gmra.mrb[0].mxu0 %v2233
  %v2269 = vpop.f32.mrb[0].mxu0
  %v2270 = vadd.f32 %v2103, %v2269
  %v2271 = vpop.f32.mrb[0].mxu0
  %v2272 = vadd.f32 %v2105, %v2271
  %v2273 = vpop.f32.mrb[0].mxu0
  %v2274 = vpop.f32.mrb[0].mxu0
  %2275 = vdwg.mxu0
  %2276 = vmatprep.subr.bf16.mxu0 %v1004
  %2277 = vmatpush1.bf16.msra.mxu0 %v1003
  %2278 = vmatprep.subr.bf16.mxu0 0
  %2279 = vmatpush1.bf16.msra.mxu0 0
  %2280 = vmatprep.subr.bf16.mxu0 0
  %2281 = vmatpush1.bf16.msra.mxu0 0
  %2282 = vmatprep.subr.bf16.mxu0 0
  %2283 = vmatpush1.bf16.msra.mxu0 0
  %2284 = vmatprep.subr.bf16.mxu0 0
  %2285 = vmatpush1.bf16.msra.mxu0 0
  %2286 = vmatprep.subr.bf16.mxu0 0
  %2287 = vmatpush1.bf16.msra.mxu0 0
  %2288 = vmatprep.subr.bf16.mxu0 0
  %2289 = vmatpush1.bf16.msra.mxu0 0
  %2290 = vmatprep.subr.bf16.mxu0 0
  %2291 = vmatpush1.bf16.msra.mxu0 0
  %2292 = vmatprep.subr.bf16.mxu0 0
  %2293 = vmatpush1.bf16.msra.mxu0 0
  %2294 = vmatprep.subr.bf16.mxu0 0
  %2295 = vmatpush1.bf16.msra.mxu0 0
  %2296 = vmatprep.subr.bf16.mxu0 0
  %2297 = vmatpush1.bf16.msra.mxu0 0
  %2298 = vmatprep.subr.bf16.mxu0 0
  %2299 = vmatpush1.bf16.msra.mxu0 0
  %2300 = vmatprep.subr.bf16.mxu0 0
  %2301 = vmatpush1.bf16.msra.mxu0 0
  %2302 = vmatprep.subr.bf16.mxu0 0
  %2303 = vmatpush1.bf16.msra.mxu0 0
  %2304 = vmatprep.subr.bf16.mxu0 0
  %2305 = vmatpush1.bf16.msra.mxu0 0
  %2306 = vmatprep.subr.bf16.mxu0 0
  %2307 = vmatpush1.bf16.msra.mxu0 0
  %2308 = vmatprep.mubr.bf16.mxu0 0
  %2309 = vmatmul.mubr.bf16.gmra.mrb[0].mxu0 %v2233
  %v2310 = vpop.f32.mrb[0].mxu0
  %v2311 = vadd.f32 %v2144, %v2310
  %v2312 = vpop.f32.mrb[0].mxu0
  %v2313 = vadd.f32 %v2146, %v2312
  %v2314 = vpop.f32.mrb[0].mxu0
  %v2315 = vpop.f32.mrb[0].mxu0
  %2316 = vdwg.mxu0
  %2317 = vmatprep.subr.bf16.mxu0 %v1006
  %2318 = vmatpush1.bf16.msra.mxu0 %v1005
  %2319 = vmatprep.subr.bf16.mxu0 0
  %2320 = vmatpush1.bf16.msra.mxu0 0
  %2321 = vmatprep.subr.bf16.mxu0 0
  %2322 = vmatpush1.bf16.msra.mxu0 0
  %2323 = vmatprep.subr.bf16.mxu0 0
  %2324 = vmatpush1.bf16.msra.mxu0 0
  %2325 = vmatprep.subr.bf16.mxu0 0
  %2326 = vmatpush1.bf16.msra.mxu0 0
  %2327 = vmatprep.subr.bf16.mxu0 0
  %2328 = vmatpush1.bf16.msra.mxu0 0
  %2329 = vmatprep.subr.bf16.mxu0 0
  %2330 = vmatpush1.bf16.msra.mxu0 0
  %2331 = vmatprep.subr.bf16.mxu0 0
  %2332 = vmatpush1.bf16.msra.mxu0 0
  %2333 = vmatprep.subr.bf16.mxu0 0
  %2334 = vmatpush1.bf16.msra.mxu0 0
  %2335 = vmatprep.subr.bf16.mxu0 0
  %2336 = vmatpush1.bf16.msra.mxu0 0
  %2337 = vmatprep.subr.bf16.mxu0 0
  %2338 = vmatpush1.bf16.msra.mxu0 0
  %2339 = vmatprep.subr.bf16.mxu0 0
  %2340 = vmatpush1.bf16.msra.mxu0 0
  %2341 = vmatprep.subr.bf16.mxu0 0
  %2342 = vmatpush1.bf16.msra.mxu0 0
  %2343 = vmatprep.subr.bf16.mxu0 0
  %2344 = vmatpush1.bf16.msra.mxu0 0
  %2345 = vmatprep.subr.bf16.mxu0 0
  %2346 = vmatpush1.bf16.msra.mxu0 0
  %2347 = vmatprep.subr.bf16.mxu0 0
  %2348 = vmatpush1.bf16.msra.mxu0 0
  %2349 = vmatprep.mubr.bf16.mxu0 0
  %2350 = vmatmul.mubr.bf16.gmra.mrb[0].mxu0 %v2233
  %v2351 = vpop.f32.mrb[0].mxu0
  %v2352 = vadd.f32 %v2185, %v2351
  %v2353 = vpop.f32.mrb[0].mxu0
  %v2354 = vadd.f32 %v2187, %v2353
  %v2355 = vpop.f32.mrb[0].mxu0
  %v2356 = vpop.f32.mrb[0].mxu0
  %2357 = vdwg.mxu0
  %2358 = vmatprep.subr.bf16.mxu0 %v1008
  %2359 = vmatpush1.bf16.msra.mxu0 %v1007
  %2360 = vmatprep.subr.bf16.mxu0 0
  %2361 = vmatpush1.bf16.msra.mxu0 0
  %2362 = vmatprep.subr.bf16.mxu0 0
  %2363 = vmatpush1.bf16.msra.mxu0 0
  %2364 = vmatprep.subr.bf16.mxu0 0
  %2365 = vmatpush1.bf16.msra.mxu0 0
  %2366 = vmatprep.subr.bf16.mxu0 0
  %2367 = vmatpush1.bf16.msra.mxu0 0
  %2368 = vmatprep.subr.bf16.mxu0 0
  %2369 = vmatpush1.bf16.msra.mxu0 0
  %2370 = vmatprep.subr.bf16.mxu0 0
  %2371 = vmatpush1.bf16.msra.mxu0 0
  %2372 = vmatprep.subr.bf16.mxu0 0
  %2373 = vmatpush1.bf16.msra.mxu0 0
  %2374 = vmatprep.subr.bf16.mxu0 0
  %2375 = vmatpush1.bf16.msra.mxu0 0
  %2376 = vmatprep.subr.bf16.mxu0 0
  %2377 = vmatpush1.bf16.msra.mxu0 0
  %2378 = vmatprep.subr.bf16.mxu0 0
  %2379 = vmatpush1.bf16.msra.mxu0 0
  %2380 = vmatprep.subr.bf16.mxu0 0
  %2381 = vmatpush1.bf16.msra.mxu0 0
  %2382 = vmatprep.subr.bf16.mxu0 0
  %2383 = vmatpush1.bf16.msra.mxu0 0
  %2384 = vmatprep.subr.bf16.mxu0 0
  %2385 = vmatpush1.bf16.msra.mxu0 0
  %2386 = vmatprep.subr.bf16.mxu0 0
  %2387 = vmatpush1.bf16.msra.mxu0 0
  %2388 = vmatprep.subr.bf16.mxu0 0
  %2389 = vmatpush1.bf16.msra.mxu0 0
  %2390 = vmatprep.mubr.bf16.mxu0 0
  %2391 = vmatmul.mubr.bf16.gmra.mrb[0].mxu0 %v2233
  %v2392 = vpop.f32.mrb[0].mxu0
  %v2393 = vadd.f32 %v2226, %v2392
  %v2394 = vpop.f32.mrb[0].mxu0
  %v2395 = vadd.f32 %v2228, %v2394
  %v2396 = vpop.f32.mrb[0].mxu0
  %v2397 = vpop.f32.mrb[0].mxu0
  %2398 = vdwg.mxu0
  %v2399 = vadd.f32 %v2270, %v1189
  %v2400 = vadd.f32 %v2272, %v1193
  %v2401 = vadd.f32 %v2311, %v1197
  %v2402 = vadd.f32 %v2313, %v1201
  %v2403 = vadd.f32 %v2352, %v1205
  %v2404 = vadd.f32 %v2354, %v1209
  %v2405 = vadd.f32 %v2393, %v1213
  %v2406 = vadd.f32 %v2395, %v1217
  %v2407 = vxor.u32 %v2399, 2147483648
  %v2408 = vxor.u32 %v2400, 2147483648
  %v2409 = vmul.f32 %v2407, 1.442695
  %v2410 = vpow.pop %v2409
  %v2411 = vmul.f32 %v2408, 1.442695
  %v2412 = vpow.pop %v2411
  %v2413 = vadd.f32 %v2410, 1.0
  %v2414 = vadd.f32 %v2412, 1.0
  %v2415 = vrcp.pop %v2413
  %v2416 = vmul.f32 1.0, %v2415
  %v2417 = vrcp.pop %v2414
  %v2418 = vmul.f32 1.0, %v2417
  %v2419 = vxor.u32 %v2401, 2147483648
  %v2420 = vxor.u32 %v2402, 2147483648
  %v2421 = vmul.f32 %v2419, 1.442695
  %v2422 = vpow.pop %v2421
  %v2423 = vmul.f32 %v2420, 1.442695
  %v2424 = vpow.pop %v2423
  %v2425 = vadd.f32 %v2422, 1.0
  %v2426 = vadd.f32 %v2424, 1.0
  %v2427 = vrcp.pop %v2425
  %v2428 = vmul.f32 1.0, %v2427
  %v2429 = vrcp.pop %v2426
  %v2430 = vmul.f32 1.0, %v2429
  %v2431 = vtanh.pop %v2403
  %v2432 = vtanh.pop %v2404
  %v2433 = vxor.u32 %v2405, 2147483648
  %v2434 = vxor.u32 %v2406, 2147483648
  %v2435 = vmul.f32 %v2433, 1.442695
  %v2436 = vpow.pop %v2435
  %v2437 = vmul.f32 %v2434, 1.442695
  %v2438 = vpow.pop %v2437
  %v2439 = vadd.f32 %v2436, 1.0
  %v2440 = vadd.f32 %v2438, 1.0
  %v2441 = vrcp.pop %v2439
  %v2442 = vmul.f32 1.0, %v2441
  %v2443 = vrcp.pop %v2440
  %v2444 = vmul.f32 1.0, %v2443
  %v2445 = vmul.f32 %v2428, %v2058
  %v2446 = vmul.f32 %v2430, %v2059
  %v2447 = vmul.f32 %v2416, %v2431
  %v2448 = vmul.f32 %v2418, %v2432
  %v2449 = vadd.f32 %v2445, %v2447
  %v2450 = vadd.f32 %v2446, %v2448
  %v2451 = vtanh.pop %v2449
  %v2452 = vtanh.pop %v2450
  %v2453 = vmul.f32 %v2442, %v2451
  %v2454 = vmul.f32 %v2444, %v2452
  %v2455 = vpack.c.bf16 %v2453, %v2453
  %v2456 = vpack.c.bf16 %v2454, %v2454
  %s2457 = scalar_lea.vmem %s0, 16
  %v2458 = vld [vmem:[%s2457] sm:$0xf]
  %2459 = vmatprep.subr.bf16.mxu0 %v558
  %2460 = vmatpush1.bf16.msra.mxu0 %v557
  %2461 = vmatprep.subr.bf16.mxu0 %v566
  %2462 = vmatpush1.bf16.msra.mxu0 %v565
  %2463 = vmatprep.subr.bf16.mxu0 %v574
  %2464 = vmatpush1.bf16.msra.mxu0 %v573
  %2465 = vmatprep.subr.bf16.mxu0 %v582
  %2466 = vmatpush1.bf16.msra.mxu0 %v581
  %2467 = vmatprep.subr.bf16.mxu0 %v590
  %2468 = vmatpush1.bf16.msra.mxu0 %v589
  %2469 = vmatprep.subr.bf16.mxu0 %v598
  %2470 = vmatpush1.bf16.msra.mxu0 %v597
  %2471 = vmatprep.subr.bf16.mxu0 %v606
  %2472 = vmatpush1.bf16.msra.mxu0 %v605
  %2473 = vmatprep.subr.bf16.mxu0 %v614
  %2474 = vmatpush1.bf16.msra.mxu0 %v613
  %2475 = vmatprep.subr.bf16.mxu0 %v622
  %2476 = vmatpush1.bf16.msra.mxu0 %v621
  %2477 = vmatprep.subr.bf16.mxu0 %v630
  %2478 = vmatpush1.bf16.msra.mxu0 %v629
  %2479 = vmatprep.subr.bf16.mxu0 %v638
  %2480 = vmatpush1.bf16.msra.mxu0 %v637
  %2481 = vmatprep.subr.bf16.mxu0 %v646
  %2482 = vmatpush1.bf16.msra.mxu0 %v645
  %2483 = vmatprep.subr.bf16.mxu0 %v654
  %2484 = vmatpush1.bf16.msra.mxu0 %v653
  %2485 = vmatprep.subr.bf16.mxu0 %v662
  %2486 = vmatpush1.bf16.msra.mxu0 %v661
  %2487 = vmatprep.subr.bf16.mxu0 %v670
  %2488 = vmatpush1.bf16.msra.mxu0 %v669
  %2489 = vmatprep.subr.bf16.mxu0 %v678
  %2490 = vmatpush1.bf16.msra.mxu0 %v677
  %2491 = vmatprep.mubr.bf16.mxu0 %v2456
  %2492 = vmatmul.mubr.bf16.gmra.mrb[0].mxu0 %v2455
  %v2493 = vpop.f32.mrb[0].mxu0
  %v2494 = vadd.f32 0.0, %v2493
  %v2495 = vpop.f32.mrb[0].mxu0
  %v2496 = vadd.f32 0.0, %v2495
  %v2497 = vpop.f32.mrb[0].mxu0
  %v2498 = vpop.f32.mrb[0].mxu0
  %2499 = vdwg.mxu0
  %2500 = vmatprep.subr.bf16.mxu0 %v560
  %2501 = vmatpush1.bf16.msra.mxu0 %v559
  %2502 = vmatprep.subr.bf16.mxu0 %v568
  %2503 = vmatpush1.bf16.msra.mxu0 %v567
  %2504 = vmatprep.subr.bf16.mxu0 %v576
  %2505 = vmatpush1.bf16.msra.mxu0 %v575
  %2506 = vmatprep.subr.bf16.mxu0 %v584
  %2507 = vmatpush1.bf16.msra.mxu0 %v583
  %2508 = vmatprep.subr.bf16.mxu0 %v592
  %2509 = vmatpush1.bf16.msra.mxu0 %v591
  %2510 = vmatprep.subr.bf16.mxu0 %v600
  %2511 = vmatpush1.bf16.msra.mxu0 %v599
  %2512 = vmatprep.subr.bf16.mxu0 %v608
  %2513 = vmatpush1.bf16.msra.mxu0 %v607
  %2514 = vmatprep.subr.bf16.mxu0 %v616
  %2515 = vmatpush1.bf16.msra.mxu0 %v615
  %2516 = vmatprep.subr.bf16.mxu0 %v624
  %2517 = vmatpush1.bf16.msra.mxu0 %v623
  %2518 = vmatprep.subr.bf16.mxu0 %v632
  %2519 = vmatpush1.bf16.msra.mxu0 %v631
  %2520 = vmatprep.subr.bf16.mxu0 %v640
  %2521 = vmatpush1.bf16.msra.mxu0 %v639
  %2522 = vmatprep.subr.bf16.mxu0 %v648
  %2523 = vmatpush1.bf16.msra.mxu0 %v647
  %2524 = vmatprep.subr.bf16.mxu0 %v656
  %2525 = vmatpush1.bf16.msra.mxu0 %v655
  %2526 = vmatprep.subr.bf16.mxu0 %v664
  %2527 = vmatpush1.bf16.msra.mxu0 %v663
  %2528 = vmatprep.subr.bf16.mxu0 %v672
  %2529 = vmatpush1.bf16.msra.mxu0 %v671
  %2530 = vmatprep.subr.bf16.mxu0 %v680
  %2531 = vmatpush1.bf16.msra.mxu0 %v679
  %2532 = vmatprep.mubr.bf16.mxu0 %v2456
  %2533 = vmatmul.mubr.bf16.gmra.mrb[0].mxu0 %v2455
  %v2534 = vpop.f32.mrb[0].mxu0
  %v2535 = vadd.f32 0.0, %v2534
  %v2536 = vpop.f32.mrb[0].mxu0
  %v2537 = vadd.f32 0.0, %v2536
  %v2538 = vpop.f32.mrb[0].mxu0
  %v2539 = vpop.f32.mrb[0].mxu0
  %2540 = vdwg.mxu0
  %2541 = vmatprep.subr.bf16.mxu0 %v562
  %2542 = vmatpush1.bf16.msra.mxu0 %v561
  %2543 = vmatprep.subr.bf16.mxu0 %v570
  %2544 = vmatpush1.bf16.msra.mxu0 %v569
  %2545 = vmatprep.subr.bf16.mxu0 %v578
  %2546 = vmatpush1.bf16.msra.mxu0 %v577
  %2547 = vmatprep.subr.bf16.mxu0 %v586
  %2548 = vmatpush1.bf16.msra.mxu0 %v585
  %2549 = vmatprep.subr.bf16.mxu0 %v594
  %2550 = vmatpush1.bf16.msra.mxu0 %v593
  %2551 = vmatprep.subr.bf16.mxu0 %v602
  %2552 = vmatpush1.bf16.msra.mxu0 %v601
  %2553 = vmatprep.subr.bf16.mxu0 %v610
  %2554 = vmatpush1.bf16.msra.mxu0 %v609
  %2555 = vmatprep.subr.bf16.mxu0 %v618
  %2556 = vmatpush1.bf16.msra.mxu0 %v617
  %2557 = vmatprep.subr.bf16.mxu0 %v626
  %2558 = vmatpush1.bf16.msra.mxu0 %v625
  %2559 = vmatprep.subr.bf16.mxu0 %v634
  %2560 = vmatpush1.bf16.msra.mxu0 %v633
  %2561 = vmatprep.subr.bf16.mxu0 %v642
  %2562 = vmatpush1.bf16.msra.mxu0 %v641
  %2563 = vmatprep.subr.bf16.mxu0 %v650
  %2564 = vmatpush1.bf16.msra.mxu0 %v649
  %2565 = vmatprep.subr.bf16.mxu0 %v658
  %2566 = vmatpush1.bf16.msra.mxu0 %v657
  %2567 = vmatprep.subr.bf16.mxu0 %v666
  %2568 = vmatpush1.bf16.msra.mxu0 %v665
  %2569 = vmatprep.subr.bf16.mxu0 %v674
  %2570 = vmatpush1.bf16.msra.mxu0 %v673
  %2571 = vmatprep.subr.bf16.mxu0 %v682
  %2572 = vmatpush1.bf16.msra.mxu0 %v681
  %2573 = vmatprep.mubr.bf16.mxu0 %v2456
  %2574 = vmatmul.mubr.bf16.gmra.mrb[0].mxu0 %v2455
  %v2575 = vpop.f32.mrb[0].mxu0
  %v2576 = vadd.f32 0.0, %v2575
  %v2577 = vpop.f32.mrb[0].mxu0
  %v2578 = vadd.f32 0.0, %v2577
  %v2579 = vpop.f32.mrb[0].mxu0
  %v2580 = vpop.f32.mrb[0].mxu0
  %2581 = vdwg.mxu0
  %2582 = vmatprep.subr.bf16.mxu0 %v564
  %2583 = vmatpush1.bf16.msra.mxu0 %v563
  %2584 = vmatprep.subr.bf16.mxu0 %v572
  %2585 = vmatpush1.bf16.msra.mxu0 %v571
  %2586 = vmatprep.subr.bf16.mxu0 %v580
  %2587 = vmatpush1.bf16.msra.mxu0 %v579
  %2588 = vmatprep.subr.bf16.mxu0 %v588
  %2589 = vmatpush1.bf16.msra.mxu0 %v587
  %2590 = vmatprep.subr.bf16.mxu0 %v596
  %2591 = vmatpush1.bf16.msra.mxu0 %v595
  %2592 = vmatprep.subr.bf16.mxu0 %v604
  %2593 = vmatpush1.bf16.msra.mxu0 %v603
  %2594 = vmatprep.subr.bf16.mxu0 %v612
  %2595 = vmatpush1.bf16.msra.mxu0 %v611
  %2596 = vmatprep.subr.bf16.mxu0 %v620
  %2597 = vmatpush1.bf16.msra.mxu0 %v619
  %2598 = vmatprep.subr.bf16.mxu0 %v628
  %2599 = vmatpush1.bf16.msra.mxu0 %v627
  %2600 = vmatprep.subr.bf16.mxu0 %v636
  %2601 = vmatpush1.bf16.msra.mxu0 %v635
  %2602 = vmatprep.subr.bf16.mxu0 %v644
  %2603 = vmatpush1.bf16.msra.mxu0 %v643
  %2604 = vmatprep.subr.bf16.mxu0 %v652
  %2605 = vmatpush1.bf16.msra.mxu0 %v651
  %2606 = vmatprep.subr.bf16.mxu0 %v660
  %2607 = vmatpush1.bf16.msra.mxu0 %v659
  %2608 = vmatprep.subr.bf16.mxu0 %v668
  %2609 = vmatpush1.bf16.msra.mxu0 %v667
  %2610 = vmatprep.subr.bf16.mxu0 %v676
  %2611 = vmatpush1.bf16.msra.mxu0 %v675
  %2612 = vmatprep.subr.bf16.mxu0 %v684
  %2613 = vmatpush1.bf16.msra.mxu0 %v683
  %2614 = vmatprep.mubr.bf16.mxu0 %v2456
  %2615 = vmatmul.mubr.bf16.gmra.mrb[0].mxu0 %v2455
  %v2616 = vpop.f32.mrb[0].mxu0
  %v2617 = vadd.f32 0.0, %v2616
  %v2618 = vpop.f32.mrb[0].mxu0
  %v2619 = vadd.f32 0.0, %v2618
  %v2620 = vpop.f32.mrb[0].mxu0
  %v2621 = vpop.f32.mrb[0].mxu0
  %2622 = vdwg.mxu0
  %v2624 = vsel %vm1017, %v2458, 0
  %2626 = vmatprep.subr.bf16.mxu0 %v1002
  %2627 = vmatpush1.bf16.msra.mxu0 %v1001
  %2628 = vmatprep.subr.bf16.mxu0 0
  %2629 = vmatpush1.bf16.msra.mxu0 0
  %2630 = vmatprep.subr.bf16.mxu0 0
  %2631 = vmatpush1.bf16.msra.mxu0 0
  %2632 = vmatprep.subr.bf16.mxu0 0
  %2633 = vmatpush1.bf16.msra.mxu0 0
  %2634 = vmatprep.subr.bf16.mxu0 0
  %2635 = vmatpush1.bf16.msra.mxu0 0
  %2636 = vmatprep.subr.bf16.mxu0 0
  %2637 = vmatpush1.bf16.msra.mxu0 0
  %2638 = vmatprep.subr.bf16.mxu0 0
  %2639 = vmatpush1.bf16.msra.mxu0 0
  %2640 = vmatprep.subr.bf16.mxu0 0
  %2641 = vmatpush1.bf16.msra.mxu0 0
  %2642 = vmatprep.subr.bf16.mxu0 0
  %2643 = vmatpush1.bf16.msra.mxu0 0
  %2644 = vmatprep.subr.bf16.mxu0 0
  %2645 = vmatpush1.bf16.msra.mxu0 0
  %2646 = vmatprep.subr.bf16.mxu0 0
  %2647 = vmatpush1.bf16.msra.mxu0 0
  %2648 = vmatprep.subr.bf16.mxu0 0
  %2649 = vmatpush1.bf16.msra.mxu0 0
  %2650 = vmatprep.subr.bf16.mxu0 0
  %2651 = vmatpush1.bf16.msra.mxu0 0
  %2652 = vmatprep.subr.bf16.mxu0 0
  %2653 = vmatpush1.bf16.msra.mxu0 0
  %2654 = vmatprep.subr.bf16.mxu0 0
  %2655 = vmatpush1.bf16.msra.mxu0 0
  %2656 = vmatprep.subr.bf16.mxu0 0
  %2657 = vmatpush1.bf16.msra.mxu0 0
  %2658 = vmatprep.mubr.bf16.mxu0 0
  %2659 = vmatmul.mubr.bf16.gmra.mrb[0].mxu0 %v2624
  %v2660 = vpop.f32.mrb[0].mxu0
  %v2661 = vadd.f32 %v2494, %v2660
  %v2662 = vpop.f32.mrb[0].mxu0
  %v2663 = vadd.f32 %v2496, %v2662
  %v2664 = vpop.f32.mrb[0].mxu0
  %v2665 = vpop.f32.mrb[0].mxu0
  %2666 = vdwg.mxu0
  %2667 = vmatprep.subr.bf16.mxu0 %v1004
  %2668 = vmatpush1.bf16.msra.mxu0 %v1003
  %2669 = vmatprep.subr.bf16.mxu0 0
  %2670 = vmatpush1.bf16.msra.mxu0 0
  %2671 = vmatprep.subr.bf16.mxu0 0
  %2672 = vmatpush1.bf16.msra.mxu0 0
  %2673 = vmatprep.subr.bf16.mxu0 0
  %2674 = vmatpush1.bf16.msra.mxu0 0
  %2675 = vmatprep.subr.bf16.mxu0 0
  %2676 = vmatpush1.bf16.msra.mxu0 0
  %2677 = vmatprep.subr.bf16.mxu0 0
  %2678 = vmatpush1.bf16.msra.mxu0 0
  %2679 = vmatprep.subr.bf16.mxu0 0
  %2680 = vmatpush1.bf16.msra.mxu0 0
  %2681 = vmatprep.subr.bf16.mxu0 0
  %2682 = vmatpush1.bf16.msra.mxu0 0
  %2683 = vmatprep.subr.bf16.mxu0 0
  %2684 = vmatpush1.bf16.msra.mxu0 0
  %2685 = vmatprep.subr.bf16.mxu0 0
  %2686 = vmatpush1.bf16.msra.mxu0 0
  %2687 = vmatprep.subr.bf16.mxu0 0
  %2688 = vmatpush1.bf16.msra.mxu0 0
  %2689 = vmatprep.subr.bf16.mxu0 0
  %2690 = vmatpush1.bf16.msra.mxu0 0
  %2691 = vmatprep.subr.bf16.mxu0 0
  %2692 = vmatpush1.bf16.msra.mxu0 0
  %2693 = vmatprep.subr.bf16.mxu0 0
  %2694 = vmatpush1.bf16.msra.mxu0 0
  %2695 = vmatprep.subr.bf16.mxu0 0
  %2696 = vmatpush1.bf16.msra.mxu0 0
  %2697 = vmatprep.subr.bf16.mxu0 0
  %2698 = vmatpush1.bf16.msra.mxu0 0
  %2699 = vmatprep.mubr.bf16.mxu0 0
  %2700 = vmatmul.mubr.bf16.gmra.mrb[0].mxu0 %v2624
  %v2701 = vpop.f32.mrb[0].mxu0
  %v2702 = vadd.f32 %v2535, %v2701
  %v2703 = vpop.f32.mrb[0].mxu0
  %v2704 = vadd.f32 %v2537, %v2703
  %v2705 = vpop.f32.mrb[0].mxu0
  %v2706 = vpop.f32.mrb[0].mxu0
  %2707 = vdwg.mxu0
  %2708 = vmatprep.subr.bf16.mxu0 %v1006
  %2709 = vmatpush1.bf16.msra.mxu0 %v1005
  %2710 = vmatprep.subr.bf16.mxu0 0
  %2711 = vmatpush1.bf16.msra.mxu0 0
  %2712 = vmatprep.subr.bf16.mxu0 0
  %2713 = vmatpush1.bf16.msra.mxu0 0
  %2714 = vmatprep.subr.bf16.mxu0 0
  %2715 = vmatpush1.bf16.msra.mxu0 0
  %2716 = vmatprep.subr.bf16.mxu0 0
  %2717 = vmatpush1.bf16.msra.mxu0 0
  %2718 = vmatprep.subr.bf16.mxu0 0
  %2719 = vmatpush1.bf16.msra.mxu0 0
  %2720 = vmatprep.subr.bf16.mxu0 0
  %2721 = vmatpush1.bf16.msra.mxu0 0
  %2722 = vmatprep.subr.bf16.mxu0 0
  %2723 = vmatpush1.bf16.msra.mxu0 0
  %2724 = vmatprep.subr.bf16.mxu0 0
  %2725 = vmatpush1.bf16.msra.mxu0 0
  %2726 = vmatprep.subr.bf16.mxu0 0
  %2727 = vmatpush1.bf16.msra.mxu0 0
  %2728 = vmatprep.subr.bf16.mxu0 0
  %2729 = vmatpush1.bf16.msra.mxu0 0
  %2730 = vmatprep.subr.bf16.mxu0 0
  %2731 = vmatpush1.bf16.msra.mxu0 0
  %2732 = vmatprep.subr.bf16.mxu0 0
  %2733 = vmatpush1.bf16.msra.mxu0 0
  %2734 = vmatprep.subr.bf16.mxu0 0
  %2735 = vmatpush1.bf16.msra.mxu0 0
  %2736 = vmatprep.subr.bf16.mxu0 0
  %2737 = vmatpush1.bf16.msra.mxu0 0
  %2738 = vmatprep.subr.bf16.mxu0 0
  %2739 = vmatpush1.bf16.msra.mxu0 0
  %2740 = vmatprep.mubr.bf16.mxu0 0
  %2741 = vmatmul.mubr.bf16.gmra.mrb[0].mxu0 %v2624
  %v2742 = vpop.f32.mrb[0].mxu0
  %v2743 = vadd.f32 %v2576, %v2742
  %v2744 = vpop.f32.mrb[0].mxu0
  %v2745 = vadd.f32 %v2578, %v2744
  %v2746 = vpop.f32.mrb[0].mxu0
  %v2747 = vpop.f32.mrb[0].mxu0
  %2748 = vdwg.mxu0
  %2749 = vmatprep.subr.bf16.mxu0 %v1008
  %2750 = vmatpush1.bf16.msra.mxu0 %v1007
  %2751 = vmatprep.subr.bf16.mxu0 0
  %2752 = vmatpush1.bf16.msra.mxu0 0
  %2753 = vmatprep.subr.bf16.mxu0 0
  %2754 = vmatpush1.bf16.msra.mxu0 0
  %2755 = vmatprep.subr.bf16.mxu0 0
  %2756 = vmatpush1.bf16.msra.mxu0 0
  %2757 = vmatprep.subr.bf16.mxu0 0
  %2758 = vmatpush1.bf16.msra.mxu0 0
  %2759 = vmatprep.subr.bf16.mxu0 0
  %2760 = vmatpush1.bf16.msra.mxu0 0
  %2761 = vmatprep.subr.bf16.mxu0 0
  %2762 = vmatpush1.bf16.msra.mxu0 0
  %2763 = vmatprep.subr.bf16.mxu0 0
  %2764 = vmatpush1.bf16.msra.mxu0 0
  %2765 = vmatprep.subr.bf16.mxu0 0
  %2766 = vmatpush1.bf16.msra.mxu0 0
  %2767 = vmatprep.subr.bf16.mxu0 0
  %2768 = vmatpush1.bf16.msra.mxu0 0
  %2769 = vmatprep.subr.bf16.mxu0 0
  %2770 = vmatpush1.bf16.msra.mxu0 0
  %2771 = vmatprep.subr.bf16.mxu0 0
  %2772 = vmatpush1.bf16.msra.mxu0 0
  %2773 = vmatprep.subr.bf16.mxu0 0
  %2774 = vmatpush1.bf16.msra.mxu0 0
  %2775 = vmatprep.subr.bf16.mxu0 0
  %2776 = vmatpush1.bf16.msra.mxu0 0
  %2777 = vmatprep.subr.bf16.mxu0 0
  %2778 = vmatpush1.bf16.msra.mxu0 0
  %2779 = vmatprep.subr.bf16.mxu0 0
  %2780 = vmatpush1.bf16.msra.mxu0 0
  %2781 = vmatprep.mubr.bf16.mxu0 0
  %2782 = vmatmul.mubr.bf16.gmra.mrb[0].mxu0 %v2624
  %v2783 = vpop.f32.mrb[0].mxu0
  %v2784 = vadd.f32 %v2617, %v2783
  %v2785 = vpop.f32.mrb[0].mxu0
  %v2786 = vadd.f32 %v2619, %v2785
  %v2787 = vpop.f32.mrb[0].mxu0
  %v2788 = vpop.f32.mrb[0].mxu0
  %2789 = vdwg.mxu0
  %v2790 = vadd.f32 %v2661, %v1189
  %v2791 = vadd.f32 %v2663, %v1193
  %v2792 = vadd.f32 %v2702, %v1197
  %v2793 = vadd.f32 %v2704, %v1201
  %v2794 = vadd.f32 %v2743, %v1205
  %v2795 = vadd.f32 %v2745, %v1209
  %v2796 = vadd.f32 %v2784, %v1213
  %v2797 = vadd.f32 %v2786, %v1217
  %v2798 = vxor.u32 %v2790, 2147483648
  %v2799 = vxor.u32 %v2791, 2147483648
  %v2800 = vmul.f32 %v2798, 1.442695
  %v2801 = vpow.pop %v2800
  %v2802 = vmul.f32 %v2799, 1.442695
  %v2803 = vpow.pop %v2802
  %v2804 = vadd.f32 %v2801, 1.0
  %v2805 = vadd.f32 %v2803, 1.0
  %v2806 = vrcp.pop %v2804
  %v2807 = vmul.f32 1.0, %v2806
  %v2808 = vrcp.pop %v2805
  %v2809 = vmul.f32 1.0, %v2808
  %v2810 = vxor.u32 %v2792, 2147483648
  %v2811 = vxor.u32 %v2793, 2147483648
  %v2812 = vmul.f32 %v2810, 1.442695
  %v2813 = vpow.pop %v2812
  %v2814 = vmul.f32 %v2811, 1.442695
  %v2815 = vpow.pop %v2814
  %v2816 = vadd.f32 %v2813, 1.0
  %v2817 = vadd.f32 %v2815, 1.0
  %v2818 = vrcp.pop %v2816
  %v2819 = vmul.f32 1.0, %v2818
  %v2820 = vrcp.pop %v2817
  %v2821 = vmul.f32 1.0, %v2820
  %v2822 = vtanh.pop %v2794
  %v2823 = vtanh.pop %v2795
  %v2824 = vxor.u32 %v2796, 2147483648
  %v2825 = vxor.u32 %v2797, 2147483648
  %v2826 = vmul.f32 %v2824, 1.442695
  %v2827 = vpow.pop %v2826
  %v2828 = vmul.f32 %v2825, 1.442695
  %v2829 = vpow.pop %v2828
  %v2830 = vadd.f32 %v2827, 1.0
  %v2831 = vadd.f32 %v2829, 1.0
  %v2832 = vrcp.pop %v2830
  %v2833 = vmul.f32 1.0, %v2832
  %v2834 = vrcp.pop %v2831
  %v2835 = vmul.f32 1.0, %v2834
  %v2836 = vmul.f32 %v2819, %v2449
  %v2837 = vmul.f32 %v2821, %v2450
  %v2838 = vmul.f32 %v2807, %v2822
  %v2839 = vmul.f32 %v2809, %v2823
  %v2840 = vadd.f32 %v2836, %v2838
  %v2841 = vadd.f32 %v2837, %v2839
  %v2842 = vtanh.pop %v2840
  %v2843 = vtanh.pop %v2841
  %v2844 = vmul.f32 %v2833, %v2842
  %v2845 = vmul.f32 %v2835, %v2843
  %v2846 = vpack.c.bf16 %v2844, %v2844
  %v2847 = vpack.c.bf16 %v2845, %v2845
  %s2848 = scalar_lea.vmem %s0, 20
  %v2849 = vld [vmem:[%s2848] sm:$0xf]
  %2850 = vmatprep.subr.bf16.mxu0 %v558
  %2851 = vmatpush1.bf16.msra.mxu0 %v557
  %2852 = vmatprep.subr.bf16.mxu0 %v566
  %2853 = vmatpush1.bf16.msra.mxu0 %v565
  %2854 = vmatprep.subr.bf16.mxu0 %v574
  %2855 = vmatpush1.bf16.msra.mxu0 %v573
  %2856 = vmatprep.subr.bf16.mxu0 %v582
  %2857 = vmatpush1.bf16.msra.mxu0 %v581
  %2858 = vmatprep.subr.bf16.mxu0 %v590
  %2859 = vmatpush1.bf16.msra.mxu0 %v589
  %2860 = vmatprep.subr.bf16.mxu0 %v598
  %2861 = vmatpush1.bf16.msra.mxu0 %v597
  %2862 = vmatprep.subr.bf16.mxu0 %v606
  %2863 = vmatpush1.bf16.msra.mxu0 %v605
  %2864 = vmatprep.subr.bf16.mxu0 %v614
  %2865 = vmatpush1.bf16.msra.mxu0 %v613
  %2866 = vmatprep.subr.bf16.mxu0 %v622
  %2867 = vmatpush1.bf16.msra.mxu0 %v621
  %2868 = vmatprep.subr.bf16.mxu0 %v630
  %2869 = vmatpush1.bf16.msra.mxu0 %v629
  %2870 = vmatprep.subr.bf16.mxu0 %v638
  %2871 = vmatpush1.bf16.msra.mxu0 %v637
  %2872 = vmatprep.subr.bf16.mxu0 %v646
  %2873 = vmatpush1.bf16.msra.mxu0 %v645
  %2874 = vmatprep.subr.bf16.mxu0 %v654
  %2875 = vmatpush1.bf16.msra.mxu0 %v653
  %2876 = vmatprep.subr.bf16.mxu0 %v662
  %2877 = vmatpush1.bf16.msra.mxu0 %v661
  %2878 = vmatprep.subr.bf16.mxu0 %v670
  %2879 = vmatpush1.bf16.msra.mxu0 %v669
  %2880 = vmatprep.subr.bf16.mxu0 %v678
  %2881 = vmatpush1.bf16.msra.mxu0 %v677
  %2882 = vmatprep.mubr.bf16.mxu0 %v2847
  %2883 = vmatmul.mubr.bf16.gmra.mrb[0].mxu0 %v2846
  %v2884 = vpop.f32.mrb[0].mxu0
  %v2885 = vadd.f32 0.0, %v2884
  %v2886 = vpop.f32.mrb[0].mxu0
  %v2887 = vadd.f32 0.0, %v2886
  %v2888 = vpop.f32.mrb[0].mxu0
  %v2889 = vpop.f32.mrb[0].mxu0
  %2890 = vdwg.mxu0
  %2891 = vmatprep.subr.bf16.mxu0 %v560
  %2892 = vmatpush1.bf16.msra.mxu0 %v559
  %2893 = vmatprep.subr.bf16.mxu0 %v568
  %2894 = vmatpush1.bf16.msra.mxu0 %v567
  %2895 = vmatprep.subr.bf16.mxu0 %v576
  %2896 = vmatpush1.bf16.msra.mxu0 %v575
  %2897 = vmatprep.subr.bf16.mxu0 %v584
  %2898 = vmatpush1.bf16.msra.mxu0 %v583
  %2899 = vmatprep.subr.bf16.mxu0 %v592
  %2900 = vmatpush1.bf16.msra.mxu0 %v591
  %2901 = vmatprep.subr.bf16.mxu0 %v600
  %2902 = vmatpush1.bf16.msra.mxu0 %v599
  %2903 = vmatprep.subr.bf16.mxu0 %v608
  %2904 = vmatpush1.bf16.msra.mxu0 %v607
  %2905 = vmatprep.subr.bf16.mxu0 %v616
  %2906 = vmatpush1.bf16.msra.mxu0 %v615
  %2907 = vmatprep.subr.bf16.mxu0 %v624
  %2908 = vmatpush1.bf16.msra.mxu0 %v623
  %2909 = vmatprep.subr.bf16.mxu0 %v632
  %2910 = vmatpush1.bf16.msra.mxu0 %v631
  %2911 = vmatprep.subr.bf16.mxu0 %v640
  %2912 = vmatpush1.bf16.msra.mxu0 %v639
  %2913 = vmatprep.subr.bf16.mxu0 %v648
  %2914 = vmatpush1.bf16.msra.mxu0 %v647
  %2915 = vmatprep.subr.bf16.mxu0 %v656
  %2916 = vmatpush1.bf16.msra.mxu0 %v655
  %2917 = vmatprep.subr.bf16.mxu0 %v664
  %2918 = vmatpush1.bf16.msra.mxu0 %v663
  %2919 = vmatprep.subr.bf16.mxu0 %v672
  %2920 = vmatpush1.bf16.msra.mxu0 %v671
  %2921 = vmatprep.subr.bf16.mxu0 %v680
  %2922 = vmatpush1.bf16.msra.mxu0 %v679
  %2923 = vmatprep.mubr.bf16.mxu0 %v2847
  %2924 = vmatmul.mubr.bf16.gmra.mrb[0].mxu0 %v2846
  %v2925 = vpop.f32.mrb[0].mxu0
  %v2926 = vadd.f32 0.0, %v2925
  %v2927 = vpop.f32.mrb[0].mxu0
  %v2928 = vadd.f32 0.0, %v2927
  %v2929 = vpop.f32.mrb[0].mxu0
  %v2930 = vpop.f32.mrb[0].mxu0
  %2931 = vdwg.mxu0
  %2932 = vmatprep.subr.bf16.mxu0 %v562
  %2933 = vmatpush1.bf16.msra.mxu0 %v561
  %2934 = vmatprep.subr.bf16.mxu0 %v570
  %2935 = vmatpush1.bf16.msra.mxu0 %v569
  %2936 = vmatprep.subr.bf16.mxu0 %v578
  %2937 = vmatpush1.bf16.msra.mxu0 %v577
  %2938 = vmatprep.subr.bf16.mxu0 %v586
  %2939 = vmatpush1.bf16.msra.mxu0 %v585
  %2940 = vmatprep.subr.bf16.mxu0 %v594
  %2941 = vmatpush1.bf16.msra.mxu0 %v593
  %2942 = vmatprep.subr.bf16.mxu0 %v602
  %2943 = vmatpush1.bf16.msra.mxu0 %v601
  %2944 = vmatprep.subr.bf16.mxu0 %v610
  %2945 = vmatpush1.bf16.msra.mxu0 %v609
  %2946 = vmatprep.subr.bf16.mxu0 %v618
  %2947 = vmatpush1.bf16.msra.mxu0 %v617
  %2948 = vmatprep.subr.bf16.mxu0 %v626
  %2949 = vmatpush1.bf16.msra.mxu0 %v625
  %2950 = vmatprep.subr.bf16.mxu0 %v634
  %2951 = vmatpush1.bf16.msra.mxu0 %v633
  %2952 = vmatprep.subr.bf16.mxu0 %v642
  %2953 = vmatpush1.bf16.msra.mxu0 %v641
  %2954 = vmatprep.subr.bf16.mxu0 %v650
  %2955 = vmatpush1.bf16.msra.mxu0 %v649
  %2956 = vmatprep.subr.bf16.mxu0 %v658
  %2957 = vmatpush1.bf16.msra.mxu0 %v657
  %2958 = vmatprep.subr.bf16.mxu0 %v666
  %2959 = vmatpush1.bf16.msra.mxu0 %v665
  %2960 = vmatprep.subr.bf16.mxu0 %v674
  %2961 = vmatpush1.bf16.msra.mxu0 %v673
  %2962 = vmatprep.subr.bf16.mxu0 %v682
  %2963 = vmatpush1.bf16.msra.mxu0 %v681
  %2964 = vmatprep.mubr.bf16.mxu0 %v2847
  %2965 = vmatmul.mubr.bf16.gmra.mrb[0].mxu0 %v2846
  %v2966 = vpop.f32.mrb[0].mxu0
  %v2967 = vadd.f32 0.0, %v2966
  %v2968 = vpop.f32.mrb[0].mxu0
  %v2969 = vadd.f32 0.0, %v2968
  %v2970 = vpop.f32.mrb[0].mxu0
  %v2971 = vpop.f32.mrb[0].mxu0
  %2972 = vdwg.mxu0
  %2973 = vmatprep.subr.bf16.mxu0 %v564
  %2974 = vmatpush1.bf16.msra.mxu0 %v563
  %2975 = vmatprep.subr.bf16.mxu0 %v572
  %2976 = vmatpush1.bf16.msra.mxu0 %v571
  %2977 = vmatprep.subr.bf16.mxu0 %v580
  %2978 = vmatpush1.bf16.msra.mxu0 %v579
  %2979 = vmatprep.subr.bf16.mxu0 %v588
  %2980 = vmatpush1.bf16.msra.mxu0 %v587
  %2981 = vmatprep.subr.bf16.mxu0 %v596
  %2982 = vmatpush1.bf16.msra.mxu0 %v595
  %2983 = vmatprep.subr.bf16.mxu0 %v604
  %2984 = vmatpush1.bf16.msra.mxu0 %v603
  %2985 = vmatprep.subr.bf16.mxu0 %v612
  %2986 = vmatpush1.bf16.msra.mxu0 %v611
  %2987 = vmatprep.subr.bf16.mxu0 %v620
  %2988 = vmatpush1.bf16.msra.mxu0 %v619
  %2989 = vmatprep.subr.bf16.mxu0 %v628
  %2990 = vmatpush1.bf16.msra.mxu0 %v627
  %2991 = vmatprep.subr.bf16.mxu0 %v636
  %2992 = vmatpush1.bf16.msra.mxu0 %v635
  %2993 = vmatprep.subr.bf16.mxu0 %v644
  %2994 = vmatpush1.bf16.msra.mxu0 %v643
  %2995 = vmatprep.subr.bf16.mxu0 %v652
  %2996 = vmatpush1.bf16.msra.mxu0 %v651
  %2997 = vmatprep.subr.bf16.mxu0 %v660
  %2998 = vmatpush1.bf16.msra.mxu0 %v659
  %2999 = vmatprep.subr.bf16.mxu0 %v668
  %3000 = vmatpush1.bf16.msra.mxu0 %v667
  %3001 = vmatprep.subr.bf16.mxu0 %v676
  %3002 = vmatpush1.bf16.msra.mxu0 %v675
  %3003 = vmatprep.subr.bf16.mxu0 %v684
  %3004 = vmatpush1.bf16.msra.mxu0 %v683
  %3005 = vmatprep.mubr.bf16.mxu0 %v2847
  %3006 = vmatmul.mubr.bf16.gmra.mrb[0].mxu0 %v2846
  %v3007 = vpop.f32.mrb[0].mxu0
  %v3008 = vadd.f32 0.0, %v3007
  %v3009 = vpop.f32.mrb[0].mxu0
  %v3010 = vadd.f32 0.0, %v3009
  %v3011 = vpop.f32.mrb[0].mxu0
  %v3012 = vpop.f32.mrb[0].mxu0
  %3013 = vdwg.mxu0
  %v3015 = vsel %vm1017, %v2849, 0
  %3017 = vmatprep.subr.bf16.mxu0 %v1002
  %3018 = vmatpush1.bf16.msra.mxu0 %v1001
  %3019 = vmatprep.subr.bf16.mxu0 0
  %3020 = vmatpush1.bf16.msra.mxu0 0
  %3021 = vmatprep.subr.bf16.mxu0 0
  %3022 = vmatpush1.bf16.msra.mxu0 0
  %3023 = vmatprep.subr.bf16.mxu0 0
  %3024 = vmatpush1.bf16.msra.mxu0 0
  %3025 = vmatprep.subr.bf16.mxu0 0
  %3026 = vmatpush1.bf16.msra.mxu0 0
  %3027 = vmatprep.subr.bf16.mxu0 0
  %3028 = vmatpush1.bf16.msra.mxu0 0
  %3029 = vmatprep.subr.bf16.mxu0 0
  %3030 = vmatpush1.bf16.msra.mxu0 0
  %3031 = vmatprep.subr.bf16.mxu0 0
  %3032 = vmatpush1.bf16.msra.mxu0 0
  %3033 = vmatprep.subr.bf16.mxu0 0
  %3034 = vmatpush1.bf16.msra.mxu0 0
  %3035 = vmatprep.subr.bf16.mxu0 0
  %3036 = vmatpush1.bf16.msra.mxu0 0
  %3037 = vmatprep.subr.bf16.mxu0 0
  %3038 = vmatpush1.bf16.msra.mxu0 0
  %3039 = vmatprep.subr.bf16.mxu0 0
  %3040 = vmatpush1.bf16.msra.mxu0 0
  %3041 = vmatprep.subr.bf16.mxu0 0
  %3042 = vmatpush1.bf16.msra.mxu0 0
  %3043 = vmatprep.subr.bf16.mxu0 0
  %3044 = vmatpush1.bf16.msra.mxu0 0
  %3045 = vmatprep.subr.bf16.mxu0 0
  %3046 = vmatpush1.bf16.msra.mxu0 0
  %3047 = vmatprep.subr.bf16.mxu0 0
  %3048 = vmatpush1.bf16.msra.mxu0 0
  %3049 = vmatprep.mubr.bf16.mxu0 0
  %3050 = vmatmul.mubr.bf16.gmra.mrb[0].mxu0 %v3015
  %v3051 = vpop.f32.mrb[0].mxu0
  %v3052 = vadd.f32 %v2885, %v3051
  %v3053 = vpop.f32.mrb[0].mxu0
  %v3054 = vadd.f32 %v2887, %v3053
  %v3055 = vpop.f32.mrb[0].mxu0
  %v3056 = vpop.f32.mrb[0].mxu0
  %3057 = vdwg.mxu0
  %3058 = vmatprep.subr.bf16.mxu0 %v1004
  %3059 = vmatpush1.bf16.msra.mxu0 %v1003
  %3060 = vmatprep.subr.bf16.mxu0 0
  %3061 = vmatpush1.bf16.msra.mxu0 0
  %3062 = vmatprep.subr.bf16.mxu0 0
  %3063 = vmatpush1.bf16.msra.mxu0 0
  %3064 = vmatprep.subr.bf16.mxu0 0
  %3065 = vmatpush1.bf16.msra.mxu0 0
  %3066 = vmatprep.subr.bf16.mxu0 0
  %3067 = vmatpush1.bf16.msra.mxu0 0
  %3068 = vmatprep.subr.bf16.mxu0 0
  %3069 = vmatpush1.bf16.msra.mxu0 0
  %3070 = vmatprep.subr.bf16.mxu0 0
  %3071 = vmatpush1.bf16.msra.mxu0 0
  %3072 = vmatprep.subr.bf16.mxu0 0
  %3073 = vmatpush1.bf16.msra.mxu0 0
  %3074 = vmatprep.subr.bf16.mxu0 0
  %3075 = vmatpush1.bf16.msra.mxu0 0
  %3076 = vmatprep.subr.bf16.mxu0 0
  %3077 = vmatpush1.bf16.msra.mxu0 0
  %3078 = vmatprep.subr.bf16.mxu0 0
  %3079 = vmatpush1.bf16.msra.mxu0 0
  %3080 = vmatprep.subr.bf16.mxu0 0
  %3081 = vmatpush1.bf16.msra.mxu0 0
  %3082 = vmatprep.subr.bf16.mxu0 0
  %3083 = vmatpush1.bf16.msra.mxu0 0
  %3084 = vmatprep.subr.bf16.mxu0 0
  %3085 = vmatpush1.bf16.msra.mxu0 0
  %3086 = vmatprep.subr.bf16.mxu0 0
  %3087 = vmatpush1.bf16.msra.mxu0 0
  %3088 = vmatprep.subr.bf16.mxu0 0
  %3089 = vmatpush1.bf16.msra.mxu0 0
  %3090 = vmatprep.mubr.bf16.mxu0 0
  %3091 = vmatmul.mubr.bf16.gmra.mrb[0].mxu0 %v3015
  %v3092 = vpop.f32.mrb[0].mxu0
  %v3093 = vadd.f32 %v2926, %v3092
  %v3094 = vpop.f32.mrb[0].mxu0
  %v3095 = vadd.f32 %v2928, %v3094
  %v3096 = vpop.f32.mrb[0].mxu0
  %v3097 = vpop.f32.mrb[0].mxu0
  %3098 = vdwg.mxu0
  %3099 = vmatprep.subr.bf16.mxu0 %v1006
  %3100 = vmatpush1.bf16.msra.mxu0 %v1005
  %3101 = vmatprep.subr.bf16.mxu0 0
  %3102 = vmatpush1.bf16.msra.mxu0 0
  %3103 = vmatprep.subr.bf16.mxu0 0
  %3104 = vmatpush1.bf16.msra.mxu0 0
  %3105 = vmatprep.subr.bf16.mxu0 0
  %3106 = vmatpush1.bf16.msra.mxu0 0
  %3107 = vmatprep.subr.bf16.mxu0 0
  %3108 = vmatpush1.bf16.msra.mxu0 0
  %3109 = vmatprep.subr.bf16.mxu0 0
  %3110 = vmatpush1.bf16.msra.mxu0 0
  %3111 = vmatprep.subr.bf16.mxu0 0
  %3112 = vmatpush1.bf16.msra.mxu0 0
  %3113 = vmatprep.subr.bf16.mxu0 0
  %3114 = vmatpush1.bf16.msra.mxu0 0
  %3115 = vmatprep.subr.bf16.mxu0 0
  %3116 = vmatpush1.bf16.msra.mxu0 0
  %3117 = vmatprep.subr.bf16.mxu0 0
  %3118 = vmatpush1.bf16.msra.mxu0 0
  %3119 = vmatprep.subr.bf16.mxu0 0
  %3120 = vmatpush1.bf16.msra.mxu0 0
  %3121 = vmatprep.subr.bf16.mxu0 0
  %3122 = vmatpush1.bf16.msra.mxu0 0
  %3123 = vmatprep.subr.bf16.mxu0 0
  %3124 = vmatpush1.bf16.msra.mxu0 0
  %3125 = vmatprep.subr.bf16.mxu0 0
  %3126 = vmatpush1.bf16.msra.mxu0 0
  %3127 = vmatprep.subr.bf16.mxu0 0
  %3128 = vmatpush1.bf16.msra.mxu0 0
  %3129 = vmatprep.subr.bf16.mxu0 0
  %3130 = vmatpush1.bf16.msra.mxu0 0
  %3131 = vmatprep.mubr.bf16.mxu0 0
  %3132 = vmatmul.mubr.bf16.gmra.mrb[0].mxu0 %v3015
  %v3133 = vpop.f32.mrb[0].mxu0
  %v3134 = vadd.f32 %v2967, %v3133
  %v3135 = vpop.f32.mrb[0].mxu0
  %v3136 = vadd.f32 %v2969, %v3135
  %v3137 = vpop.f32.mrb[0].mxu0
  %v3138 = vpop.f32.mrb[0].mxu0
  %3139 = vdwg.mxu0
  %3140 = vmatprep.subr.bf16.mxu0 %v1008
  %3141 = vmatpush1.bf16.msra.mxu0 %v1007
  %3142 = vmatprep.subr.bf16.mxu0 0
  %3143 = vmatpush1.bf16.msra.mxu0 0
  %3144 = vmatprep.subr.bf16.mxu0 0
  %3145 = vmatpush1.bf16.msra.mxu0 0
  %3146 = vmatprep.subr.bf16.mxu0 0
  %3147 = vmatpush1.bf16.msra.mxu0 0
  %3148 = vmatprep.subr.bf16.mxu0 0
  %3149 = vmatpush1.bf16.msra.mxu0 0
  %3150 = vmatprep.subr.bf16.mxu0 0
  %3151 = vmatpush1.bf16.msra.mxu0 0
  %3152 = vmatprep.subr.bf16.mxu0 0
  %3153 = vmatpush1.bf16.msra.mxu0 0
  %3154 = vmatprep.subr.bf16.mxu0 0
  %3155 = vmatpush1.bf16.msra.mxu0 0
  %3156 = vmatprep.subr.bf16.mxu0 0
  %3157 = vmatpush1.bf16.msra.mxu0 0
  %3158 = vmatprep.subr.bf16.mxu0 0
  %3159 = vmatpush1.bf16.msra.mxu0 0
  %3160 = vmatprep.subr.bf16.mxu0 0
  %3161 = vmatpush1.bf16.msra.mxu0 0
  %3162 = vmatprep.subr.bf16.mxu0 0
  %3163 = vmatpush1.bf16.msra.mxu0 0
  %3164 = vmatprep.subr.bf16.mxu0 0
  %3165 = vmatpush1.bf16.msra.mxu0 0
  %3166 = vmatprep.subr.bf16.mxu0 0
  %3167 = vmatpush1.bf16.msra.mxu0 0
  %3168 = vmatprep.subr.bf16.mxu0 0
  %3169 = vmatpush1.bf16.msra.mxu0 0
  %3170 = vmatprep.subr.bf16.mxu0 0
  %3171 = vmatpush1.bf16.msra.mxu0 0
  %3172 = vmatprep.mubr.bf16.mxu0 0
  %3173 = vmatmul.mubr.bf16.gmra.mrb[0].mxu0 %v3015
  %v3174 = vpop.f32.mrb[0].mxu0
  %v3175 = vadd.f32 %v3008, %v3174
  %v3176 = vpop.f32.mrb[0].mxu0
  %v3177 = vadd.f32 %v3010, %v3176
  %v3178 = vpop.f32.mrb[0].mxu0
  %v3179 = vpop.f32.mrb[0].mxu0
  %3180 = vdwg.mxu0
  %v3181 = vadd.f32 %v3052, %v1189
  %v3182 = vadd.f32 %v3054, %v1193
  %v3183 = vadd.f32 %v3093, %v1197
  %v3184 = vadd.f32 %v3095, %v1201
  %v3185 = vadd.f32 %v3134, %v1205
  %v3186 = vadd.f32 %v3136, %v1209
  %v3187 = vadd.f32 %v3175, %v1213
  %v3188 = vadd.f32 %v3177, %v1217
  %v3189 = vxor.u32 %v3181, 2147483648
  %v3190 = vxor.u32 %v3182, 2147483648
  %v3191 = vmul.f32 %v3189, 1.442695
  %v3192 = vpow.pop %v3191
  %v3193 = vmul.f32 %v3190, 1.442695
  %v3194 = vpow.pop %v3193
  %v3195 = vadd.f32 %v3192, 1.0
  %v3196 = vadd.f32 %v3194, 1.0
  %v3197 = vrcp.pop %v3195
  %v3198 = vmul.f32 1.0, %v3197
  %v3199 = vrcp.pop %v3196
  %v3200 = vmul.f32 1.0, %v3199
  %v3201 = vxor.u32 %v3183, 2147483648
  %v3202 = vxor.u32 %v3184, 2147483648
  %v3203 = vmul.f32 %v3201, 1.442695
  %v3204 = vpow.pop %v3203
  %v3205 = vmul.f32 %v3202, 1.442695
  %v3206 = vpow.pop %v3205
  %v3207 = vadd.f32 %v3204, 1.0
  %v3208 = vadd.f32 %v3206, 1.0
  %v3209 = vrcp.pop %v3207
  %v3210 = vmul.f32 1.0, %v3209
  %v3211 = vrcp.pop %v3208
  %v3212 = vmul.f32 1.0, %v3211
  %v3213 = vtanh.pop %v3185
  %v3214 = vtanh.pop %v3186
  %v3215 = vxor.u32 %v3187, 2147483648
  %v3216 = vxor.u32 %v3188, 2147483648
  %v3217 = vmul.f32 %v3215, 1.442695
  %v3218 = vpow.pop %v3217
  %v3219 = vmul.f32 %v3216, 1.442695
  %v3220 = vpow.pop %v3219
  %v3221 = vadd.f32 %v3218, 1.0
  %v3222 = vadd.f32 %v3220, 1.0
  %v3223 = vrcp.pop %v3221
  %v3224 = vmul.f32 1.0, %v3223
  %v3225 = vrcp.pop %v3222
  %v3226 = vmul.f32 1.0, %v3225
  %v3227 = vmul.f32 %v3210, %v2840
  %v3228 = vmul.f32 %v3212, %v2841
  %v3229 = vmul.f32 %v3198, %v3213
  %v3230 = vmul.f32 %v3200, %v3214
  %v3231 = vadd.f32 %v3227, %v3229
  %v3232 = vadd.f32 %v3228, %v3230
  %v3233 = vtanh.pop %v3231
  %v3234 = vtanh.pop %v3232
  %v3235 = vmul.f32 %v3224, %v3233
  %v3236 = vmul.f32 %v3226, %v3234
  %v3237 = vpack.c.bf16 %v3235, %v3235
  %v3238 = vpack.c.bf16 %v3236, %v3236
  %s3239 = scalar_lea.vmem %s0, 24
  %v3240 = vld [vmem:[%s3239] sm:$0xf]
  %3241 = vmatprep.subr.bf16.mxu0 %v558
  %3242 = vmatpush1.bf16.msra.mxu0 %v557
  %3243 = vmatprep.subr.bf16.mxu0 %v566
  %3244 = vmatpush1.bf16.msra.mxu0 %v565
  %3245 = vmatprep.subr.bf16.mxu0 %v574
  %3246 = vmatpush1.bf16.msra.mxu0 %v573
  %3247 = vmatprep.subr.bf16.mxu0 %v582
  %3248 = vmatpush1.bf16.msra.mxu0 %v581
  %3249 = vmatprep.subr.bf16.mxu0 %v590
  %3250 = vmatpush1.bf16.msra.mxu0 %v589
  %3251 = vmatprep.subr.bf16.mxu0 %v598
  %3252 = vmatpush1.bf16.msra.mxu0 %v597
  %3253 = vmatprep.subr.bf16.mxu0 %v606
  %3254 = vmatpush1.bf16.msra.mxu0 %v605
  %3255 = vmatprep.subr.bf16.mxu0 %v614
  %3256 = vmatpush1.bf16.msra.mxu0 %v613
  %3257 = vmatprep.subr.bf16.mxu0 %v622
  %3258 = vmatpush1.bf16.msra.mxu0 %v621
  %3259 = vmatprep.subr.bf16.mxu0 %v630
  %3260 = vmatpush1.bf16.msra.mxu0 %v629
  %3261 = vmatprep.subr.bf16.mxu0 %v638
  %3262 = vmatpush1.bf16.msra.mxu0 %v637
  %3263 = vmatprep.subr.bf16.mxu0 %v646
  %3264 = vmatpush1.bf16.msra.mxu0 %v645
  %3265 = vmatprep.subr.bf16.mxu0 %v654
  %3266 = vmatpush1.bf16.msra.mxu0 %v653
  %3267 = vmatprep.subr.bf16.mxu0 %v662
  %3268 = vmatpush1.bf16.msra.mxu0 %v661
  %3269 = vmatprep.subr.bf16.mxu0 %v670
  %3270 = vmatpush1.bf16.msra.mxu0 %v669
  %3271 = vmatprep.subr.bf16.mxu0 %v678
  %3272 = vmatpush1.bf16.msra.mxu0 %v677
  %3273 = vmatprep.mubr.bf16.mxu0 %v3238
  %3274 = vmatmul.mubr.bf16.gmra.mrb[0].mxu0 %v3237
  %v3275 = vpop.f32.mrb[0].mxu0
  %v3276 = vadd.f32 0.0, %v3275
  %v3277 = vpop.f32.mrb[0].mxu0
  %v3278 = vadd.f32 0.0, %v3277
  %v3279 = vpop.f32.mrb[0].mxu0
  %v3280 = vpop.f32.mrb[0].mxu0
  %3281 = vdwg.mxu0
  %3282 = vmatprep.subr.bf16.mxu0 %v560
  %3283 = vmatpush1.bf16.msra.mxu0 %v559
  %3284 = vmatprep.subr.bf16.mxu0 %v568
  %3285 = vmatpush1.bf16.msra.mxu0 %v567
  %3286 = vmatprep.subr.bf16.mxu0 %v576
  %3287 = vmatpush1.bf16.msra.mxu0 %v575
  %3288 = vmatprep.subr.bf16.mxu0 %v584
  %3289 = vmatpush1.bf16.msra.mxu0 %v583
  %3290 = vmatprep.subr.bf16.mxu0 %v592
  %3291 = vmatpush1.bf16.msra.mxu0 %v591
  %3292 = vmatprep.subr.bf16.mxu0 %v600
  %3293 = vmatpush1.bf16.msra.mxu0 %v599
  %3294 = vmatprep.subr.bf16.mxu0 %v608
  %3295 = vmatpush1.bf16.msra.mxu0 %v607
  %3296 = vmatprep.subr.bf16.mxu0 %v616
  %3297 = vmatpush1.bf16.msra.mxu0 %v615
  %3298 = vmatprep.subr.bf16.mxu0 %v624
  %3299 = vmatpush1.bf16.msra.mxu0 %v623
  %3300 = vmatprep.subr.bf16.mxu0 %v632
  %3301 = vmatpush1.bf16.msra.mxu0 %v631
  %3302 = vmatprep.subr.bf16.mxu0 %v640
  %3303 = vmatpush1.bf16.msra.mxu0 %v639
  %3304 = vmatprep.subr.bf16.mxu0 %v648
  %3305 = vmatpush1.bf16.msra.mxu0 %v647
  %3306 = vmatprep.subr.bf16.mxu0 %v656
  %3307 = vmatpush1.bf16.msra.mxu0 %v655
  %3308 = vmatprep.subr.bf16.mxu0 %v664
  %3309 = vmatpush1.bf16.msra.mxu0 %v663
  %3310 = vmatprep.subr.bf16.mxu0 %v672
  %3311 = vmatpush1.bf16.msra.mxu0 %v671
  %3312 = vmatprep.subr.bf16.mxu0 %v680
  %3313 = vmatpush1.bf16.msra.mxu0 %v679
  %3314 = vmatprep.mubr.bf16.mxu0 %v3238
  %3315 = vmatmul.mubr.bf16.gmra.mrb[0].mxu0 %v3237
  %v3316 = vpop.f32.mrb[0].mxu0
  %v3317 = vadd.f32 0.0, %v3316
  %v3318 = vpop.f32.mrb[0].mxu0
  %v3319 = vadd.f32 0.0, %v3318
  %v3320 = vpop.f32.mrb[0].mxu0
  %v3321 = vpop.f32.mrb[0].mxu0
  %3322 = vdwg.mxu0
  %3323 = vmatprep.subr.bf16.mxu0 %v562
  %3324 = vmatpush1.bf16.msra.mxu0 %v561
  %3325 = vmatprep.subr.bf16.mxu0 %v570
  %3326 = vmatpush1.bf16.msra.mxu0 %v569
  %3327 = vmatprep.subr.bf16.mxu0 %v578
  %3328 = vmatpush1.bf16.msra.mxu0 %v577
  %3329 = vmatprep.subr.bf16.mxu0 %v586
  %3330 = vmatpush1.bf16.msra.mxu0 %v585
  %3331 = vmatprep.subr.bf16.mxu0 %v594
  %3332 = vmatpush1.bf16.msra.mxu0 %v593
  %3333 = vmatprep.subr.bf16.mxu0 %v602
  %3334 = vmatpush1.bf16.msra.mxu0 %v601
  %3335 = vmatprep.subr.bf16.mxu0 %v610
  %3336 = vmatpush1.bf16.msra.mxu0 %v609
  %3337 = vmatprep.subr.bf16.mxu0 %v618
  %3338 = vmatpush1.bf16.msra.mxu0 %v617
  %3339 = vmatprep.subr.bf16.mxu0 %v626
  %3340 = vmatpush1.bf16.msra.mxu0 %v625
  %3341 = vmatprep.subr.bf16.mxu0 %v634
  %3342 = vmatpush1.bf16.msra.mxu0 %v633
  %3343 = vmatprep.subr.bf16.mxu0 %v642
  %3344 = vmatpush1.bf16.msra.mxu0 %v641
  %3345 = vmatprep.subr.bf16.mxu0 %v650
  %3346 = vmatpush1.bf16.msra.mxu0 %v649
  %3347 = vmatprep.subr.bf16.mxu0 %v658
  %3348 = vmatpush1.bf16.msra.mxu0 %v657
  %3349 = vmatprep.subr.bf16.mxu0 %v666
  %3350 = vmatpush1.bf16.msra.mxu0 %v665
  %3351 = vmatprep.subr.bf16.mxu0 %v674
  %3352 = vmatpush1.bf16.msra.mxu0 %v673
  %3353 = vmatprep.subr.bf16.mxu0 %v682
  %3354 = vmatpush1.bf16.msra.mxu0 %v681
  %3355 = vmatprep.mubr.bf16.mxu0 %v3238
  %3356 = vmatmul.mubr.bf16.gmra.mrb[0].mxu0 %v3237
  %v3357 = vpop.f32.mrb[0].mxu0
  %v3358 = vadd.f32 0.0, %v3357
  %v3359 = vpop.f32.mrb[0].mxu0
  %v3360 = vadd.f32 0.0, %v3359
  %v3361 = vpop.f32.mrb[0].mxu0
  %v3362 = vpop.f32.mrb[0].mxu0
  %3363 = vdwg.mxu0
  %3364 = vmatprep.subr.bf16.mxu0 %v564
  %3365 = vmatpush1.bf16.msra.mxu0 %v563
  %3366 = vmatprep.subr.bf16.mxu0 %v572
  %3367 = vmatpush1.bf16.msra.mxu0 %v571
  %3368 = vmatprep.subr.bf16.mxu0 %v580
  %3369 = vmatpush1.bf16.msra.mxu0 %v579
  %3370 = vmatprep.subr.bf16.mxu0 %v588
  %3371 = vmatpush1.bf16.msra.mxu0 %v587
  %3372 = vmatprep.subr.bf16.mxu0 %v596
  %3373 = vmatpush1.bf16.msra.mxu0 %v595
  %3374 = vmatprep.subr.bf16.mxu0 %v604
  %3375 = vmatpush1.bf16.msra.mxu0 %v603
  %3376 = vmatprep.subr.bf16.mxu0 %v612
  %3377 = vmatpush1.bf16.msra.mxu0 %v611
  %3378 = vmatprep.subr.bf16.mxu0 %v620
  %3379 = vmatpush1.bf16.msra.mxu0 %v619
  %3380 = vmatprep.subr.bf16.mxu0 %v628
  %3381 = vmatpush1.bf16.msra.mxu0 %v627
  %3382 = vmatprep.subr.bf16.mxu0 %v636
  %3383 = vmatpush1.bf16.msra.mxu0 %v635
  %3384 = vmatprep.subr.bf16.mxu0 %v644
  %3385 = vmatpush1.bf16.msra.mxu0 %v643
  %3386 = vmatprep.subr.bf16.mxu0 %v652
  %3387 = vmatpush1.bf16.msra.mxu0 %v651
  %3388 = vmatprep.subr.bf16.mxu0 %v660
  %3389 = vmatpush1.bf16.msra.mxu0 %v659
  %3390 = vmatprep.subr.bf16.mxu0 %v668
  %3391 = vmatpush1.bf16.msra.mxu0 %v667
  %3392 = vmatprep.subr.bf16.mxu0 %v676
  %3393 = vmatpush1.bf16.msra.mxu0 %v675
  %3394 = vmatprep.subr.bf16.mxu0 %v684
  %3395 = vmatpush1.bf16.msra.mxu0 %v683
  %3396 = vmatprep.mubr.bf16.mxu0 %v3238
  %3397 = vmatmul.mubr.bf16.gmra.mrb[0].mxu0 %v3237
  %v3398 = vpop.f32.mrb[0].mxu0
  %v3399 = vadd.f32 0.0, %v3398
  %v3400 = vpop.f32.mrb[0].mxu0
  %v3401 = vadd.f32 0.0, %v3400
  %v3402 = vpop.f32.mrb[0].mxu0
  %v3403 = vpop.f32.mrb[0].mxu0
  %3404 = vdwg.mxu0
  %v3406 = vsel %vm1017, %v3240, 0
  %3408 = vmatprep.subr.bf16.mxu0 %v1002
  %3409 = vmatpush1.bf16.msra.mxu0 %v1001
  %3410 = vmatprep.subr.bf16.mxu0 0
  %3411 = vmatpush1.bf16.msra.mxu0 0
  %3412 = vmatprep.subr.bf16.mxu0 0
  %3413 = vmatpush1.bf16.msra.mxu0 0
  %3414 = vmatprep.subr.bf16.mxu0 0
  %3415 = vmatpush1.bf16.msra.mxu0 0
  %3416 = vmatprep.subr.bf16.mxu0 0
  %3417 = vmatpush1.bf16.msra.mxu0 0
  %3418 = vmatprep.subr.bf16.mxu0 0
  %3419 = vmatpush1.bf16.msra.mxu0 0
  %3420 = vmatprep.subr.bf16.mxu0 0
  %3421 = vmatpush1.bf16.msra.mxu0 0
  %3422 = vmatprep.subr.bf16.mxu0 0
  %3423 = vmatpush1.bf16.msra.mxu0 0
  %3424 = vmatprep.subr.bf16.mxu0 0
  %3425 = vmatpush1.bf16.msra.mxu0 0
  %3426 = vmatprep.subr.bf16.mxu0 0
  %3427 = vmatpush1.bf16.msra.mxu0 0
  %3428 = vmatprep.subr.bf16.mxu0 0
  %3429 = vmatpush1.bf16.msra.mxu0 0
  %3430 = vmatprep.subr.bf16.mxu0 0
  %3431 = vmatpush1.bf16.msra.mxu0 0
  %3432 = vmatprep.subr.bf16.mxu0 0
  %3433 = vmatpush1.bf16.msra.mxu0 0
  %3434 = vmatprep.subr.bf16.mxu0 0
  %3435 = vmatpush1.bf16.msra.mxu0 0
  %3436 = vmatprep.subr.bf16.mxu0 0
  %3437 = vmatpush1.bf16.msra.mxu0 0
  %3438 = vmatprep.subr.bf16.mxu0 0
  %3439 = vmatpush1.bf16.msra.mxu0 0
  %3440 = vmatprep.mubr.bf16.mxu0 0
  %3441 = vmatmul.mubr.bf16.gmra.mrb[0].mxu0 %v3406
  %v3442 = vpop.f32.mrb[0].mxu0
  %v3443 = vadd.f32 %v3276, %v3442
  %v3444 = vpop.f32.mrb[0].mxu0
  %v3445 = vadd.f32 %v3278, %v3444
  %v3446 = vpop.f32.mrb[0].mxu0
  %v3447 = vpop.f32.mrb[0].mxu0
  %3448 = vdwg.mxu0
  %3449 = vmatprep.subr.bf16.mxu0 %v1004
  %3450 = vmatpush1.bf16.msra.mxu0 %v1003
  %3451 = vmatprep.subr.bf16.mxu0 0
  %3452 = vmatpush1.bf16.msra.mxu0 0
  %3453 = vmatprep.subr.bf16.mxu0 0
  %3454 = vmatpush1.bf16.msra.mxu0 0
  %3455 = vmatprep.subr.bf16.mxu0 0
  %3456 = vmatpush1.bf16.msra.mxu0 0
  %3457 = vmatprep.subr.bf16.mxu0 0
  %3458 = vmatpush1.bf16.msra.mxu0 0
  %3459 = vmatprep.subr.bf16.mxu0 0
  %3460 = vmatpush1.bf16.msra.mxu0 0
  %3461 = vmatprep.subr.bf16.mxu0 0
  %3462 = vmatpush1.bf16.msra.mxu0 0
  %3463 = vmatprep.subr.bf16.mxu0 0
  %3464 = vmatpush1.bf16.msra.mxu0 0
  %3465 = vmatprep.subr.bf16.mxu0 0
  %3466 = vmatpush1.bf16.msra.mxu0 0
  %3467 = vmatprep.subr.bf16.mxu0 0
  %3468 = vmatpush1.bf16.msra.mxu0 0
  %3469 = vmatprep.subr.bf16.mxu0 0
  %3470 = vmatpush1.bf16.msra.mxu0 0
  %3471 = vmatprep.subr.bf16.mxu0 0
  %3472 = vmatpush1.bf16.msra.mxu0 0
  %3473 = vmatprep.subr.bf16.mxu0 0
  %3474 = vmatpush1.bf16.msra.mxu0 0
  %3475 = vmatprep.subr.bf16.mxu0 0
  %3476 = vmatpush1.bf16.msra.mxu0 0
  %3477 = vmatprep.subr.bf16.mxu0 0
  %3478 = vmatpush1.bf16.msra.mxu0 0
  %3479 = vmatprep.subr.bf16.mxu0 0
  %3480 = vmatpush1.bf16.msra.mxu0 0
  %3481 = vmatprep.mubr.bf16.mxu0 0
  %3482 = vmatmul.mubr.bf16.gmra.mrb[0].mxu0 %v3406
  %v3483 = vpop.f32.mrb[0].mxu0
  %v3484 = vadd.f32 %v3317, %v3483
  %v3485 = vpop.f32.mrb[0].mxu0
  %v3486 = vadd.f32 %v3319, %v3485
  %v3487 = vpop.f32.mrb[0].mxu0
  %v3488 = vpop.f32.mrb[0].mxu0
  %3489 = vdwg.mxu0
  %3490 = vmatprep.subr.bf16.mxu0 %v1006
  %3491 = vmatpush1.bf16.msra.mxu0 %v1005
  %3492 = vmatprep.subr.bf16.mxu0 0
  %3493 = vmatpush1.bf16.msra.mxu0 0
  %3494 = vmatprep.subr.bf16.mxu0 0
  %3495 = vmatpush1.bf16.msra.mxu0 0
  %3496 = vmatprep.subr.bf16.mxu0 0
  %3497 = vmatpush1.bf16.msra.mxu0 0
  %3498 = vmatprep.subr.bf16.mxu0 0
  %3499 = vmatpush1.bf16.msra.mxu0 0
  %3500 = vmatprep.subr.bf16.mxu0 0
  %3501 = vmatpush1.bf16.msra.mxu0 0
  %3502 = vmatprep.subr.bf16.mxu0 0
  %3503 = vmatpush1.bf16.msra.mxu0 0
  %3504 = vmatprep.subr.bf16.mxu0 0
  %3505 = vmatpush1.bf16.msra.mxu0 0
  %3506 = vmatprep.subr.bf16.mxu0 0
  %3507 = vmatpush1.bf16.msra.mxu0 0
  %3508 = vmatprep.subr.bf16.mxu0 0
  %3509 = vmatpush1.bf16.msra.mxu0 0
  %3510 = vmatprep.subr.bf16.mxu0 0
  %3511 = vmatpush1.bf16.msra.mxu0 0
  %3512 = vmatprep.subr.bf16.mxu0 0
  %3513 = vmatpush1.bf16.msra.mxu0 0
  %3514 = vmatprep.subr.bf16.mxu0 0
  %3515 = vmatpush1.bf16.msra.mxu0 0
  %3516 = vmatprep.subr.bf16.mxu0 0
  %3517 = vmatpush1.bf16.msra.mxu0 0
  %3518 = vmatprep.subr.bf16.mxu0 0
  %3519 = vmatpush1.bf16.msra.mxu0 0
  %3520 = vmatprep.subr.bf16.mxu0 0
  %3521 = vmatpush1.bf16.msra.mxu0 0
  %3522 = vmatprep.mubr.bf16.mxu0 0
  %3523 = vmatmul.mubr.bf16.gmra.mrb[0].mxu0 %v3406
  %v3524 = vpop.f32.mrb[0].mxu0
  %v3525 = vadd.f32 %v3358, %v3524
  %v3526 = vpop.f32.mrb[0].mxu0
  %v3527 = vadd.f32 %v3360, %v3526
  %v3528 = vpop.f32.mrb[0].mxu0
  %v3529 = vpop.f32.mrb[0].mxu0
  %3530 = vdwg.mxu0
  %3531 = vmatprep.subr.bf16.mxu0 %v1008
  %3532 = vmatpush1.bf16.msra.mxu0 %v1007
  %3533 = vmatprep.subr.bf16.mxu0 0
  %3534 = vmatpush1.bf16.msra.mxu0 0
  %3535 = vmatprep.subr.bf16.mxu0 0
  %3536 = vmatpush1.bf16.msra.mxu0 0
  %3537 = vmatprep.subr.bf16.mxu0 0
  %3538 = vmatpush1.bf16.msra.mxu0 0
  %3539 = vmatprep.subr.bf16.mxu0 0
  %3540 = vmatpush1.bf16.msra.mxu0 0
  %3541 = vmatprep.subr.bf16.mxu0 0
  %3542 = vmatpush1.bf16.msra.mxu0 0
  %3543 = vmatprep.subr.bf16.mxu0 0
  %3544 = vmatpush1.bf16.msra.mxu0 0
  %3545 = vmatprep.subr.bf16.mxu0 0
  %3546 = vmatpush1.bf16.msra.mxu0 0
  %3547 = vmatprep.subr.bf16.mxu0 0
  %3548 = vmatpush1.bf16.msra.mxu0 0
  %3549 = vmatprep.subr.bf16.mxu0 0
  %3550 = vmatpush1.bf16.msra.mxu0 0
  %3551 = vmatprep.subr.bf16.mxu0 0
  %3552 = vmatpush1.bf16.msra.mxu0 0
  %3553 = vmatprep.subr.bf16.mxu0 0
  %3554 = vmatpush1.bf16.msra.mxu0 0
  %3555 = vmatprep.subr.bf16.mxu0 0
  %3556 = vmatpush1.bf16.msra.mxu0 0
  %3557 = vmatprep.subr.bf16.mxu0 0
  %3558 = vmatpush1.bf16.msra.mxu0 0
  %3559 = vmatprep.subr.bf16.mxu0 0
  %3560 = vmatpush1.bf16.msra.mxu0 0
  %3561 = vmatprep.subr.bf16.mxu0 0
  %3562 = vmatpush1.bf16.msra.mxu0 0
  %3563 = vmatprep.mubr.bf16.mxu0 0
  %3564 = vmatmul.mubr.bf16.gmra.mrb[0].mxu0 %v3406
  %v3565 = vpop.f32.mrb[0].mxu0
  %v3566 = vadd.f32 %v3399, %v3565
  %v3567 = vpop.f32.mrb[0].mxu0
  %v3568 = vadd.f32 %v3401, %v3567
  %v3569 = vpop.f32.mrb[0].mxu0
  %v3570 = vpop.f32.mrb[0].mxu0
  %3571 = vdwg.mxu0
  %v3572 = vadd.f32 %v3443, %v1189
  %v3573 = vadd.f32 %v3445, %v1193
  %v3574 = vadd.f32 %v3484, %v1197
  %v3575 = vadd.f32 %v3486, %v1201
  %v3576 = vadd.f32 %v3525, %v1205
  %v3577 = vadd.f32 %v3527, %v1209
  %v3578 = vadd.f32 %v3566, %v1213
  %v3579 = vadd.f32 %v3568, %v1217
  %v3580 = vxor.u32 %v3572, 2147483648
  %v3581 = vxor.u32 %v3573, 2147483648
  %v3582 = vmul.f32 %v3580, 1.442695
  %v3583 = vpow.pop %v3582
  %v3584 = vmul.f32 %v3581, 1.442695
  %v3585 = vpow.pop %v3584
  %v3586 = vadd.f32 %v3583, 1.0
  %v3587 = vadd.f32 %v3585, 1.0
  %v3588 = vrcp.pop %v3586
  %v3589 = vmul.f32 1.0, %v3588
  %v3590 = vrcp.pop %v3587
  %v3591 = vmul.f32 1.0, %v3590
  %v3592 = vxor.u32 %v3574, 2147483648
  %v3593 = vxor.u32 %v3575, 2147483648
  %v3594 = vmul.f32 %v3592, 1.442695
  %v3595 = vpow.pop %v3594
  %v3596 = vmul.f32 %v3593, 1.442695
  %v3597 = vpow.pop %v3596
  %v3598 = vadd.f32 %v3595, 1.0
  %v3599 = vadd.f32 %v3597, 1.0
  %v3600 = vrcp.pop %v3598
  %v3601 = vmul.f32 1.0, %v3600
  %v3602 = vrcp.pop %v3599
  %v3603 = vmul.f32 1.0, %v3602
  %v3604 = vtanh.pop %v3576
  %v3605 = vtanh.pop %v3577
  %v3606 = vxor.u32 %v3578, 2147483648
  %v3607 = vxor.u32 %v3579, 2147483648
  %v3608 = vmul.f32 %v3606, 1.442695
  %v3609 = vpow.pop %v3608
  %v3610 = vmul.f32 %v3607, 1.442695
  %v3611 = vpow.pop %v3610
  %v3612 = vadd.f32 %v3609, 1.0
  %v3613 = vadd.f32 %v3611, 1.0
  %v3614 = vrcp.pop %v3612
  %v3615 = vmul.f32 1.0, %v3614
  %v3616 = vrcp.pop %v3613
  %v3617 = vmul.f32 1.0, %v3616
  %v3618 = vmul.f32 %v3601, %v3231
  %v3619 = vmul.f32 %v3603, %v3232
  %v3620 = vmul.f32 %v3589, %v3604
  %v3621 = vmul.f32 %v3591, %v3605
  %v3622 = vadd.f32 %v3618, %v3620
  %v3623 = vadd.f32 %v3619, %v3621
  %v3624 = vtanh.pop %v3622
  %v3625 = vtanh.pop %v3623
  %v3626 = vmul.f32 %v3615, %v3624
  %v3627 = vmul.f32 %v3617, %v3625
  %v3628 = vpack.c.bf16 %v3626, %v3626
  %v3629 = vpack.c.bf16 %v3627, %v3627
  %s3630 = scalar_lea.vmem %s0, 28
  %v3631 = vld [vmem:[%s3630] sm:$0xf]
  %3632 = vmatprep.subr.bf16.mxu0 %v558
  %3633 = vmatpush1.bf16.msra.mxu0 %v557
  %3634 = vmatprep.subr.bf16.mxu0 %v566
  %3635 = vmatpush1.bf16.msra.mxu0 %v565
  %3636 = vmatprep.subr.bf16.mxu0 %v574
  %3637 = vmatpush1.bf16.msra.mxu0 %v573
  %3638 = vmatprep.subr.bf16.mxu0 %v582
  %3639 = vmatpush1.bf16.msra.mxu0 %v581
  %3640 = vmatprep.subr.bf16.mxu0 %v590
  %3641 = vmatpush1.bf16.msra.mxu0 %v589
  %3642 = vmatprep.subr.bf16.mxu0 %v598
  %3643 = vmatpush1.bf16.msra.mxu0 %v597
  %3644 = vmatprep.subr.bf16.mxu0 %v606
  %3645 = vmatpush1.bf16.msra.mxu0 %v605
  %3646 = vmatprep.subr.bf16.mxu0 %v614
  %3647 = vmatpush1.bf16.msra.mxu0 %v613
  %3648 = vmatprep.subr.bf16.mxu0 %v622
  %3649 = vmatpush1.bf16.msra.mxu0 %v621
  %3650 = vmatprep.subr.bf16.mxu0 %v630
  %3651 = vmatpush1.bf16.msra.mxu0 %v629
  %3652 = vmatprep.subr.bf16.mxu0 %v638
  %3653 = vmatpush1.bf16.msra.mxu0 %v637
  %3654 = vmatprep.subr.bf16.mxu0 %v646
  %3655 = vmatpush1.bf16.msra.mxu0 %v645
  %3656 = vmatprep.subr.bf16.mxu0 %v654
  %3657 = vmatpush1.bf16.msra.mxu0 %v653
  %3658 = vmatprep.subr.bf16.mxu0 %v662
  %3659 = vmatpush1.bf16.msra.mxu0 %v661
  %3660 = vmatprep.subr.bf16.mxu0 %v670
  %3661 = vmatpush1.bf16.msra.mxu0 %v669
  %3662 = vmatprep.subr.bf16.mxu0 %v678
  %3663 = vmatpush1.bf16.msra.mxu0 %v677
  %3664 = vmatprep.mubr.bf16.mxu0 %v3629
  %3665 = vmatmul.mubr.bf16.gmra.mrb[0].mxu0 %v3628
  %v3666 = vpop.f32.mrb[0].mxu0
  %v3667 = vadd.f32 0.0, %v3666
  %v3668 = vpop.f32.mrb[0].mxu0
  %v3669 = vadd.f32 0.0, %v3668
  %v3670 = vpop.f32.mrb[0].mxu0
  %v3671 = vpop.f32.mrb[0].mxu0
  %3672 = vdwg.mxu0
  %3673 = vmatprep.subr.bf16.mxu0 %v560
  %3674 = vmatpush1.bf16.msra.mxu0 %v559
  %3675 = vmatprep.subr.bf16.mxu0 %v568
  %3676 = vmatpush1.bf16.msra.mxu0 %v567
  %3677 = vmatprep.subr.bf16.mxu0 %v576
  %3678 = vmatpush1.bf16.msra.mxu0 %v575
  %3679 = vmatprep.subr.bf16.mxu0 %v584
  %3680 = vmatpush1.bf16.msra.mxu0 %v583
  %3681 = vmatprep.subr.bf16.mxu0 %v592
  %3682 = vmatpush1.bf16.msra.mxu0 %v591
  %3683 = vmatprep.subr.bf16.mxu0 %v600
  %3684 = vmatpush1.bf16.msra.mxu0 %v599
  %3685 = vmatprep.subr.bf16.mxu0 %v608
  %3686 = vmatpush1.bf16.msra.mxu0 %v607
  %3687 = vmatprep.subr.bf16.mxu0 %v616
  %3688 = vmatpush1.bf16.msra.mxu0 %v615
  %3689 = vmatprep.subr.bf16.mxu0 %v624
  %3690 = vmatpush1.bf16.msra.mxu0 %v623
  %3691 = vmatprep.subr.bf16.mxu0 %v632
  %3692 = vmatpush1.bf16.msra.mxu0 %v631
  %3693 = vmatprep.subr.bf16.mxu0 %v640
  %3694 = vmatpush1.bf16.msra.mxu0 %v639
  %3695 = vmatprep.subr.bf16.mxu0 %v648
  %3696 = vmatpush1.bf16.msra.mxu0 %v647
  %3697 = vmatprep.subr.bf16.mxu0 %v656
  %3698 = vmatpush1.bf16.msra.mxu0 %v655
  %3699 = vmatprep.subr.bf16.mxu0 %v664
  %3700 = vmatpush1.bf16.msra.mxu0 %v663
  %3701 = vmatprep.subr.bf16.mxu0 %v672
  %3702 = vmatpush1.bf16.msra.mxu0 %v671
  %3703 = vmatprep.subr.bf16.mxu0 %v680
  %3704 = vmatpush1.bf16.msra.mxu0 %v679
  %3705 = vmatprep.mubr.bf16.mxu0 %v3629
  %3706 = vmatmul.mubr.bf16.gmra.mrb[0].mxu0 %v3628
  %v3707 = vpop.f32.mrb[0].mxu0
  %v3708 = vadd.f32 0.0, %v3707
  %v3709 = vpop.f32.mrb[0].mxu0
  %v3710 = vadd.f32 0.0, %v3709
  %v3711 = vpop.f32.mrb[0].mxu0
  %v3712 = vpop.f32.mrb[0].mxu0
  %3713 = vdwg.mxu0
  %3714 = vmatprep.subr.bf16.mxu0 %v562
  %3715 = vmatpush1.bf16.msra.mxu0 %v561
  %3716 = vmatprep.subr.bf16.mxu0 %v570
  %3717 = vmatpush1.bf16.msra.mxu0 %v569
  %3718 = vmatprep.subr.bf16.mxu0 %v578
  %3719 = vmatpush1.bf16.msra.mxu0 %v577
  %3720 = vmatprep.subr.bf16.mxu0 %v586
  %3721 = vmatpush1.bf16.msra.mxu0 %v585
  %3722 = vmatprep.subr.bf16.mxu0 %v594
  %3723 = vmatpush1.bf16.msra.mxu0 %v593
  %3724 = vmatprep.subr.bf16.mxu0 %v602
  %3725 = vmatpush1.bf16.msra.mxu0 %v601
  %3726 = vmatprep.subr.bf16.mxu0 %v610
  %3727 = vmatpush1.bf16.msra.mxu0 %v609
  %3728 = vmatprep.subr.bf16.mxu0 %v618
  %3729 = vmatpush1.bf16.msra.mxu0 %v617
  %3730 = vmatprep.subr.bf16.mxu0 %v626
  %3731 = vmatpush1.bf16.msra.mxu0 %v625
  %3732 = vmatprep.subr.bf16.mxu0 %v634
  %3733 = vmatpush1.bf16.msra.mxu0 %v633
  %3734 = vmatprep.subr.bf16.mxu0 %v642
  %3735 = vmatpush1.bf16.msra.mxu0 %v641
  %3736 = vmatprep.subr.bf16.mxu0 %v650
  %3737 = vmatpush1.bf16.msra.mxu0 %v649
  %3738 = vmatprep.subr.bf16.mxu0 %v658
  %3739 = vmatpush1.bf16.msra.mxu0 %v657
  %3740 = vmatprep.subr.bf16.mxu0 %v666
  %3741 = vmatpush1.bf16.msra.mxu0 %v665
  %3742 = vmatprep.subr.bf16.mxu0 %v674
  %3743 = vmatpush1.bf16.msra.mxu0 %v673
  %3744 = vmatprep.subr.bf16.mxu0 %v682
  %3745 = vmatpush1.bf16.msra.mxu0 %v681
  %3746 = vmatprep.mubr.bf16.mxu0 %v3629
  %3747 = vmatmul.mubr.bf16.gmra.mrb[0].mxu0 %v3628
  %v3748 = vpop.f32.mrb[0].mxu0
  %v3749 = vadd.f32 0.0, %v3748
  %v3750 = vpop.f32.mrb[0].mxu0
  %v3751 = vadd.f32 0.0, %v3750
  %v3752 = vpop.f32.mrb[0].mxu0
  %v3753 = vpop.f32.mrb[0].mxu0
  %3754 = vdwg.mxu0
  %3755 = vmatprep.subr.bf16.mxu0 %v564
  %3756 = vmatpush1.bf16.msra.mxu0 %v563
  %3757 = vmatprep.subr.bf16.mxu0 %v572
  %3758 = vmatpush1.bf16.msra.mxu0 %v571
  %3759 = vmatprep.subr.bf16.mxu0 %v580
  %3760 = vmatpush1.bf16.msra.mxu0 %v579
  %3761 = vmatprep.subr.bf16.mxu0 %v588
  %3762 = vmatpush1.bf16.msra.mxu0 %v587
  %3763 = vmatprep.subr.bf16.mxu0 %v596
  %3764 = vmatpush1.bf16.msra.mxu0 %v595
  %3765 = vmatprep.subr.bf16.mxu0 %v604
  %3766 = vmatpush1.bf16.msra.mxu0 %v603
  %3767 = vmatprep.subr.bf16.mxu0 %v612
  %3768 = vmatpush1.bf16.msra.mxu0 %v611
  %3769 = vmatprep.subr.bf16.mxu0 %v620
  %3770 = vmatpush1.bf16.msra.mxu0 %v619
  %3771 = vmatprep.subr.bf16.mxu0 %v628
  %3772 = vmatpush1.bf16.msra.mxu0 %v627
  %3773 = vmatprep.subr.bf16.mxu0 %v636
  %3774 = vmatpush1.bf16.msra.mxu0 %v635
  %3775 = vmatprep.subr.bf16.mxu0 %v644
  %3776 = vmatpush1.bf16.msra.mxu0 %v643
  %3777 = vmatprep.subr.bf16.mxu0 %v652
  %3778 = vmatpush1.bf16.msra.mxu0 %v651
  %3779 = vmatprep.subr.bf16.mxu0 %v660
  %3780 = vmatpush1.bf16.msra.mxu0 %v659
  %3781 = vmatprep.subr.bf16.mxu0 %v668
  %3782 = vmatpush1.bf16.msra.mxu0 %v667
  %3783 = vmatprep.subr.bf16.mxu0 %v676
  %3784 = vmatpush1.bf16.msra.mxu0 %v675
  %3785 = vmatprep.subr.bf16.mxu0 %v684
  %3786 = vmatpush1.bf16.msra.mxu0 %v683
  %3787 = vmatprep.mubr.bf16.mxu0 %v3629
  %3788 = vmatmul.mubr.bf16.gmra.mrb[0].mxu0 %v3628
  %v3789 = vpop.f32.mrb[0].mxu0
  %v3790 = vadd.f32 0.0, %v3789
  %v3791 = vpop.f32.mrb[0].mxu0
  %v3792 = vadd.f32 0.0, %v3791
  %v3793 = vpop.f32.mrb[0].mxu0
  %v3794 = vpop.f32.mrb[0].mxu0
  %3795 = vdwg.mxu0
  %v3797 = vsel %vm1017, %v3631, 0
  %3799 = vmatprep.subr.bf16.mxu0 %v1002
  %3800 = vmatpush1.bf16.msra.mxu0 %v1001
  %3801 = vmatprep.subr.bf16.mxu0 0
  %3802 = vmatpush1.bf16.msra.mxu0 0
  %3803 = vmatprep.subr.bf16.mxu0 0
  %3804 = vmatpush1.bf16.msra.mxu0 0
  %3805 = vmatprep.subr.bf16.mxu0 0
  %3806 = vmatpush1.bf16.msra.mxu0 0
  %3807 = vmatprep.subr.bf16.mxu0 0
  %3808 = vmatpush1.bf16.msra.mxu0 0
  %3809 = vmatprep.subr.bf16.mxu0 0
  %3810 = vmatpush1.bf16.msra.mxu0 0
  %3811 = vmatprep.subr.bf16.mxu0 0
  %3812 = vmatpush1.bf16.msra.mxu0 0
  %3813 = vmatprep.subr.bf16.mxu0 0
  %3814 = vmatpush1.bf16.msra.mxu0 0
  %3815 = vmatprep.subr.bf16.mxu0 0
  %3816 = vmatpush1.bf16.msra.mxu0 0
  %3817 = vmatprep.subr.bf16.mxu0 0
  %3818 = vmatpush1.bf16.msra.mxu0 0
  %3819 = vmatprep.subr.bf16.mxu0 0
  %3820 = vmatpush1.bf16.msra.mxu0 0
  %3821 = vmatprep.subr.bf16.mxu0 0
  %3822 = vmatpush1.bf16.msra.mxu0 0
  %3823 = vmatprep.subr.bf16.mxu0 0
  %3824 = vmatpush1.bf16.msra.mxu0 0
  %3825 = vmatprep.subr.bf16.mxu0 0
  %3826 = vmatpush1.bf16.msra.mxu0 0
  %3827 = vmatprep.subr.bf16.mxu0 0
  %3828 = vmatpush1.bf16.msra.mxu0 0
  %3829 = vmatprep.subr.bf16.mxu0 0
  %3830 = vmatpush1.bf16.msra.mxu0 0
  %3831 = vmatprep.mubr.bf16.mxu0 0
  %3832 = vmatmul.mubr.bf16.gmra.mrb[0].mxu0 %v3797
  %v3833 = vpop.f32.mrb[0].mxu0
  %v3834 = vadd.f32 %v3667, %v3833
  %v3835 = vpop.f32.mrb[0].mxu0
  %v3836 = vadd.f32 %v3669, %v3835
  %v3837 = vpop.f32.mrb[0].mxu0
  %v3838 = vpop.f32.mrb[0].mxu0
  %3839 = vdwg.mxu0
  %3840 = vmatprep.subr.bf16.mxu0 %v1004
  %3841 = vmatpush1.bf16.msra.mxu0 %v1003
  %3842 = vmatprep.subr.bf16.mxu0 0
  %3843 = vmatpush1.bf16.msra.mxu0 0
  %3844 = vmatprep.subr.bf16.mxu0 0
  %3845 = vmatpush1.bf16.msra.mxu0 0
  %3846 = vmatprep.subr.bf16.mxu0 0
  %3847 = vmatpush1.bf16.msra.mxu0 0
  %3848 = vmatprep.subr.bf16.mxu0 0
  %3849 = vmatpush1.bf16.msra.mxu0 0
  %3850 = vmatprep.subr.bf16.mxu0 0
  %3851 = vmatpush1.bf16.msra.mxu0 0
  %3852 = vmatprep.subr.bf16.mxu0 0
  %3853 = vmatpush1.bf16.msra.mxu0 0
  %3854 = vmatprep.subr.bf16.mxu0 0
  %3855 = vmatpush1.bf16.msra.mxu0 0
  %3856 = vmatprep.subr.bf16.mxu0 0
  %3857 = vmatpush1.bf16.msra.mxu0 0
  %3858 = vmatprep.subr.bf16.mxu0 0
  %3859 = vmatpush1.bf16.msra.mxu0 0
  %3860 = vmatprep.subr.bf16.mxu0 0
  %3861 = vmatpush1.bf16.msra.mxu0 0
  %3862 = vmatprep.subr.bf16.mxu0 0
  %3863 = vmatpush1.bf16.msra.mxu0 0
  %3864 = vmatprep.subr.bf16.mxu0 0
  %3865 = vmatpush1.bf16.msra.mxu0 0
  %3866 = vmatprep.subr.bf16.mxu0 0
  %3867 = vmatpush1.bf16.msra.mxu0 0
  %3868 = vmatprep.subr.bf16.mxu0 0
  %3869 = vmatpush1.bf16.msra.mxu0 0
  %3870 = vmatprep.subr.bf16.mxu0 0
  %3871 = vmatpush1.bf16.msra.mxu0 0
  %3872 = vmatprep.mubr.bf16.mxu0 0
  %3873 = vmatmul.mubr.bf16.gmra.mrb[0].mxu0 %v3797
  %v3874 = vpop.f32.mrb[0].mxu0
  %v3875 = vadd.f32 %v3708, %v3874
  %v3876 = vpop.f32.mrb[0].mxu0
  %v3877 = vadd.f32 %v3710, %v3876
  %v3878 = vpop.f32.mrb[0].mxu0
  %v3879 = vpop.f32.mrb[0].mxu0
  %3880 = vdwg.mxu0
  %3881 = vmatprep.subr.bf16.mxu0 %v1006
  %3882 = vmatpush1.bf16.msra.mxu0 %v1005
  %3883 = vmatprep.subr.bf16.mxu0 0
  %3884 = vmatpush1.bf16.msra.mxu0 0
  %3885 = vmatprep.subr.bf16.mxu0 0
  %3886 = vmatpush1.bf16.msra.mxu0 0
  %3887 = vmatprep.subr.bf16.mxu0 0
  %3888 = vmatpush1.bf16.msra.mxu0 0
  %3889 = vmatprep.subr.bf16.mxu0 0
  %3890 = vmatpush1.bf16.msra.mxu0 0
  %3891 = vmatprep.subr.bf16.mxu0 0
  %3892 = vmatpush1.bf16.msra.mxu0 0
  %3893 = vmatprep.subr.bf16.mxu0 0
  %3894 = vmatpush1.bf16.msra.mxu0 0
  %3895 = vmatprep.subr.bf16.mxu0 0
  %3896 = vmatpush1.bf16.msra.mxu0 0
  %3897 = vmatprep.subr.bf16.mxu0 0
  %3898 = vmatpush1.bf16.msra.mxu0 0
  %3899 = vmatprep.subr.bf16.mxu0 0
  %3900 = vmatpush1.bf16.msra.mxu0 0
  %3901 = vmatprep.subr.bf16.mxu0 0
  %3902 = vmatpush1.bf16.msra.mxu0 0
  %3903 = vmatprep.subr.bf16.mxu0 0
  %3904 = vmatpush1.bf16.msra.mxu0 0
  %3905 = vmatprep.subr.bf16.mxu0 0
  %3906 = vmatpush1.bf16.msra.mxu0 0
  %3907 = vmatprep.subr.bf16.mxu0 0
  %3908 = vmatpush1.bf16.msra.mxu0 0
  %3909 = vmatprep.subr.bf16.mxu0 0
  %3910 = vmatpush1.bf16.msra.mxu0 0
  %3911 = vmatprep.subr.bf16.mxu0 0
  %3912 = vmatpush1.bf16.msra.mxu0 0
  %3913 = vmatprep.mubr.bf16.mxu0 0
  %3914 = vmatmul.mubr.bf16.gmra.mrb[0].mxu0 %v3797
  %v3915 = vpop.f32.mrb[0].mxu0
  %v3916 = vadd.f32 %v3749, %v3915
  %v3917 = vpop.f32.mrb[0].mxu0
  %v3918 = vadd.f32 %v3751, %v3917
  %v3919 = vpop.f32.mrb[0].mxu0
  %v3920 = vpop.f32.mrb[0].mxu0
  %3921 = vdwg.mxu0
  %3922 = vmatprep.subr.bf16.mxu0 %v1008
  %3923 = vmatpush1.bf16.msra.mxu0 %v1007
  %3924 = vmatprep.subr.bf16.mxu0 0
  %3925 = vmatpush1.bf16.msra.mxu0 0
  %3926 = vmatprep.subr.bf16.mxu0 0
  %3927 = vmatpush1.bf16.msra.mxu0 0
  %3928 = vmatprep.subr.bf16.mxu0 0
  %3929 = vmatpush1.bf16.msra.mxu0 0
  %3930 = vmatprep.subr.bf16.mxu0 0
  %3931 = vmatpush1.bf16.msra.mxu0 0
  %3932 = vmatprep.subr.bf16.mxu0 0
  %3933 = vmatpush1.bf16.msra.mxu0 0
  %3934 = vmatprep.subr.bf16.mxu0 0
  %3935 = vmatpush1.bf16.msra.mxu0 0
  %3936 = vmatprep.subr.bf16.mxu0 0
  %3937 = vmatpush1.bf16.msra.mxu0 0
  %3938 = vmatprep.subr.bf16.mxu0 0
  %3939 = vmatpush1.bf16.msra.mxu0 0
  %3940 = vmatprep.subr.bf16.mxu0 0
  %3941 = vmatpush1.bf16.msra.mxu0 0
  %3942 = vmatprep.subr.bf16.mxu0 0
  %3943 = vmatpush1.bf16.msra.mxu0 0
  %3944 = vmatprep.subr.bf16.mxu0 0
  %3945 = vmatpush1.bf16.msra.mxu0 0
  %3946 = vmatprep.subr.bf16.mxu0 0
  %3947 = vmatpush1.bf16.msra.mxu0 0
  %3948 = vmatprep.subr.bf16.mxu0 0
  %3949 = vmatpush1.bf16.msra.mxu0 0
  %3950 = vmatprep.subr.bf16.mxu0 0
  %3951 = vmatpush1.bf16.msra.mxu0 0
  %3952 = vmatprep.subr.bf16.mxu0 0
  %3953 = vmatpush1.bf16.msra.mxu0 0
  %3954 = vmatprep.mubr.bf16.mxu0 0
  %3955 = vmatmul.mubr.bf16.gmra.mrb[0].mxu0 %v3797
  %v3956 = vpop.f32.mrb[0].mxu0
  %v3957 = vadd.f32 %v3790, %v3956
  %v3958 = vpop.f32.mrb[0].mxu0
  %v3959 = vadd.f32 %v3792, %v3958
  %v3960 = vpop.f32.mrb[0].mxu0
  %v3961 = vpop.f32.mrb[0].mxu0
  %3962 = vdwg.mxu0
  %v3963 = vadd.f32 %v3834, %v1189
  %v3964 = vadd.f32 %v3836, %v1193
  %v3965 = vadd.f32 %v3875, %v1197
  %v3966 = vadd.f32 %v3877, %v1201
  %v3967 = vadd.f32 %v3916, %v1205
  %v3968 = vadd.f32 %v3918, %v1209
  %v3969 = vadd.f32 %v3957, %v1213
  %v3970 = vadd.f32 %v3959, %v1217
  %v3971 = vxor.u32 %v3963, 2147483648
  %v3972 = vxor.u32 %v3964, 2147483648
  %v3973 = vmul.f32 %v3971, 1.442695
  %v3974 = vpow.pop %v3973
  %v3975 = vmul.f32 %v3972, 1.442695
  %v3976 = vpow.pop %v3975
  %v3977 = vadd.f32 %v3974, 1.0
  %v3978 = vadd.f32 %v3976, 1.0
  %v3979 = vrcp.pop %v3977
  %v3980 = vmul.f32 1.0, %v3979
  %v3981 = vrcp.pop %v3978
  %v3982 = vmul.f32 1.0, %v3981
  %v3983 = vxor.u32 %v3965, 2147483648
  %v3984 = vxor.u32 %v3966, 2147483648
  %v3985 = vmul.f32 %v3983, 1.442695
  %v3986 = vpow.pop %v3985
  %v3987 = vmul.f32 %v3984, 1.442695
  %v3988 = vpow.pop %v3987
  %v3989 = vadd.f32 %v3986, 1.0
  %v3990 = vadd.f32 %v3988, 1.0
  %v3991 = vrcp.pop %v3989
  %v3992 = vmul.f32 1.0, %v3991
  %v3993 = vrcp.pop %v3990
  %v3994 = vmul.f32 1.0, %v3993
  %v3995 = vtanh.pop %v3967
  %v3996 = vtanh.pop %v3968
  %v3997 = vxor.u32 %v3969, 2147483648
  %v3998 = vxor.u32 %v3970, 2147483648
  %v3999 = vmul.f32 %v3997, 1.442695
  %v4000 = vpow.pop %v3999
  %v4001 = vmul.f32 %v3998, 1.442695
  %v4002 = vpow.pop %v4001
  %v4003 = vadd.f32 %v4000, 1.0
  %v4004 = vadd.f32 %v4002, 1.0
  %v4005 = vrcp.pop %v4003
  %v4006 = vmul.f32 1.0, %v4005
  %v4007 = vrcp.pop %v4004
  %v4008 = vmul.f32 1.0, %v4007
  %v4009 = vmul.f32 %v3992, %v3622
  %v4010 = vmul.f32 %v3994, %v3623
  %v4011 = vmul.f32 %v3980, %v3995
  %v4012 = vmul.f32 %v3982, %v3996
  %v4013 = vadd.f32 %v4009, %v4011
  %v4014 = vadd.f32 %v4010, %v4012
  %v4015 = vtanh.pop %v4013
  %v4016 = vtanh.pop %v4014
  %v4017 = vmul.f32 %v4006, %v4015
  %v4018 = vmul.f32 %v4008, %v4016
  %v4019 = vpack.c.bf16 %v4017, %v4017
  %v4020 = vpack.c.bf16 %v4018, %v4018
  %v4023 = vunpack.c.l.b16 %v4019
  %v4024 = vunpack.c.l.b16 %v4020
  %v4025 = vpack.c.b16 %v4024, %v4023
  %4027 = vst [vmem:[#allocation2] sm:$0xff] %v4025
  %4028 = vst [vmem:[#allocation3] sm:$0xff] %v4013
  %4029 = vst [vmem:[#allocation3 + $0x8] sm:$0xff] %v4014
  // Predicated region
  $region22: #{lstm_bn1_forward.1} parent=0 // pred_check
    %p4030 = pneg %p18
  $region23: #{lstm_bn1_forward.1} parent=0 // pred_check_branch
    %4032 = sbr.rel (%p4030) target = $region25
  $region24: #{lstm_bn1_forward.1} parent=0 // pred_region
    %v4033 = vunpack.c.l.bf16 %v4019
    %v4034 = vunpack.c.l.bf16 %v4020
    %4035 = vst [vmem:[%s4] sm:$0xff] %v4033
    %4036 = vst [vmem:[%s4 + $0x8] sm:$0xff] %v4034
  $region25: #{lstm_bn1_forward.1} parent=0 // pred_fallthru
    _
  // Predicated region
  $region26: #{lstm_bn1_forward.1} parent=0 // pred_check
    _
  $region27: #{lstm_bn1_forward.1} parent=0 // pred_check_branch
    %4038 = sbr.rel (0) target = $region29
  $region28: #{lstm_bn1_forward.1} parent=0 // pred_region
    _
  $region29: #{lstm_bn1_forward.1} parent=0 // pred_fallthru
    _
  // Predicated region
  $region30: #{lstm_bn1_forward.1} parent=0 // pred_check
    _
  $region31: #{lstm_bn1_forward.1} parent=0 // pred_check_branch
    %4040 = sbr.rel (0) target = $region33
  $region32: #{lstm_bn1_forward.1} parent=0 // pred_region
    _
  $region33: #{lstm_bn1_forward.1} parent=0 // pred_fallthru
    _

</llo_original>
